<compile_context>
chip_gen: v6e
topology: v6e:2x2x1
jax: 0.10.0
libtpu: 0.0.40
codegen_flags: <defaults>
</compile_context>

<pallas_src>
import functools
import math

import jax
import jax.numpy as jnp
from jax.experimental import pallas as pl
from jax.experimental.pallas import tpu as pltpu


def _round_up(x, m):
    return ((x + m - 1) // m) * m


def _pick_tile(length, max_tile, align=8):
    """Tile size for one streamed axis.

    If the whole axis fits in one tile, use it (rounded up to `align`, at most
    align-1 padded rows).  Otherwise pick a multiple of 128 (<= max_tile) that
    minimizes total padding, preferring larger tiles on ties.
    """
    if length <= max_tile:
        return _round_up(length, align)
    base = max(128, (max_tile // 128) * 128)
    best_t, best_pad = base, _round_up(length, base)
    for cand in sorted({base, max(128, base // 2), 128}, reverse=True):
        pad = _round_up(length, cand)
        if pad < best_pad:
            best_t, best_pad = cand, pad
    return best_t


def _gated_attn_kernel(q_ref, kv_ref, mb_ref, w1_ref, w2_ref, b_ref, o_ref,
                       m_sc, l_sc, acc_sc,
                       *, num_heads, head_dim, gate_method):
    # q_ref : (1, tq, d)    input tile (query, and first half of the concat)
    # kv_ref: (1, tkv, d)   memory tile (key == value, no projection)
    # mb_ref: (1, 1, tkv)   additive mask bias, f32 (-1e30 on masked/padded positions)
    # w1/w2 : (d, d)        W[:, :d].T and W[:, d:].T of the concat Linear
    # b_ref : (1, d)
    # o_ref : (1, tq, d)
    # m_sc/l_sc : (H, tq, 1)  f32 running max / running sum (online softmax)
    # acc_sc    : (H, tq, dh) f32 unnormalized per-head context accumulator
    kv_step = pl.program_id(2)

    @pl.when(kv_step == 0)
    def _init():
        m_sc[...] = jnp.full(m_sc.shape, -jnp.inf, dtype=m_sc.dtype)
        l_sc[...] = jnp.zeros(l_sc.shape, dtype=l_sc.dtype)
        acc_sc[...] = jnp.zeros(acc_sc.shape, dtype=acc_sc.dtype)

    q = q_ref[0]                                    # (tq, d), native dtype
    kv = kv_ref[0]                                  # (tkv, d), native dtype
    mb = mb_ref[0]                                  # (1, tkv), f32
    # Fold 1/sqrt(dh) into Q once (stays in the native dtype for the MXU).
    q_s = q * (1.0 / math.sqrt(head_dim))

    # TODO(synk): attention-prob dropout omitted (eval-mode forward -> identity).
    for h in range(num_heads):
        lo = h * head_dim
        qh = q_s[:, lo:lo + head_dim]               # (tq, dh)   native dtype
        kh = kv[:, lo:lo + head_dim]                # (tkv, dh)  key == value slice
        # QK^T on the MXU in the native dtype, f32 accumulation.
        s = jax.lax.dot_general(qh, kh, (((1,), (1,)), ((), ())),
                                preferred_element_type=jnp.float32)
        s = s + mb                                  # additive -1e30 mask (f32)
        m_prev = m_sc[h]                            # (tq, 1)
        m_new = jnp.maximum(m_prev, jnp.max(s, axis=-1, keepdims=True))
        alpha = jnp.exp(m_prev - m_new)             # (tq, 1)
        p = jnp.exp(s - m_new)                      # (tq, tkv) unnormalized, f32
        l_sc[h] = alpha * l_sc[h] + jnp.sum(p, axis=-1, keepdims=True)
        acc_sc[h] = alpha * acc_sc[h] + jnp.dot(p.astype(kv.dtype), kh,
                                                preferred_element_type=jnp.float32)
        m_sc[h] = m_new

    @pl.when(kv_step == pl.num_programs(2) - 1)
    def _finalize():
        # concat([input, ctx]) @ W^T + b == input @ W[:, :d]^T + ctx @ W[:, d:]^T + b.
        # Per-head accumulation with sublane slices of W2 avoids a lane-dim concat.
        y = jnp.dot(q, w1_ref[...], preferred_element_type=jnp.float32)
        for h in range(num_heads):
            lo = h * head_dim
            # Deferred softmax normalization: one approx (EUP) reciprocal per head.
            ctx_h = acc_sc[h] * pl.reciprocal(l_sc[h], approx=True)      # (tq, dh) f32
            y = y + jnp.dot(ctx_h.astype(w2_ref.dtype),
                            w2_ref[lo:lo + head_dim, :],
                            preferred_element_type=jnp.float32)
        y = y + b_ref[...].astype(jnp.float32)
        if gate_method == 'gate_att_up':
            out = jax.nn.sigmoid(y) * jnp.tanh(y)
        else:  # 'no_gate'
            out = jax.nn.gelu(y, approximate=False)
        o_ref[0] = out.astype(o_ref.dtype)


def adapted_gated_attention_without_qkv(inp, memory, mask, concat_weight, concat_bias,
                                        *, num_heads, gate_method='gate_att_up',
                                        tile_q=256, tile_kv=512):
    """Eval-mode forward of AdaptedGatedAttentionWithoutqkv.

    inp           : [N, Ld, d]   context encoding (query, no projection)
    memory        : [N, Lm, d]   query encoding   (key == value, no projection)
    mask          : [N, Lm]      1 = valid token, 0 = padding
    concat_weight : [d, 2d]      PyTorch nn.Linear(2d, d).weight
    concat_bias   : [d]
    """
    if gate_method not in ('gate_att_up', 'no_gate'):
        raise ValueError('Not support gate method: {}'.format(gate_method))

    N, Ld, d = inp.shape
    Nm, Lm, dm = memory.shape
    assert Nm == N and dm == d, "input/memory batch or hidden mismatch"
    assert d % num_heads == 0, "hidden dim must divide num_heads"
    head_dim = d // num_heads

    # Split the concat Linear into two d x d operands (right-multiply form).
    w1t = jnp.asarray(concat_weight[:, :d]).T           # [d, d]
    w2t = jnp.asarray(concat_weight[:, d:]).T            # [d, d]
    b2 = jnp.asarray(concat_bias).reshape(1, d)

    # Tile sizes (query rows over Ld, memory rows over Lm); pad remainders.
    tq = _pick_tile(Ld, tile_q)
    tkv = _pick_tile(Lm, tile_kv)
    Ld_p = _round_up(Ld, tq)
    Lm_p = _round_up(Lm, tkv)

    inp_p = inp if Ld_p == Ld else jnp.pad(inp, ((0, 0), (0, Ld_p - Ld), (0, 0)))
    mem_p = memory if Lm_p == Lm else jnp.pad(memory, ((0, 0), (0, Lm_p - Lm), (0, 0)))
    mask_p = mask if Lm_p == Lm else jnp.pad(mask, ((0, 0), (0, Lm_p - Lm)))
    # Additive mask bias in f32 (padded memory rows are masked out too).
    mask_bias = (-1e30 * (1.0 - mask_p.astype(jnp.float32))).reshape(N, 1, Lm_p)

    grid = (N, Ld_p // tq, Lm_p // tkv)

    kernel = functools.partial(_gated_attn_kernel, num_heads=num_heads,
                               head_dim=head_dim, gate_method=gate_method)

    itemsize = jnp.dtype(inp.dtype).itemsize
    w_itemsize = jnp.dtype(w1t.dtype).itemsize
    dh_pad = _round_up(head_dim, 128)
    # Rough VMEM need (double-buffered streaming blocks + scratch), with headroom.
    vmem_need = (2 * tq * d * itemsize                      # input tile
                 + 2 * tkv * d * itemsize                   # memory tile
                 + 2 * tkv * 4                              # mask-bias tile
                 + 2 * 2 * d * d * w_itemsize               # two weight blocks
                 + 2 * d * w_itemsize                       # bias
                 + 2 * tq * d * itemsize                    # output tile
                 + num_heads * tq * (dh_pad + 2 * 128) * 4)  # m/l/acc scratch (lane-padded)
    vmem_limit = int(min(max(vmem_need * 5 // 4, 32 * 1024 * 1024), 128 * 1024 * 1024))

    cost = pl.CostEstimate(
        flops=int(4 * N * Ld * Lm * d + 4 * N * Ld * d * d),
        transcendentals=int(N * num_heads * Ld * Lm + 2 * N * Ld * d),
        bytes_accessed=int((2 * N * Ld * d + N * Lm * d) * itemsize
                           + N * Lm * 4 + (2 * d * d + d) * w_itemsize),
    )

    def _call(single_buffer_params):
        # Grid-invariant operands (weights / bias) do not need double buffering.
        param_kwargs = (dict(pipeline_mode=pl.Buffered(1))
                        if single_buffer_params else {})
        in_specs = [
            pl.BlockSpec((1, tq, d), lambda b, i, k: (b, i, 0)),      # input tile
            pl.BlockSpec((1, tkv, d), lambda b, i, k: (b, k, 0)),     # memory tile (K == V)
            pl.BlockSpec((1, 1, tkv), lambda b, i, k: (b, 0, k)),     # mask-bias tile
            pl.BlockSpec((d, d), lambda b, i, k: (0, 0), **param_kwargs),  # W[:, :d].T
            pl.BlockSpec((d, d), lambda b, i, k: (0, 0), **param_kwargs),  # W[:, d:].T
            pl.BlockSpec((1, d), lambda b, i, k: (0, 0), **param_kwargs),  # bias
        ]
        return pl.pallas_call(
            kernel,
            out_shape=jax.ShapeDtypeStruct((N, Ld_p, d), inp.dtype),
            grid=grid,
            in_specs=in_specs,
            out_specs=pl.BlockSpec((1, tq, d), lambda b, i, k: (b, i, 0)),
            scratch_shapes=[
                pltpu.VMEM((num_heads, tq, 1), jnp.float32),          # running max
                pltpu.VMEM((num_heads, tq, 1), jnp.float32),          # running sum
                pltpu.VMEM((num_heads, tq, head_dim), jnp.float32),   # context accumulator
            ],
            compiler_params=pltpu.CompilerParams(
                dimension_semantics=("parallel", "parallel", "arbitrary"),
                vmem_limit_bytes=vmem_limit,
            ),
            cost_estimate=cost,
        )(inp_p, mem_p, mask_bias, w1t, w2t, b2)

    try:
        out = _call(True)
    except Exception:
        # pl.Buffered(1) (single-buffering grid-invariant blocks) not supported on this
        # jax version -> fall back to default double buffering; everything else unchanged.
        out = _call(False)

    return out[:, :Ld, :]


if __name__ == "__main__":
    def reference(inp, mem, mask, w, b, num_heads, gate_method='gate_att_up'):
        # Plain-JAX reference (same math as the PyTorch forward; dropout = id in eval).
        N, Ld, d = inp.shape
        Lm = mem.shape[1]
        dh = d // num_heads
        qr = inp.reshape(N, Ld, num_heads, dh).transpose(0, 2, 1, 3)
        kr = mem.reshape(N, Lm, num_heads, dh).transpose(0, 2, 1, 3)
        s = jnp.einsum('nhqd,nhkd->nhqk', qr, kr) / math.sqrt(dh)
        s = s + (-1e30 * (1.0 - mask))[:, None, None, :]
        p = jax.nn.softmax(s, axis=-1)
        ctx = jnp.einsum('nhqk,nhkd->nhqd', p, kr).transpose(0, 2, 1, 3).reshape(N, Ld, d)
        y = jnp.concatenate([inp, ctx], axis=-1) @ w.T + b
        if gate_method == 'gate_att_up':
            return jax.nn.sigmoid(y) * jnp.tanh(y)
        return jax.nn.gelu(y, approximate=False)

    key = jax.random.PRNGKey(0)

    # Case 1: small shapes, single KV step.
    N, Ld, Lm, d, H = 2, 8, 8, 32, 4
    k1, k2, k3, k4 = jax.random.split(key, 4)
    inp = jax.random.normal(k1, (N, Ld, d), dtype=jnp.float32)
    mem = jax.random.normal(k2, (N, Lm, d), dtype=jnp.float32)
    lengths = jnp.array([Lm, Lm - 3])
    mask = (jnp.arange(Lm)[None, :] < lengths[:, None]).astype(jnp.float32)
    w = jax.random.normal(k3, (d, 2 * d), dtype=jnp.float32) * 0.05
    b = jax.random.normal(k4, (d,), dtype=jnp.float32) * 0.05

    out = adapted_gated_attention_without_qkv(inp, mem, mask, w, b, num_heads=H)
    out = jax.block_until_ready(out)
    ref = reference(inp, mem, mask, w, b, H)
    assert jnp.allclose(out, ref, atol=2e-2, rtol=2e-2), "mismatch (single KV step)"

    # Case 2: exercise the online-softmax path (multiple KV tiles + Lm/Ld padding).
    N2, Ld2, Lm2 = 2, 12, 300
    k5, k6 = jax.random.split(k4, 2)
    inp2 = jax.random.normal(k5, (N2, Ld2, d), dtype=jnp.float32)
    mem2 = jax.random.normal(k6, (N2, Lm2, d), dtype=jnp.float32)
    lengths2 = jnp.array([Lm2, 137])
    mask2 = (jnp.arange(Lm2)[None, :] < lengths2[:, None]).astype(jnp.float32)
    out2 = adapted_gated_attention_without_qkv(inp2, mem2, mask2, w, b,
                                               num_heads=H, tile_kv=128)
    out2 = jax.block_until_ready(out2)
    ref2 = reference(inp2, mem2, mask2, w, b, H)
    assert jnp.allclose(out2, ref2, atol=2e-2, rtol=2e-2), "mismatch (multi KV step)"

    print("KERNEL_OK")
</pallas_src>

<mosaic_0001>
module attributes {stable_mosaic.version = 11 : i64} {
  func.func @_gated_attn_kernel(%arg0: i32, %arg1: i32, %arg2: i32, %arg3: memref<1x8x32xf32, #tpu.memory_space<vmem>>, %arg4: memref<1x8x32xf32, #tpu.memory_space<vmem>>, %arg5: memref<1x1x8xf32, #tpu.memory_space<vmem>>, %arg6: memref<32x32xf32, #tpu.memory_space<vmem>>, %arg7: memref<32x32xf32, #tpu.memory_space<vmem>>, %arg8: memref<1x32xf32, #tpu.memory_space<vmem>>, %arg9: memref<1x8x32xf32, #tpu.memory_space<vmem>>, %arg10: memref<4x8x1xf32, #tpu.memory_space<vmem>>, %arg11: memref<4x8x1xf32, #tpu.memory_space<vmem>>, %arg12: memref<4x8x8xf32, #tpu.memory_space<vmem>>) attributes {dimension_semantics = [#tpu.dimension_semantics<parallel>, #tpu.dimension_semantics<parallel>, #tpu.dimension_semantics<arbitrary>], iteration_bounds = array<i64: 2, 1, 1>, scalar_prefetch = 0 : i64, scratch_operands = 3 : i64, tpu.core_type = #tpu.core_type<tc>, window_params = [{transform_indices = @transform_0, window_bounds = array<i64: 1, 8, 32>}, {transform_indices = @transform_1, window_bounds = array<i64: 1, 8, 32>}, {transform_indices = @transform_2, window_bounds = array<i64: 1, 1, 8>}, {pipeline_mode = #tpu.pipeline_mode<synchronous>, transform_indices = @transform_3, window_bounds = array<i64: 32, 32>}, {pipeline_mode = #tpu.pipeline_mode<synchronous>, transform_indices = @transform_4, window_bounds = array<i64: 32, 32>}, {pipeline_mode = #tpu.pipeline_mode<synchronous>, transform_indices = @transform_5, window_bounds = array<i64: 1, 32>}, {transform_indices = @transform_6, window_bounds = array<i64: 1, 8, 32>}]} {
    %c0_i32 = arith.constant 0 : i32
    %0 = arith.cmpi eq, %arg2, %c0_i32 : i32
    %1 = arith.extui %0 : i1 to i32
    %c0_i32_0 = arith.constant 0 : i32
    %2 = arith.cmpi ne, %1, %c0_i32_0 : i32
    scf.if %2 {
      %cst_96 = arith.constant 0xFF800000 : f32
      %158 = vector.broadcast %cst_96 : f32 to vector<4x8x1xf32>
      %c0_97 = arith.constant 0 : index
      %c0_98 = arith.constant 0 : index
      %c0_99 = arith.constant 0 : index
      %159 = vector.load %arg10[%c0_97, %c0_98, %c0_99] : memref<4x8x1xf32, #tpu.memory_space<vmem>>, vector<4x8x1xf32>
      tpu.vector_store %arg10[%c0_97, %c0_98, %c0_99], %158 {strides = array<i32>} : memref<4x8x1xf32, #tpu.memory_space<vmem>>, vector<4x8x1xf32>,
      %cst_100 = arith.constant 0.000000e+00 : f32
      %160 = vector.broadcast %cst_100 : f32 to vector<4x8x1xf32>
      %c0_101 = arith.constant 0 : index
      %c0_102 = arith.constant 0 : index
      %c0_103 = arith.constant 0 : index
      %161 = vector.load %arg11[%c0_101, %c0_102, %c0_103] : memref<4x8x1xf32, #tpu.memory_space<vmem>>, vector<4x8x1xf32>
      tpu.vector_store %arg11[%c0_101, %c0_102, %c0_103], %160 {strides = array<i32>} : memref<4x8x1xf32, #tpu.memory_space<vmem>>, vector<4x8x1xf32>,
      %cst_104 = arith.constant 0.000000e+00 : f32
      %162 = vector.broadcast %cst_104 : f32 to vector<4x8x8xf32>
      %c0_105 = arith.constant 0 : index
      %c0_106 = arith.constant 0 : index
      %c0_107 = arith.constant 0 : index
      %163 = vector.load %arg12[%c0_105, %c0_106, %c0_107] : memref<4x8x8xf32, #tpu.memory_space<vmem>>, vector<4x8x8xf32>
      tpu.vector_store %arg12[%c0_105, %c0_106, %c0_107], %162 {strides = array<i32>} : memref<4x8x8xf32, #tpu.memory_space<vmem>>, vector<4x8x8xf32>,
    } else {
    }
    %c0 = arith.constant 0 : index
    %c0_1 = arith.constant 0 : index
    %c0_2 = arith.constant 0 : index
    %3 = vector.load %arg3[%c0, %c0_1, %c0_2] : memref<1x8x32xf32, #tpu.memory_space<vmem>>, vector<1x8x32xf32>
    %4 = vector.shape_cast %3 : vector<1x8x32xf32> to vector<8x32xf32>
    %c0_3 = arith.constant 0 : index
    %c0_4 = arith.constant 0 : index
    %c0_5 = arith.constant 0 : index
    %5 = vector.load %arg4[%c0_3, %c0_4, %c0_5] : memref<1x8x32xf32, #tpu.memory_space<vmem>>, vector<1x8x32xf32>
    %6 = vector.shape_cast %5 : vector<1x8x32xf32> to vector<8x32xf32>
    %c0_6 = arith.constant 0 : index
    %c0_7 = arith.constant 0 : index
    %c0_8 = arith.constant 0 : index
    %7 = vector.load %arg5[%c0_6, %c0_7, %c0_8] : memref<1x1x8xf32, #tpu.memory_space<vmem>>, vector<1x1x8xf32>
    %8 = vector.shape_cast %7 : vector<1x1x8xf32> to vector<1x8xf32>
    %cst = arith.constant 0.353553385 : f32
    %9 = vector.broadcast %cst : f32 to vector<8x32xf32>
    %10 = arith.mulf %4, %9 : vector<8x32xf32>
    %11 = vector.extract_strided_slice %10 {offsets = [0, 0], sizes = [8, 8], strides = [1, 1]} : vector<8x32xf32> to vector<8x8xf32>
    %12 = vector.extract_strided_slice %6 {offsets = [0, 0], sizes = [8, 8], strides = [1, 1]} : vector<8x32xf32> to vector<8x8xf32>
    %cst_9 = arith.constant dense<0.000000e+00> : vector<8x8xf32>
    %13 = tpu.matmul %11, %12, %cst_9 {dimension_numbers = #tpu.dot_dimension_numbers<[1], [1], [0], [0], [0, 0, 1, 0], [], []>} : vector<8x8xf32>, vector<8x8xf32>, vector<8x8xf32> -> vector<8x8xf32>
    %14 = vector.broadcast %8 : vector<1x8xf32> to vector<8x8xf32>
    %15 = arith.addf %13, %14 : vector<8x8xf32>
    %c0_10 = arith.constant 0 : index
    %c0_11 = arith.constant 0 : index
    %c0_12 = arith.constant 0 : index
    %16 = vector.load %arg10[%c0_10, %c0_11, %c0_12] : memref<4x8x1xf32, #tpu.memory_space<vmem>>, vector<1x8x1xf32>
    %17 = vector.shape_cast %16 : vector<1x8x1xf32> to vector<8x1xf32>
    %cst_13 = arith.constant dense<0xFF800000> : vector<8xf32>
    %18 = vector.multi_reduction <maximumf>, %15, %cst_13 [1] : vector<8x8xf32> to vector<8xf32>
    %19 = vector.shape_cast %18 : vector<8xf32> to vector<8x1xf32>
    %20 = arith.maximumf %17, %19 : vector<8x1xf32>
    %21 = arith.subf %17, %20 : vector<8x1xf32>
    %22 = math.exp %21 : vector<8x1xf32>
    %23 = vector.broadcast %20 : vector<8x1xf32> to vector<8x8xf32>
    %24 = arith.subf %15, %23 : vector<8x8xf32>
    %25 = math.exp %24 : vector<8x8xf32>
    %c0_14 = arith.constant 0 : index
    %c0_15 = arith.constant 0 : index
    %c0_16 = arith.constant 0 : index
    %26 = vector.load %arg11[%c0_14, %c0_15, %c0_16] : memref<4x8x1xf32, #tpu.memory_space<vmem>>, vector<1x8x1xf32>
    %27 = vector.shape_cast %26 : vector<1x8x1xf32> to vector<8x1xf32>
    %28 = arith.mulf %22, %27 : vector<8x1xf32>
    %cst_17 = arith.constant dense<0.000000e+00> : vector<8xf32>
    %29 = vector.multi_reduction <add>, %25, %cst_17 [1] : vector<8x8xf32> to vector<8xf32>
    %30 = vector.shape_cast %29 : vector<8xf32> to vector<8x1xf32>
    %31 = arith.addf %28, %30 : vector<8x1xf32>
    %c0_18 = arith.constant 0 : index
    %c0_19 = arith.constant 0 : index
    %c0_20 = arith.constant 0 : index
    %32 = vector.load %arg11[%c0_18, %c0_19, %c0_20] : memref<4x8x1xf32, #tpu.memory_space<vmem>>, vector<1x8x1xf32>
    %33 = vector.shape_cast %32 : vector<1x8x1xf32> to vector<8x1xf32>
    %34 = vector.shape_cast %31 : vector<8x1xf32> to vector<1x8x1xf32>
    tpu.vector_store %arg11[%c0_18, %c0_19, %c0_20], %34 {strides = array<i32>} : memref<4x8x1xf32, #tpu.memory_space<vmem>>, vector<1x8x1xf32>,
    %c0_21 = arith.constant 0 : index
    %c0_22 = arith.constant 0 : index
    %c0_23 = arith.constant 0 : index
    %35 = vector.load %arg12[%c0_21, %c0_22, %c0_23] : memref<4x8x8xf32, #tpu.memory_space<vmem>>, vector<1x8x8xf32>
    %36 = vector.shape_cast %35 : vector<1x8x8xf32> to vector<8x8xf32>
    %37 = vector.broadcast %22 : vector<8x1xf32> to vector<8x8xf32>
    %38 = arith.mulf %37, %36 : vector<8x8xf32>
    %cst_24 = arith.constant dense<0.000000e+00> : vector<8x8xf32>
    %39 = tpu.matmul %25, %12, %cst_24 {dimension_numbers = #tpu.dot_dimension_numbers<[1], [0], [0], [1], [0, 0, 1, 1], [], []>} : vector<8x8xf32>, vector<8x8xf32>, vector<8x8xf32> -> vector<8x8xf32>
    %40 = arith.addf %38, %39 : vector<8x8xf32>
    %c0_25 = arith.constant 0 : index
    %c0_26 = arith.constant 0 : index
    %c0_27 = arith.constant 0 : index
    %41 = vector.load %arg12[%c0_25, %c0_26, %c0_27] : memref<4x8x8xf32, #tpu.memory_space<vmem>>, vector<1x8x8xf32>
    %42 = vector.shape_cast %41 : vector<1x8x8xf32> to vector<8x8xf32>
    %43 = vector.shape_cast %40 : vector<8x8xf32> to vector<1x8x8xf32>
    tpu.vector_store %arg12[%c0_25, %c0_26, %c0_27], %43 {strides = array<i32>} : memref<4x8x8xf32, #tpu.memory_space<vmem>>, vector<1x8x8xf32>,
    %c0_28 = arith.constant 0 : index
    %c0_29 = arith.constant 0 : index
    %c0_30 = arith.constant 0 : index
    %44 = vector.load %arg10[%c0_28, %c0_29, %c0_30] : memref<4x8x1xf32, #tpu.memory_space<vmem>>, vector<1x8x1xf32>
    %45 = vector.shape_cast %44 : vector<1x8x1xf32> to vector<8x1xf32>
    %46 = vector.shape_cast %20 : vector<8x1xf32> to vector<1x8x1xf32>
    tpu.vector_store %arg10[%c0_28, %c0_29, %c0_30], %46 {strides = array<i32>} : memref<4x8x1xf32, #tpu.memory_space<vmem>>, vector<1x8x1xf32>,
    %47 = vector.extract_strided_slice %10 {offsets = [0, 8], sizes = [8, 8], strides = [1, 1]} : vector<8x32xf32> to vector<8x8xf32>
    %48 = vector.extract_strided_slice %6 {offsets = [0, 8], sizes = [8, 8], strides = [1, 1]} : vector<8x32xf32> to vector<8x8xf32>
    %cst_31 = arith.constant dense<0.000000e+00> : vector<8x8xf32>
    %49 = tpu.matmul %47, %48, %cst_31 {dimension_numbers = #tpu.dot_dimension_numbers<[1], [1], [0], [0], [0, 0, 1, 0], [], []>} : vector<8x8xf32>, vector<8x8xf32>, vector<8x8xf32> -> vector<8x8xf32>
    %50 = vector.broadcast %8 : vector<1x8xf32> to vector<8x8xf32>
    %51 = arith.addf %49, %50 : vector<8x8xf32>
    %c1 = arith.constant 1 : index
    %c0_32 = arith.constant 0 : index
    %c0_33 = arith.constant 0 : index
    %52 = vector.load %arg10[%c1, %c0_32, %c0_33] : memref<4x8x1xf32, #tpu.memory_space<vmem>>, vector<1x8x1xf32>
    %53 = vector.shape_cast %52 : vector<1x8x1xf32> to vector<8x1xf32>
    %cst_34 = arith.constant dense<0xFF800000> : vector<8xf32>
    %54 = vector.multi_reduction <maximumf>, %51, %cst_34 [1] : vector<8x8xf32> to vector<8xf32>
    %55 = vector.shape_cast %54 : vector<8xf32> to vector<8x1xf32>
    %56 = arith.maximumf %53, %55 : vector<8x1xf32>
    %57 = arith.subf %53, %56 : vector<8x1xf32>
    %58 = math.exp %57 : vector<8x1xf32>
    %59 = vector.broadcast %56 : vector<8x1xf32> to vector<8x8xf32>
    %60 = arith.subf %51, %59 : vector<8x8xf32>
    %61 = math.exp %60 : vector<8x8xf32>
    %c1_35 = arith.constant 1 : index
    %c0_36 = arith.constant 0 : index
    %c0_37 = arith.constant 0 : index
    %62 = vector.load %arg11[%c1_35, %c0_36, %c0_37] : memref<4x8x1xf32, #tpu.memory_space<vmem>>, vector<1x8x1xf32>
    %63 = vector.shape_cast %62 : vector<1x8x1xf32> to vector<8x1xf32>
    %64 = arith.mulf %58, %63 : vector<8x1xf32>
    %cst_38 = arith.constant dense<0.000000e+00> : vector<8xf32>
    %65 = vector.multi_reduction <add>, %61, %cst_38 [1] : vector<8x8xf32> to vector<8xf32>
    %66 = vector.shape_cast %65 : vector<8xf32> to vector<8x1xf32>
    %67 = arith.addf %64, %66 : vector<8x1xf32>
    %c1_39 = arith.constant 1 : index
    %c0_40 = arith.constant 0 : index
    %c0_41 = arith.constant 0 : index
    %68 = vector.load %arg11[%c1_39, %c0_40, %c0_41] : memref<4x8x1xf32, #tpu.memory_space<vmem>>, vector<1x8x1xf32>
    %69 = vector.shape_cast %68 : vector<1x8x1xf32> to vector<8x1xf32>
    %70 = vector.shape_cast %67 : vector<8x1xf32> to vector<1x8x1xf32>
    tpu.vector_store %arg11[%c1_39, %c0_40, %c0_41], %70 {strides = array<i32>} : memref<4x8x1xf32, #tpu.memory_space<vmem>>, vector<1x8x1xf32>,
    %c1_42 = arith.constant 1 : index
    %c0_43 = arith.constant 0 : index
    %c0_44 = arith.constant 0 : index
    %71 = vector.load %arg12[%c1_42, %c0_43, %c0_44] : memref<4x8x8xf32, #tpu.memory_space<vmem>>, vector<1x8x8xf32>
    %72 = vector.shape_cast %71 : vector<1x8x8xf32> to vector<8x8xf32>
    %73 = vector.broadcast %58 : vector<8x1xf32> to vector<8x8xf32>
    %74 = arith.mulf %73, %72 : vector<8x8xf32>
    %cst_45 = arith.constant dense<0.000000e+00> : vector<8x8xf32>
    %75 = tpu.matmul %61, %48, %cst_45 {dimension_numbers = #tpu.dot_dimension_numbers<[1], [0], [0], [1], [0, 0, 1, 1], [], []>} : vector<8x8xf32>, vector<8x8xf32>, vector<8x8xf32> -> vector<8x8xf32>
    %76 = arith.addf %74, %75 : vector<8x8xf32>
    %c1_46 = arith.constant 1 : index
    %c0_47 = arith.constant 0 : index
    %c0_48 = arith.constant 0 : index
    %77 = vector.load %arg12[%c1_46, %c0_47, %c0_48] : memref<4x8x8xf32, #tpu.memory_space<vmem>>, vector<1x8x8xf32>
    %78 = vector.shape_cast %77 : vector<1x8x8xf32> to vector<8x8xf32>
    %79 = vector.shape_cast %76 : vector<8x8xf32> to vector<1x8x8xf32>
    tpu.vector_store %arg12[%c1_46, %c0_47, %c0_48], %79 {strides = array<i32>} : memref<4x8x8xf32, #tpu.memory_space<vmem>>, vector<1x8x8xf32>,
    %c1_49 = arith.constant 1 : index
    %c0_50 = arith.constant 0 : index
    %c0_51 = arith.constant 0 : index
    %80 = vector.load %arg10[%c1_49, %c0_50, %c0_51] : memref<4x8x1xf32, #tpu.memory_space<vmem>>, vector<1x8x1xf32>
    %81 = vector.shape_cast %80 : vector<1x8x1xf32> to vector<8x1xf32>
    %82 = vector.shape_cast %56 : vector<8x1xf32> to vector<1x8x1xf32>
    tpu.vector_store %arg10[%c1_49, %c0_50, %c0_51], %82 {strides = array<i32>} : memref<4x8x1xf32, #tpu.memory_space<vmem>>, vector<1x8x1xf32>,
    %83 = vector.extract_strided_slice %10 {offsets = [0, 16], sizes = [8, 8], strides = [1, 1]} : vector<8x32xf32> to vector<8x8xf32>
    %84 = vector.extract_strided_slice %6 {offsets = [0, 16], sizes = [8, 8], strides = [1, 1]} : vector<8x32xf32> to vector<8x8xf32>
    %cst_52 = arith.constant dense<0.000000e+00> : vector<8x8xf32>
    %85 = tpu.matmul %83, %84, %cst_52 {dimension_numbers = #tpu.dot_dimension_numbers<[1], [1], [0], [0], [0, 0, 1, 0], [], []>} : vector<8x8xf32>, vector<8x8xf32>, vector<8x8xf32> -> vector<8x8xf32>
    %86 = vector.broadcast %8 : vector<1x8xf32> to vector<8x8xf32>
    %87 = arith.addf %85, %86 : vector<8x8xf32>
    %c2 = arith.constant 2 : index
    %c0_53 = arith.constant 0 : index
    %c0_54 = arith.constant 0 : index
    %88 = vector.load %arg10[%c2, %c0_53, %c0_54] : memref<4x8x1xf32, #tpu.memory_space<vmem>>, vector<1x8x1xf32>
    %89 = vector.shape_cast %88 : vector<1x8x1xf32> to vector<8x1xf32>
    %cst_55 = arith.constant dense<0xFF800000> : vector<8xf32>
    %90 = vector.multi_reduction <maximumf>, %87, %cst_55 [1] : vector<8x8xf32> to vector<8xf32>
    %91 = vector.shape_cast %90 : vector<8xf32> to vector<8x1xf32>
    %92 = arith.maximumf %89, %91 : vector<8x1xf32>
    %93 = arith.subf %89, %92 : vector<8x1xf32>
    %94 = math.exp %93 : vector<8x1xf32>
    %95 = vector.broadcast %92 : vector<8x1xf32> to vector<8x8xf32>
    %96 = arith.subf %87, %95 : vector<8x8xf32>
    %97 = math.exp %96 : vector<8x8xf32>
    %c2_56 = arith.constant 2 : index
    %c0_57 = arith.constant 0 : index
    %c0_58 = arith.constant 0 : index
    %98 = vector.load %arg11[%c2_56, %c0_57, %c0_58] : memref<4x8x1xf32, #tpu.memory_space<vmem>>, vector<1x8x1xf32>
    %99 = vector.shape_cast %98 : vector<1x8x1xf32> to vector<8x1xf32>
    %100 = arith.mulf %94, %99 : vector<8x1xf32>
    %cst_59 = arith.constant dense<0.000000e+00> : vector<8xf32>
    %101 = vector.multi_reduction <add>, %97, %cst_59 [1] : vector<8x8xf32> to vector<8xf32>
    %102 = vector.shape_cast %101 : vector<8xf32> to vector<8x1xf32>
    %103 = arith.addf %100, %102 : vector<8x1xf32>
    %c2_60 = arith.constant 2 : index
    %c0_61 = arith.constant 0 : index
    %c0_62 = arith.constant 0 : index
    %104 = vector.load %arg11[%c2_60, %c0_61, %c0_62] : memref<4x8x1xf32, #tpu.memory_space<vmem>>, vector<1x8x1xf32>
    %105 = vector.shape_cast %104 : vector<1x8x1xf32> to vector<8x1xf32>
    %106 = vector.shape_cast %103 : vector<8x1xf32> to vector<1x8x1xf32>
    tpu.vector_store %arg11[%c2_60, %c0_61, %c0_62], %106 {strides = array<i32>} : memref<4x8x1xf32, #tpu.memory_space<vmem>>, vector<1x8x1xf32>,
    %c2_63 = arith.constant 2 : index
    %c0_64 = arith.constant 0 : index
    %c0_65 = arith.constant 0 : index
    %107 = vector.load %arg12[%c2_63, %c0_64, %c0_65] : memref<4x8x8xf32, #tpu.memory_space<vmem>>, vector<1x8x8xf32>
    %108 = vector.shape_cast %107 : vector<1x8x8xf32> to vector<8x8xf32>
    %109 = vector.broadcast %94 : vector<8x1xf32> to vector<8x8xf32>
    %110 = arith.mulf %109, %108 : vector<8x8xf32>
    %cst_66 = arith.constant dense<0.000000e+00> : vector<8x8xf32>
    %111 = tpu.matmul %97, %84, %cst_66 {dimension_numbers = #tpu.dot_dimension_numbers<[1], [0], [0], [1], [0, 0, 1, 1], [], []>} : vector<8x8xf32>, vector<8x8xf32>, vector<8x8xf32> -> vector<8x8xf32>
    %112 = arith.addf %110, %111 : vector<8x8xf32>
    %c2_67 = arith.constant 2 : index
    %c0_68 = arith.constant 0 : index
    %c0_69 = arith.constant 0 : index
    %113 = vector.load %arg12[%c2_67, %c0_68, %c0_69] : memref<4x8x8xf32, #tpu.memory_space<vmem>>, vector<1x8x8xf32>
    %114 = vector.shape_cast %113 : vector<1x8x8xf32> to vector<8x8xf32>
    %115 = vector.shape_cast %112 : vector<8x8xf32> to vector<1x8x8xf32>
    tpu.vector_store %arg12[%c2_67, %c0_68, %c0_69], %115 {strides = array<i32>} : memref<4x8x8xf32, #tpu.memory_space<vmem>>, vector<1x8x8xf32>,
    %c2_70 = arith.constant 2 : index
    %c0_71 = arith.constant 0 : index
    %c0_72 = arith.constant 0 : index
    %116 = vector.load %arg10[%c2_70, %c0_71, %c0_72] : memref<4x8x1xf32, #tpu.memory_space<vmem>>, vector<1x8x1xf32>
    %117 = vector.shape_cast %116 : vector<1x8x1xf32> to vector<8x1xf32>
    %118 = vector.shape_cast %92 : vector<8x1xf32> to vector<1x8x1xf32>
    tpu.vector_store %arg10[%c2_70, %c0_71, %c0_72], %118 {strides = array<i32>} : memref<4x8x1xf32, #tpu.memory_space<vmem>>, vector<1x8x1xf32>,
    %119 = vector.extract_strided_slice %10 {offsets = [0, 24], sizes = [8, 8], strides = [1, 1]} : vector<8x32xf32> to vector<8x8xf32>
    %120 = vector.extract_strided_slice %6 {offsets = [0, 24], sizes = [8, 8], strides = [1, 1]} : vector<8x32xf32> to vector<8x8xf32>
    %cst_73 = arith.constant dense<0.000000e+00> : vector<8x8xf32>
    %121 = tpu.matmul %119, %120, %cst_73 {dimension_numbers = #tpu.dot_dimension_numbers<[1], [1], [0], [0], [0, 0, 1, 0], [], []>} : vector<8x8xf32>, vector<8x8xf32>, vector<8x8xf32> -> vector<8x8xf32>
    %122 = vector.broadcast %8 : vector<1x8xf32> to vector<8x8xf32>
    %123 = arith.addf %121, %122 : vector<8x8xf32>
    %c3 = arith.constant 3 : index
    %c0_74 = arith.constant 0 : index
    %c0_75 = arith.constant 0 : index
    %124 = vector.load %arg10[%c3, %c0_74, %c0_75] : memref<4x8x1xf32, #tpu.memory_space<vmem>>, vector<1x8x1xf32>
    %125 = vector.shape_cast %124 : vector<1x8x1xf32> to vector<8x1xf32>
    %cst_76 = arith.constant dense<0xFF800000> : vector<8xf32>
    %126 = vector.multi_reduction <maximumf>, %123, %cst_76 [1] : vector<8x8xf32> to vector<8xf32>
    %127 = vector.shape_cast %126 : vector<8xf32> to vector<8x1xf32>
    %128 = arith.maximumf %125, %127 : vector<8x1xf32>
    %129 = arith.subf %125, %128 : vector<8x1xf32>
    %130 = math.exp %129 : vector<8x1xf32>
    %131 = vector.broadcast %128 : vector<8x1xf32> to vector<8x8xf32>
    %132 = arith.subf %123, %131 : vector<8x8xf32>
    %133 = math.exp %132 : vector<8x8xf32>
    %c3_77 = arith.constant 3 : index
    %c0_78 = arith.constant 0 : index
    %c0_79 = arith.constant 0 : index
    %134 = vector.load %arg11[%c3_77, %c0_78, %c0_79] : memref<4x8x1xf32, #tpu.memory_space<vmem>>, vector<1x8x1xf32>
    %135 = vector.shape_cast %134 : vector<1x8x1xf32> to vector<8x1xf32>
    %136 = arith.mulf %130, %135 : vector<8x1xf32>
    %cst_80 = arith.constant dense<0.000000e+00> : vector<8xf32>
    %137 = vector.multi_reduction <add>, %133, %cst_80 [1] : vector<8x8xf32> to vector<8xf32>
    %138 = vector.shape_cast %137 : vector<8xf32> to vector<8x1xf32>
    %139 = arith.addf %136, %138 : vector<8x1xf32>
    %c3_81 = arith.constant 3 : index
    %c0_82 = arith.constant 0 : index
    %c0_83 = arith.constant 0 : index
    %140 = vector.load %arg11[%c3_81, %c0_82, %c0_83] : memref<4x8x1xf32, #tpu.memory_space<vmem>>, vector<1x8x1xf32>
    %141 = vector.shape_cast %140 : vector<1x8x1xf32> to vector<8x1xf32>
    %142 = vector.shape_cast %139 : vector<8x1xf32> to vector<1x8x1xf32>
    tpu.vector_store %arg11[%c3_81, %c0_82, %c0_83], %142 {strides = array<i32>} : memref<4x8x1xf32, #tpu.memory_space<vmem>>, vector<1x8x1xf32>,
    %c3_84 = arith.constant 3 : index
    %c0_85 = arith.constant 0 : index
    %c0_86 = arith.constant 0 : index
    %143 = vector.load %arg12[%c3_84, %c0_85, %c0_86] : memref<4x8x8xf32, #tpu.memory_space<vmem>>, vector<1x8x8xf32>
    %144 = vector.shape_cast %143 : vector<1x8x8xf32> to vector<8x8xf32>
    %145 = vector.broadcast %130 : vector<8x1xf32> to vector<8x8xf32>
    %146 = arith.mulf %145, %144 : vector<8x8xf32>
    %cst_87 = arith.constant dense<0.000000e+00> : vector<8x8xf32>
    %147 = tpu.matmul %133, %120, %cst_87 {dimension_numbers = #tpu.dot_dimension_numbers<[1], [0], [0], [1], [0, 0, 1, 1], [], []>} : vector<8x8xf32>, vector<8x8xf32>, vector<8x8xf32> -> vector<8x8xf32>
    %148 = arith.addf %146, %147 : vector<8x8xf32>
    %c3_88 = arith.constant 3 : index
    %c0_89 = arith.constant 0 : index
    %c0_90 = arith.constant 0 : index
    %149 = vector.load %arg12[%c3_88, %c0_89, %c0_90] : memref<4x8x8xf32, #tpu.memory_space<vmem>>, vector<1x8x8xf32>
    %150 = vector.shape_cast %149 : vector<1x8x8xf32> to vector<8x8xf32>
    %151 = vector.shape_cast %148 : vector<8x8xf32> to vector<1x8x8xf32>
    tpu.vector_store %arg12[%c3_88, %c0_89, %c0_90], %151 {strides = array<i32>} : memref<4x8x8xf32, #tpu.memory_space<vmem>>, vector<1x8x8xf32>,
    %c3_91 = arith.constant 3 : index
    %c0_92 = arith.constant 0 : index
    %c0_93 = arith.constant 0 : index
    %152 = vector.load %arg10[%c3_91, %c0_92, %c0_93] : memref<4x8x1xf32, #tpu.memory_space<vmem>>, vector<1x8x1xf32>
    %153 = vector.shape_cast %152 : vector<1x8x1xf32> to vector<8x1xf32>
    %154 = vector.shape_cast %128 : vector<8x1xf32> to vector<1x8x1xf32>
    tpu.vector_store %arg10[%c3_91, %c0_92, %c0_93], %154 {strides = array<i32>} : memref<4x8x1xf32, #tpu.memory_space<vmem>>, vector<1x8x1xf32>,
    %c0_i32_94 = arith.constant 0 : i32
    %155 = arith.cmpi eq, %arg2, %c0_i32_94 : i32
    %156 = arith.extui %155 : i1 to i32
    %c0_i32_95 = arith.constant 0 : i32
    %157 = arith.cmpi ne, %156, %c0_i32_95 : i32
    scf.if %157 {
      %c0_96 = arith.constant 0 : index
      %c0_97 = arith.constant 0 : index
      %158 = vector.load %arg6[%c0_96, %c0_97] : memref<32x32xf32, #tpu.memory_space<vmem>>, vector<32x32xf32>
      %cst_98 = arith.constant dense<0.000000e+00> : vector<8x32xf32>
      %159 = tpu.matmul %4, %158, %cst_98 {dimension_numbers = #tpu.dot_dimension_numbers<[1], [0], [0], [1], [0, 0, 1, 1], [], []>} : vector<8x32xf32>, vector<32x32xf32>, vector<8x32xf32> -> vector<8x32xf32>
      %c0_99 = arith.constant 0 : index
      %c0_100 = arith.constant 0 : index
      %c0_101 = arith.constant 0 : index
      %160 = vector.load %arg12[%c0_99, %c0_100, %c0_101] : memref<4x8x8xf32, #tpu.memory_space<vmem>>, vector<1x8x8xf32>
      %161 = vector.shape_cast %160 : vector<1x8x8xf32> to vector<8x8xf32>
      %c0_102 = arith.constant 0 : index
      %c0_103 = arith.constant 0 : index
      %c0_104 = arith.constant 0 : index
      %162 = vector.load %arg11[%c0_102, %c0_103, %c0_104] : memref<4x8x1xf32, #tpu.memory_space<vmem>>, vector<1x8x1xf32>
      %163 = vector.shape_cast %162 : vector<1x8x1xf32> to vector<8x1xf32>
      %164 = tpu.reciprocal %163 {approx = true} : vector<8x1xf32> -> vector<8x1xf32>
      %165 = vector.broadcast %164 : vector<8x1xf32> to vector<8x8xf32>
      %166 = arith.mulf %161, %165 : vector<8x8xf32>
      %c0_105 = arith.constant 0 : index
      %c0_106 = arith.constant 0 : index
      %167 = vector.load %arg7[%c0_105, %c0_106] : memref<32x32xf32, #tpu.memory_space<vmem>>, vector<8x32xf32>
      %cst_107 = arith.constant dense<0.000000e+00> : vector<8x32xf32>
      %168 = tpu.matmul %166, %167, %cst_107 {dimension_numbers = #tpu.dot_dimension_numbers<[1], [0], [0], [1], [0, 0, 1, 1], [], []>} : vector<8x8xf32>, vector<8x32xf32>, vector<8x32xf32> -> vector<8x32xf32>
      %169 = arith.addf %159, %168 : vector<8x32xf32>
      %c1_108 = arith.constant 1 : index
      %c0_109 = arith.constant 0 : index
      %c0_110 = arith.constant 0 : index
      %170 = vector.load %arg12[%c1_108, %c0_109, %c0_110] : memref<4x8x8xf32, #tpu.memory_space<vmem>>, vector<1x8x8xf32>
      %171 = vector.shape_cast %170 : vector<1x8x8xf32> to vector<8x8xf32>
      %c1_111 = arith.constant 1 : index
      %c0_112 = arith.constant 0 : index
      %c0_113 = arith.constant 0 : index
      %172 = vector.load %arg11[%c1_111, %c0_112, %c0_113] : memref<4x8x1xf32, #tpu.memory_space<vmem>>, vector<1x8x1xf32>
      %173 = vector.shape_cast %172 : vector<1x8x1xf32> to vector<8x1xf32>
      %174 = tpu.reciprocal %173 {approx = true} : vector<8x1xf32> -> vector<8x1xf32>
      %175 = vector.broadcast %174 : vector<8x1xf32> to vector<8x8xf32>
      %176 = arith.mulf %171, %175 : vector<8x8xf32>
      %c8 = arith.constant 8 : index
      %c0_114 = arith.constant 0 : index
      %177 = vector.load %arg7[%c8, %c0_114] : memref<32x32xf32, #tpu.memory_space<vmem>>, vector<8x32xf32>
      %cst_115 = arith.constant dense<0.000000e+00> : vector<8x32xf32>
      %178 = tpu.matmul %176, %177, %cst_115 {dimension_numbers = #tpu.dot_dimension_numbers<[1], [0], [0], [1], [0, 0, 1, 1], [], []>} : vector<8x8xf32>, vector<8x32xf32>, vector<8x32xf32> -> vector<8x32xf32>
      %179 = arith.addf %169, %178 : vector<8x32xf32>
      %c2_116 = arith.constant 2 : index
      %c0_117 = arith.constant 0 : index
      %c0_118 = arith.constant 0 : index
      %180 = vector.load %arg12[%c2_116, %c0_117, %c0_118] : memref<4x8x8xf32, #tpu.memory_space<vmem>>, vector<1x8x8xf32>
      %181 = vector.shape_cast %180 : vector<1x8x8xf32> to vector<8x8xf32>
      %c2_119 = arith.constant 2 : index
      %c0_120 = arith.constant 0 : index
      %c0_121 = arith.constant 0 : index
      %182 = vector.load %arg11[%c2_119, %c0_120, %c0_121] : memref<4x8x1xf32, #tpu.memory_space<vmem>>, vector<1x8x1xf32>
      %183 = vector.shape_cast %182 : vector<1x8x1xf32> to vector<8x1xf32>
      %184 = tpu.reciprocal %183 {approx = true} : vector<8x1xf32> -> vector<8x1xf32>
      %185 = vector.broadcast %184 : vector<8x1xf32> to vector<8x8xf32>
      %186 = arith.mulf %181, %185 : vector<8x8xf32>
      %c16 = arith.constant 16 : index
      %c0_122 = arith.constant 0 : index
      %187 = vector.load %arg7[%c16, %c0_122] : memref<32x32xf32, #tpu.memory_space<vmem>>, vector<8x32xf32>
      %cst_123 = arith.constant dense<0.000000e+00> : vector<8x32xf32>
      %188 = tpu.matmul %186, %187, %cst_123 {dimension_numbers = #tpu.dot_dimension_numbers<[1], [0], [0], [1], [0, 0, 1, 1], [], []>} : vector<8x8xf32>, vector<8x32xf32>, vector<8x32xf32> -> vector<8x32xf32>
      %189 = arith.addf %179, %188 : vector<8x32xf32>
      %c3_124 = arith.constant 3 : index
      %c0_125 = arith.constant 0 : index
      %c0_126 = arith.constant 0 : index
      %190 = vector.load %arg12[%c3_124, %c0_125, %c0_126] : memref<4x8x8xf32, #tpu.memory_space<vmem>>, vector<1x8x8xf32>
      %191 = vector.shape_cast %190 : vector<1x8x8xf32> to vector<8x8xf32>
      %c3_127 = arith.constant 3 : index
      %c0_128 = arith.constant 0 : index
      %c0_129 = arith.constant 0 : index
      %192 = vector.load %arg11[%c3_127, %c0_128, %c0_129] : memref<4x8x1xf32, #tpu.memory_space<vmem>>, vector<1x8x1xf32>
      %193 = vector.shape_cast %192 : vector<1x8x1xf32> to vector<8x1xf32>
      %194 = tpu.reciprocal %193 {approx = true} : vector<8x1xf32> -> vector<8x1xf32>
      %195 = vector.broadcast %194 : vector<8x1xf32> to vector<8x8xf32>
      %196 = arith.mulf %191, %195 : vector<8x8xf32>
      %c24 = arith.constant 24 : index
      %c0_130 = arith.constant 0 : index
      %197 = vector.load %arg7[%c24, %c0_130] : memref<32x32xf32, #tpu.memory_space<vmem>>, vector<8x32xf32>
      %cst_131 = arith.constant dense<0.000000e+00> : vector<8x32xf32>
      %198 = tpu.matmul %196, %197, %cst_131 {dimension_numbers = #tpu.dot_dimension_numbers<[1], [0], [0], [1], [0, 0, 1, 1], [], []>} : vector<8x8xf32>, vector<8x32xf32>, vector<8x32xf32> -> vector<8x32xf32>
      %199 = arith.addf %189, %198 : vector<8x32xf32>
      %c0_132 = arith.constant 0 : index
      %c0_133 = arith.constant 0 : index
      %200 = vector.load %arg8[%c0_132, %c0_133] : memref<1x32xf32, #tpu.memory_space<vmem>>, vector<1x32xf32>
      %201 = vector.broadcast %200 : vector<1x32xf32> to vector<8x32xf32>
      %202 = arith.addf %199, %201 : vector<8x32xf32>
      %203 = arith.negf %202 : vector<8x32xf32>
      %204 = math.exp %203 : vector<8x32xf32>
      %cst_134 = arith.constant 1.000000e+00 : f32
      %205 = vector.broadcast %cst_134 : f32 to vector<8x32xf32>
      %206 = arith.addf %205, %204 : vector<8x32xf32>
      %207 = arith.divf %205, %206 : vector<8x32xf32>
      %208 = math.tanh %202 : vector<8x32xf32>
      %209 = arith.mulf %207, %208 : vector<8x32xf32>
      %c0_135 = arith.constant 0 : index
      %c0_136 = arith.constant 0 : index
      %c0_137 = arith.constant 0 : index
      %210 = vector.load %arg9[%c0_135, %c0_136, %c0_137] : memref<1x8x32xf32, #tpu.memory_space<vmem>>, vector<1x8x32xf32>
      %211 = vector.shape_cast %210 : vector<1x8x32xf32> to vector<8x32xf32>
      %212 = vector.shape_cast %209 : vector<8x32xf32> to vector<1x8x32xf32>
      tpu.vector_store %arg9[%c0_135, %c0_136, %c0_137], %212 {strides = array<i32>} : memref<1x8x32xf32, #tpu.memory_space<vmem>>, vector<1x8x32xf32>,
    } else {
    }
    return
  }
  func.func @transform_0(%arg0: i32, %arg1: i32, %arg2: i32) -> (i32, i32, i32) {
    %c0_i32 = arith.constant 0 : i32
    %c0_i32_0 = arith.constant 0 : i32
    return %arg0, %arg1, %c0_i32 : i32, i32, i32
  }
  func.func @transform_1(%arg0: i32, %arg1: i32, %arg2: i32) -> (i32, i32, i32) {
    %c0_i32 = arith.constant 0 : i32
    %c0_i32_0 = arith.constant 0 : i32
    return %arg0, %arg2, %c0_i32 : i32, i32, i32
  }
  func.func @transform_2(%arg0: i32, %arg1: i32, %arg2: i32) -> (i32, i32, i32) {
    %c0_i32 = arith.constant 0 : i32
    %c0_i32_0 = arith.constant 0 : i32
    return %arg0, %c0_i32, %arg2 : i32, i32, i32
  }
  func.func @transform_3(%arg0: i32, %arg1: i32, %arg2: i32) -> (i32, i32) {
    %c0_i32 = arith.constant 0 : i32
    %c0_i32_0 = arith.constant 0 : i32
    %c0_i32_1 = arith.constant 0 : i32
    return %c0_i32, %c0_i32_0 : i32, i32
  }
  func.func @transform_4(%arg0: i32, %arg1: i32, %arg2: i32) -> (i32, i32) {
    %c0_i32 = arith.constant 0 : i32
    %c0_i32_0 = arith.constant 0 : i32
    %c0_i32_1 = arith.constant 0 : i32
    return %c0_i32, %c0_i32_0 : i32, i32
  }
  func.func @transform_5(%arg0: i32, %arg1: i32, %arg2: i32) -> (i32, i32) {
    %c0_i32 = arith.constant 0 : i32
    %c0_i32_0 = arith.constant 0 : i32
    %c0_i32_1 = arith.constant 0 : i32
    return %c0_i32, %c0_i32_0 : i32, i32
  }
  func.func @transform_6(%arg0: i32, %arg1: i32, %arg2: i32) -> (i32, i32, i32) {
    %c0_i32 = arith.constant 0 : i32
    %c0_i32_0 = arith.constant 0 : i32
    return %arg0, %arg1, %c0_i32 : i32, i32, i32
  }
}

module attributes {stable_mosaic.version = 11 : i64} {
  func.func @_gated_attn_kernel(%arg0: i32, %arg1: i32, %arg2: i32, %arg3: memref<1x8x32xf32, #tpu.memory_space<vmem>>, %arg4: memref<1x8x32xf32, #tpu.memory_space<vmem>>, %arg5: memref<1x1x8xf32, #tpu.memory_space<vmem>>, %arg6: memref<32x32xf32, #tpu.memory_space<vmem>>, %arg7: memref<32x32xf32, #tpu.memory_space<vmem>>, %arg8: memref<1x32xf32, #tpu.memory_space<vmem>>, %arg9: memref<1x8x32xf32, #tpu.memory_space<vmem>>, %arg10: memref<4x8x1xf32, #tpu.memory_space<vmem>>, %arg11: memref<4x8x1xf32, #tpu.memory_space<vmem>>, %arg12: memref<4x8x8xf32, #tpu.memory_space<vmem>>) attributes {dimension_semantics = [#tpu.dimension_semantics<parallel>, #tpu.dimension_semantics<parallel>, #tpu.dimension_semantics<arbitrary>], iteration_bounds = array<i64: 2, 1, 1>, scalar_prefetch = 0 : i64, scratch_operands = 3 : i64, tpu.core_type = #tpu.core_type<tc>, window_params = [{transform_indices = @transform_0, window_bounds = array<i64: 1, 8, 32>}, {transform_indices = @transform_1, window_bounds = array<i64: 1, 8, 32>}, {transform_indices = @transform_2, window_bounds = array<i64: 1, 1, 8>}, {pipeline_mode = #tpu.pipeline_mode<synchronous>, transform_indices = @transform_3, window_bounds = array<i64: 32, 32>}, {pipeline_mode = #tpu.pipeline_mode<synchronous>, transform_indices = @transform_4, window_bounds = array<i64: 32, 32>}, {pipeline_mode = #tpu.pipeline_mode<synchronous>, transform_indices = @transform_5, window_bounds = array<i64: 1, 32>}, {transform_indices = @transform_6, window_bounds = array<i64: 1, 8, 32>}]} {
    %c0_i32 = arith.constant 0 : i32
    %0 = arith.cmpi eq, %arg2, %c0_i32 : i32
    %1 = arith.extui %0 : i1 to i32
    %c0_i32_0 = arith.constant 0 : i32
    %2 = arith.cmpi ne, %1, %c0_i32_0 : i32
    scf.if %2 {
      %cst_96 = arith.constant 0xFF800000 : f32
      %158 = vector.broadcast %cst_96 : f32 to vector<4x8x1xf32>
      %c0_97 = arith.constant 0 : index
      %c0_98 = arith.constant 0 : index
      %c0_99 = arith.constant 0 : index
      %159 = vector.load %arg10[%c0_97, %c0_98, %c0_99] : memref<4x8x1xf32, #tpu.memory_space<vmem>>, vector<4x8x1xf32>
      tpu.vector_store %arg10[%c0_97, %c0_98, %c0_99], %158 {strides = array<i32>} : memref<4x8x1xf32, #tpu.memory_space<vmem>>, vector<4x8x1xf32>,
      %cst_100 = arith.constant 0.000000e+00 : f32
      %160 = vector.broadcast %cst_100 : f32 to vector<4x8x1xf32>
      %c0_101 = arith.constant 0 : index
      %c0_102 = arith.constant 0 : index
      %c0_103 = arith.constant 0 : index
      %161 = vector.load %arg11[%c0_101, %c0_102, %c0_103] : memref<4x8x1xf32, #tpu.memory_space<vmem>>, vector<4x8x1xf32>
      tpu.vector_store %arg11[%c0_101, %c0_102, %c0_103], %160 {strides = array<i32>} : memref<4x8x1xf32, #tpu.memory_space<vmem>>, vector<4x8x1xf32>,
      %cst_104 = arith.constant 0.000000e+00 : f32
      %162 = vector.broadcast %cst_104 : f32 to vector<4x8x8xf32>
      %c0_105 = arith.constant 0 : index
      %c0_106 = arith.constant 0 : index
      %c0_107 = arith.constant 0 : index
      %163 = vector.load %arg12[%c0_105, %c0_106, %c0_107] : memref<4x8x8xf32, #tpu.memory_space<vmem>>, vector<4x8x8xf32>
      tpu.vector_store %arg12[%c0_105, %c0_106, %c0_107], %162 {strides = array<i32>} : memref<4x8x8xf32, #tpu.memory_space<vmem>>, vector<4x8x8xf32>,
    } else {
    }
    %c0 = arith.constant 0 : index
    %c0_1 = arith.constant 0 : index
    %c0_2 = arith.constant 0 : index
    %3 = vector.load %arg3[%c0, %c0_1, %c0_2] : memref<1x8x32xf32, #tpu.memory_space<vmem>>, vector<1x8x32xf32>
    %4 = vector.shape_cast %3 : vector<1x8x32xf32> to vector<8x32xf32>
    %c0_3 = arith.constant 0 : index
    %c0_4 = arith.constant 0 : index
    %c0_5 = arith.constant 0 : index
    %5 = vector.load %arg4[%c0_3, %c0_4, %c0_5] : memref<1x8x32xf32, #tpu.memory_space<vmem>>, vector<1x8x32xf32>
    %6 = vector.shape_cast %5 : vector<1x8x32xf32> to vector<8x32xf32>
    %c0_6 = arith.constant 0 : index
    %c0_7 = arith.constant 0 : index
    %c0_8 = arith.constant 0 : index
    %7 = vector.load %arg5[%c0_6, %c0_7, %c0_8] : memref<1x1x8xf32, #tpu.memory_space<vmem>>, vector<1x1x8xf32>
    %8 = vector.shape_cast %7 : vector<1x1x8xf32> to vector<1x8xf32>
    %cst = arith.constant 0.353553385 : f32
    %9 = vector.broadcast %cst : f32 to vector<8x32xf32>
    %10 = arith.mulf %4, %9 : vector<8x32xf32>
    %11 = vector.extract_strided_slice %10 {offsets = [0, 0], sizes = [8, 8], strides = [1, 1]} : vector<8x32xf32> to vector<8x8xf32>
    %12 = vector.extract_strided_slice %6 {offsets = [0, 0], sizes = [8, 8], strides = [1, 1]} : vector<8x32xf32> to vector<8x8xf32>
    %cst_9 = arith.constant dense<0.000000e+00> : vector<8x8xf32>
    %13 = tpu.matmul %11, %12, %cst_9 {dimension_numbers = #tpu.dot_dimension_numbers<[1], [1], [0], [0], [0, 0, 1, 0], [], []>} : vector<8x8xf32>, vector<8x8xf32>, vector<8x8xf32> -> vector<8x8xf32>
    %14 = vector.broadcast %8 : vector<1x8xf32> to vector<8x8xf32>
    %15 = arith.addf %13, %14 : vector<8x8xf32>
    %c0_10 = arith.constant 0 : index
    %c0_11 = arith.constant 0 : index
    %c0_12 = arith.constant 0 : index
    %16 = vector.load %arg10[%c0_10, %c0_11, %c0_12] : memref<4x8x1xf32, #tpu.memory_space<vmem>>, vector<1x8x1xf32>
    %17 = vector.shape_cast %16 : vector<1x8x1xf32> to vector<8x1xf32>
    %cst_13 = arith.constant dense<0xFF800000> : vector<8xf32>
    %18 = vector.multi_reduction <maximumf>, %15, %cst_13 [1] : vector<8x8xf32> to vector<8xf32>
    %19 = vector.shape_cast %18 : vector<8xf32> to vector<8x1xf32>
    %20 = arith.maximumf %17, %19 : vector<8x1xf32>
    %21 = arith.subf %17, %20 : vector<8x1xf32>
    %22 = math.exp %21 : vector<8x1xf32>
    %23 = vector.broadcast %20 : vector<8x1xf32> to vector<8x8xf32>
    %24 = arith.subf %15, %23 : vector<8x8xf32>
    %25 = math.exp %24 : vector<8x8xf32>
    %c0_14 = arith.constant 0 : index
    %c0_15 = arith.constant 0 : index
    %c0_16 = arith.constant 0 : index
    %26 = vector.load %arg11[%c0_14, %c0_15, %c0_16] : memref<4x8x1xf32, #tpu.memory_space<vmem>>, vector<1x8x1xf32>
    %27 = vector.shape_cast %26 : vector<1x8x1xf32> to vector<8x1xf32>
    %28 = arith.mulf %22, %27 : vector<8x1xf32>
    %cst_17 = arith.constant dense<0.000000e+00> : vector<8xf32>
    %29 = vector.multi_reduction <add>, %25, %cst_17 [1] : vector<8x8xf32> to vector<8xf32>
    %30 = vector.shape_cast %29 : vector<8xf32> to vector<8x1xf32>
    %31 = arith.addf %28, %30 : vector<8x1xf32>
    %c0_18 = arith.constant 0 : index
    %c0_19 = arith.constant 0 : index
    %c0_20 = arith.constant 0 : index
    %32 = vector.load %arg11[%c0_18, %c0_19, %c0_20] : memref<4x8x1xf32, #tpu.memory_space<vmem>>, vector<1x8x1xf32>
    %33 = vector.shape_cast %32 : vector<1x8x1xf32> to vector<8x1xf32>
    %34 = vector.shape_cast %31 : vector<8x1xf32> to vector<1x8x1xf32>
    tpu.vector_store %arg11[%c0_18, %c0_19, %c0_20], %34 {strides = array<i32>} : memref<4x8x1xf32, #tpu.memory_space<vmem>>, vector<1x8x1xf32>,
    %c0_21 = arith.constant 0 : index
    %c0_22 = arith.constant 0 : index
    %c0_23 = arith.constant 0 : index
    %35 = vector.load %arg12[%c0_21, %c0_22, %c0_23] : memref<4x8x8xf32, #tpu.memory_space<vmem>>, vector<1x8x8xf32>
    %36 = vector.shape_cast %35 : vector<1x8x8xf32> to vector<8x8xf32>
    %37 = vector.broadcast %22 : vector<8x1xf32> to vector<8x8xf32>
    %38 = arith.mulf %37, %36 : vector<8x8xf32>
    %cst_24 = arith.constant dense<0.000000e+00> : vector<8x8xf32>
    %39 = tpu.matmul %25, %12, %cst_24 {dimension_numbers = #tpu.dot_dimension_numbers<[1], [0], [0], [1], [0, 0, 1, 1], [], []>} : vector<8x8xf32>, vector<8x8xf32>, vector<8x8xf32> -> vector<8x8xf32>
    %40 = arith.addf %38, %39 : vector<8x8xf32>
    %c0_25 = arith.constant 0 : index
    %c0_26 = arith.constant 0 : index
    %c0_27 = arith.constant 0 : index
    %41 = vector.load %arg12[%c0_25, %c0_26, %c0_27] : memref<4x8x8xf32, #tpu.memory_space<vmem>>, vector<1x8x8xf32>
    %42 = vector.shape_cast %41 : vector<1x8x8xf32> to vector<8x8xf32>
    %43 = vector.shape_cast %40 : vector<8x8xf32> to vector<1x8x8xf32>
    tpu.vector_store %arg12[%c0_25, %c0_26, %c0_27], %43 {strides = array<i32>} : memref<4x8x8xf32, #tpu.memory_space<vmem>>, vector<1x8x8xf32>,
    %c0_28 = arith.constant 0 : index
    %c0_29 = arith.constant 0 : index
    %c0_30 = arith.constant 0 : index
    %44 = vector.load %arg10[%c0_28, %c0_29, %c0_30] : memref<4x8x1xf32, #tpu.memory_space<vmem>>, vector<1x8x1xf32>
    %45 = vector.shape_cast %44 : vector<1x8x1xf32> to vector<8x1xf32>
    %46 = vector.shape_cast %20 : vector<8x1xf32> to vector<1x8x1xf32>
    tpu.vector_store %arg10[%c0_28, %c0_29, %c0_30], %46 {strides = array<i32>} : memref<4x8x1xf32, #tpu.memory_space<vmem>>, vector<1x8x1xf32>,
    %47 = vector.extract_strided_slice %10 {offsets = [0, 8], sizes = [8, 8], strides = [1, 1]} : vector<8x32xf32> to vector<8x8xf32>
    %48 = vector.extract_strided_slice %6 {offsets = [0, 8], sizes = [8, 8], strides = [1, 1]} : vector<8x32xf32> to vector<8x8xf32>
    %cst_31 = arith.constant dense<0.000000e+00> : vector<8x8xf32>
    %49 = tpu.matmul %47, %48, %cst_31 {dimension_numbers = #tpu.dot_dimension_numbers<[1], [1], [0], [0], [0, 0, 1, 0], [], []>} : vector<8x8xf32>, vector<8x8xf32>, vector<8x8xf32> -> vector<8x8xf32>
    %50 = vector.broadcast %8 : vector<1x8xf32> to vector<8x8xf32>
    %51 = arith.addf %49, %50 : vector<8x8xf32>
    %c1 = arith.constant 1 : index
    %c0_32 = arith.constant 0 : index
    %c0_33 = arith.constant 0 : index
    %52 = vector.load %arg10[%c1, %c0_32, %c0_33] : memref<4x8x1xf32, #tpu.memory_space<vmem>>, vector<1x8x1xf32>
    %53 = vector.shape_cast %52 : vector<1x8x1xf32> to vector<8x1xf32>
    %cst_34 = arith.constant dense<0xFF800000> : vector<8xf32>
    %54 = vector.multi_reduction <maximumf>, %51, %cst_34 [1] : vector<8x8xf32> to vector<8xf32>
    %55 = vector.shape_cast %54 : vector<8xf32> to vector<8x1xf32>
    %56 = arith.maximumf %53, %55 : vector<8x1xf32>
    %57 = arith.subf %53, %56 : vector<8x1xf32>
    %58 = math.exp %57 : vector<8x1xf32>
    %59 = vector.broadcast %56 : vector<8x1xf32> to vector<8x8xf32>
    %60 = arith.subf %51, %59 : vector<8x8xf32>
    %61 = math.exp %60 : vector<8x8xf32>
    %c1_35 = arith.constant 1 : index
    %c0_36 = arith.constant 0 : index
    %c0_37 = arith.constant 0 : index
    %62 = vector.load %arg11[%c1_35, %c0_36, %c0_37] : memref<4x8x1xf32, #tpu.memory_space<vmem>>, vector<1x8x1xf32>
    %63 = vector.shape_cast %62 : vector<1x8x1xf32> to vector<8x1xf32>
    %64 = arith.mulf %58, %63 : vector<8x1xf32>
    %cst_38 = arith.constant dense<0.000000e+00> : vector<8xf32>
    %65 = vector.multi_reduction <add>, %61, %cst_38 [1] : vector<8x8xf32> to vector<8xf32>
    %66 = vector.shape_cast %65 : vector<8xf32> to vector<8x1xf32>
    %67 = arith.addf %64, %66 : vector<8x1xf32>
    %c1_39 = arith.constant 1 : index
    %c0_40 = arith.constant 0 : index
    %c0_41 = arith.constant 0 : index
    %68 = vector.load %arg11[%c1_39, %c0_40, %c0_41] : memref<4x8x1xf32, #tpu.memory_space<vmem>>, vector<1x8x1xf32>
    %69 = vector.shape_cast %68 : vector<1x8x1xf32> to vector<8x1xf32>
    %70 = vector.shape_cast %67 : vector<8x1xf32> to vector<1x8x1xf32>
    tpu.vector_store %arg11[%c1_39, %c0_40, %c0_41], %70 {strides = array<i32>} : memref<4x8x1xf32, #tpu.memory_space<vmem>>, vector<1x8x1xf32>,
    %c1_42 = arith.constant 1 : index
    %c0_43 = arith.constant 0 : index
    %c0_44 = arith.constant 0 : index
    %71 = vector.load %arg12[%c1_42, %c0_43, %c0_44] : memref<4x8x8xf32, #tpu.memory_space<vmem>>, vector<1x8x8xf32>
    %72 = vector.shape_cast %71 : vector<1x8x8xf32> to vector<8x8xf32>
    %73 = vector.broadcast %58 : vector<8x1xf32> to vector<8x8xf32>
    %74 = arith.mulf %73, %72 : vector<8x8xf32>
    %cst_45 = arith.constant dense<0.000000e+00> : vector<8x8xf32>
    %75 = tpu.matmul %61, %48, %cst_45 {dimension_numbers = #tpu.dot_dimension_numbers<[1], [0], [0], [1], [0, 0, 1, 1], [], []>} : vector<8x8xf32>, vector<8x8xf32>, vector<8x8xf32> -> vector<8x8xf32>
    %76 = arith.addf %74, %75 : vector<8x8xf32>
    %c1_46 = arith.constant 1 : index
    %c0_47 = arith.constant 0 : index
    %c0_48 = arith.constant 0 : index
    %77 = vector.load %arg12[%c1_46, %c0_47, %c0_48] : memref<4x8x8xf32, #tpu.memory_space<vmem>>, vector<1x8x8xf32>
    %78 = vector.shape_cast %77 : vector<1x8x8xf32> to vector<8x8xf32>
    %79 = vector.shape_cast %76 : vector<8x8xf32> to vector<1x8x8xf32>
    tpu.vector_store %arg12[%c1_46, %c0_47, %c0_48], %79 {strides = array<i32>} : memref<4x8x8xf32, #tpu.memory_space<vmem>>, vector<1x8x8xf32>,
    %c1_49 = arith.constant 1 : index
    %c0_50 = arith.constant 0 : index
    %c0_51 = arith.constant 0 : index
    %80 = vector.load %arg10[%c1_49, %c0_50, %c0_51] : memref<4x8x1xf32, #tpu.memory_space<vmem>>, vector<1x8x1xf32>
    %81 = vector.shape_cast %80 : vector<1x8x1xf32> to vector<8x1xf32>
    %82 = vector.shape_cast %56 : vector<8x1xf32> to vector<1x8x1xf32>
    tpu.vector_store %arg10[%c1_49, %c0_50, %c0_51], %82 {strides = array<i32>} : memref<4x8x1xf32, #tpu.memory_space<vmem>>, vector<1x8x1xf32>,
    %83 = vector.extract_strided_slice %10 {offsets = [0, 16], sizes = [8, 8], strides = [1, 1]} : vector<8x32xf32> to vector<8x8xf32>
    %84 = vector.extract_strided_slice %6 {offsets = [0, 16], sizes = [8, 8], strides = [1, 1]} : vector<8x32xf32> to vector<8x8xf32>
    %cst_52 = arith.constant dense<0.000000e+00> : vector<8x8xf32>
    %85 = tpu.matmul %83, %84, %cst_52 {dimension_numbers = #tpu.dot_dimension_numbers<[1], [1], [0], [0], [0, 0, 1, 0], [], []>} : vector<8x8xf32>, vector<8x8xf32>, vector<8x8xf32> -> vector<8x8xf32>
    %86 = vector.broadcast %8 : vector<1x8xf32> to vector<8x8xf32>
    %87 = arith.addf %85, %86 : vector<8x8xf32>
    %c2 = arith.constant 2 : index
    %c0_53 = arith.constant 0 : index
    %c0_54 = arith.constant 0 : index
    %88 = vector.load %arg10[%c2, %c0_53, %c0_54] : memref<4x8x1xf32, #tpu.memory_space<vmem>>, vector<1x8x1xf32>
    %89 = vector.shape_cast %88 : vector<1x8x1xf32> to vector<8x1xf32>
    %cst_55 = arith.constant dense<0xFF800000> : vector<8xf32>
    %90 = vector.multi_reduction <maximumf>, %87, %cst_55 [1] : vector<8x8xf32> to vector<8xf32>
    %91 = vector.shape_cast %90 : vector<8xf32> to vector<8x1xf32>
    %92 = arith.maximumf %89, %91 : vector<8x1xf32>
    %93 = arith.subf %89, %92 : vector<8x1xf32>
    %94 = math.exp %93 : vector<8x1xf32>
    %95 = vector.broadcast %92 : vector<8x1xf32> to vector<8x8xf32>
    %96 = arith.subf %87, %95 : vector<8x8xf32>
    %97 = math.exp %96 : vector<8x8xf32>
    %c2_56 = arith.constant 2 : index
    %c0_57 = arith.constant 0 : index
    %c0_58 = arith.constant 0 : index
    %98 = vector.load %arg11[%c2_56, %c0_57, %c0_58] : memref<4x8x1xf32, #tpu.memory_space<vmem>>, vector<1x8x1xf32>
    %99 = vector.shape_cast %98 : vector<1x8x1xf32> to vector<8x1xf32>
    %100 = arith.mulf %94, %99 : vector<8x1xf32>
    %cst_59 = arith.constant dense<0.000000e+00> : vector<8xf32>
    %101 = vector.multi_reduction <add>, %97, %cst_59 [1] : vector<8x8xf32> to vector<8xf32>
    %102 = vector.shape_cast %101 : vector<8xf32> to vector<8x1xf32>
    %103 = arith.addf %100, %102 : vector<8x1xf32>
    %c2_60 = arith.constant 2 : index
    %c0_61 = arith.constant 0 : index
    %c0_62 = arith.constant 0 : index
    %104 = vector.load %arg11[%c2_60, %c0_61, %c0_62] : memref<4x8x1xf32, #tpu.memory_space<vmem>>, vector<1x8x1xf32>
    %105 = vector.shape_cast %104 : vector<1x8x1xf32> to vector<8x1xf32>
    %106 = vector.shape_cast %103 : vector<8x1xf32> to vector<1x8x1xf32>
    tpu.vector_store %arg11[%c2_60, %c0_61, %c0_62], %106 {strides = array<i32>} : memref<4x8x1xf32, #tpu.memory_space<vmem>>, vector<1x8x1xf32>,
    %c2_63 = arith.constant 2 : index
    %c0_64 = arith.constant 0 : index
    %c0_65 = arith.constant 0 : index
    %107 = vector.load %arg12[%c2_63, %c0_64, %c0_65] : memref<4x8x8xf32, #tpu.memory_space<vmem>>, vector<1x8x8xf32>
    %108 = vector.shape_cast %107 : vector<1x8x8xf32> to vector<8x8xf32>
    %109 = vector.broadcast %94 : vector<8x1xf32> to vector<8x8xf32>
    %110 = arith.mulf %109, %108 : vector<8x8xf32>
    %cst_66 = arith.constant dense<0.000000e+00> : vector<8x8xf32>
    %111 = tpu.matmul %97, %84, %cst_66 {dimension_numbers = #tpu.dot_dimension_numbers<[1], [0], [0], [1], [0, 0, 1, 1], [], []>} : vector<8x8xf32>, vector<8x8xf32>, vector<8x8xf32> -> vector<8x8xf32>
    %112 = arith.addf %110, %111 : vector<8x8xf32>
    %c2_67 = arith.constant 2 : index
    %c0_68 = arith.constant 0 : index
    %c0_69 = arith.constant 0 : index
    %113 = vector.load %arg12[%c2_67, %c0_68, %c0_69] : memref<4x8x8xf32, #tpu.memory_space<vmem>>, vector<1x8x8xf32>
    %114 = vector.shape_cast %113 : vector<1x8x8xf32> to vector<8x8xf32>
    %115 = vector.shape_cast %112 : vector<8x8xf32> to vector<1x8x8xf32>
    tpu.vector_store %arg12[%c2_67, %c0_68, %c0_69], %115 {strides = array<i32>} : memref<4x8x8xf32, #tpu.memory_space<vmem>>, vector<1x8x8xf32>,
    %c2_70 = arith.constant 2 : index
    %c0_71 = arith.constant 0 : index
    %c0_72 = arith.constant 0 : index
    %116 = vector.load %arg10[%c2_70, %c0_71, %c0_72] : memref<4x8x1xf32, #tpu.memory_space<vmem>>, vector<1x8x1xf32>
    %117 = vector.shape_cast %116 : vector<1x8x1xf32> to vector<8x1xf32>
    %118 = vector.shape_cast %92 : vector<8x1xf32> to vector<1x8x1xf32>
    tpu.vector_store %arg10[%c2_70, %c0_71, %c0_72], %118 {strides = array<i32>} : memref<4x8x1xf32, #tpu.memory_space<vmem>>, vector<1x8x1xf32>,
    %119 = vector.extract_strided_slice %10 {offsets = [0, 24], sizes = [8, 8], strides = [1, 1]} : vector<8x32xf32> to vector<8x8xf32>
    %120 = vector.extract_strided_slice %6 {offsets = [0, 24], sizes = [8, 8], strides = [1, 1]} : vector<8x32xf32> to vector<8x8xf32>
    %cst_73 = arith.constant dense<0.000000e+00> : vector<8x8xf32>
    %121 = tpu.matmul %119, %120, %cst_73 {dimension_numbers = #tpu.dot_dimension_numbers<[1], [1], [0], [0], [0, 0, 1, 0], [], []>} : vector<8x8xf32>, vector<8x8xf32>, vector<8x8xf32> -> vector<8x8xf32>
    %122 = vector.broadcast %8 : vector<1x8xf32> to vector<8x8xf32>
    %123 = arith.addf %121, %122 : vector<8x8xf32>
    %c3 = arith.constant 3 : index
    %c0_74 = arith.constant 0 : index
    %c0_75 = arith.constant 0 : index
    %124 = vector.load %arg10[%c3, %c0_74, %c0_75] : memref<4x8x1xf32, #tpu.memory_space<vmem>>, vector<1x8x1xf32>
    %125 = vector.shape_cast %124 : vector<1x8x1xf32> to vector<8x1xf32>
    %cst_76 = arith.constant dense<0xFF800000> : vector<8xf32>
    %126 = vector.multi_reduction <maximumf>, %123, %cst_76 [1] : vector<8x8xf32> to vector<8xf32>
    %127 = vector.shape_cast %126 : vector<8xf32> to vector<8x1xf32>
    %128 = arith.maximumf %125, %127 : vector<8x1xf32>
    %129 = arith.subf %125, %128 : vector<8x1xf32>
    %130 = math.exp %129 : vector<8x1xf32>
    %131 = vector.broadcast %128 : vector<8x1xf32> to vector<8x8xf32>
    %132 = arith.subf %123, %131 : vector<8x8xf32>
    %133 = math.exp %132 : vector<8x8xf32>
    %c3_77 = arith.constant 3 : index
    %c0_78 = arith.constant 0 : index
    %c0_79 = arith.constant 0 : index
    %134 = vector.load %arg11[%c3_77, %c0_78, %c0_79] : memref<4x8x1xf32, #tpu.memory_space<vmem>>, vector<1x8x1xf32>
    %135 = vector.shape_cast %134 : vector<1x8x1xf32> to vector<8x1xf32>
    %136 = arith.mulf %130, %135 : vector<8x1xf32>
    %cst_80 = arith.constant dense<0.000000e+00> : vector<8xf32>
    %137 = vector.multi_reduction <add>, %133, %cst_80 [1] : vector<8x8xf32> to vector<8xf32>
    %138 = vector.shape_cast %137 : vector<8xf32> to vector<8x1xf32>
    %139 = arith.addf %136, %138 : vector<8x1xf32>
    %c3_81 = arith.constant 3 : index
    %c0_82 = arith.constant 0 : index
    %c0_83 = arith.constant 0 : index
    %140 = vector.load %arg11[%c3_81, %c0_82, %c0_83] : memref<4x8x1xf32, #tpu.memory_space<vmem>>, vector<1x8x1xf32>
    %141 = vector.shape_cast %140 : vector<1x8x1xf32> to vector<8x1xf32>
    %142 = vector.shape_cast %139 : vector<8x1xf32> to vector<1x8x1xf32>
    tpu.vector_store %arg11[%c3_81, %c0_82, %c0_83], %142 {strides = array<i32>} : memref<4x8x1xf32, #tpu.memory_space<vmem>>, vector<1x8x1xf32>,
    %c3_84 = arith.constant 3 : index
    %c0_85 = arith.constant 0 : index
    %c0_86 = arith.constant 0 : index
    %143 = vector.load %arg12[%c3_84, %c0_85, %c0_86] : memref<4x8x8xf32, #tpu.memory_space<vmem>>, vector<1x8x8xf32>
    %144 = vector.shape_cast %143 : vector<1x8x8xf32> to vector<8x8xf32>
    %145 = vector.broadcast %130 : vector<8x1xf32> to vector<8x8xf32>
    %146 = arith.mulf %145, %144 : vector<8x8xf32>
    %cst_87 = arith.constant dense<0.000000e+00> : vector<8x8xf32>
    %147 = tpu.matmul %133, %120, %cst_87 {dimension_numbers = #tpu.dot_dimension_numbers<[1], [0], [0], [1], [0, 0, 1, 1], [], []>} : vector<8x8xf32>, vector<8x8xf32>, vector<8x8xf32> -> vector<8x8xf32>
    %148 = arith.addf %146, %147 : vector<8x8xf32>
    %c3_88 = arith.constant 3 : index
    %c0_89 = arith.constant 0 : index
    %c0_90 = arith.constant 0 : index
    %149 = vector.load %arg12[%c3_88, %c0_89, %c0_90] : memref<4x8x8xf32, #tpu.memory_space<vmem>>, vector<1x8x8xf32>
    %150 = vector.shape_cast %149 : vector<1x8x8xf32> to vector<8x8xf32>
    %151 = vector.shape_cast %148 : vector<8x8xf32> to vector<1x8x8xf32>
    tpu.vector_store %arg12[%c3_88, %c0_89, %c0_90], %151 {strides = array<i32>} : memref<4x8x8xf32, #tpu.memory_space<vmem>>, vector<1x8x8xf32>,
    %c3_91 = arith.constant 3 : index
    %c0_92 = arith.constant 0 : index
    %c0_93 = arith.constant 0 : index
    %152 = vector.load %arg10[%c3_91, %c0_92, %c0_93] : memref<4x8x1xf32, #tpu.memory_space<vmem>>, vector<1x8x1xf32>
    %153 = vector.shape_cast %152 : vector<1x8x1xf32> to vector<8x1xf32>
    %154 = vector.shape_cast %128 : vector<8x1xf32> to vector<1x8x1xf32>
    tpu.vector_store %arg10[%c3_91, %c0_92, %c0_93], %154 {strides = array<i32>} : memref<4x8x1xf32, #tpu.memory_space<vmem>>, vector<1x8x1xf32>,
    %c0_i32_94 = arith.constant 0 : i32
    %155 = arith.cmpi eq, %arg2, %c0_i32_94 : i32
    %156 = arith.extui %155 : i1 to i32
    %c0_i32_95 = arith.constant 0 : i32
    %157 = arith.cmpi ne, %156, %c0_i32_95 : i32
    scf.if %157 {
      %c0_96 = arith.constant 0 : index
      %c0_97 = arith.constant 0 : index
      %158 = vector.load %arg6[%c0_96, %c0_97] : memref<32x32xf32, #tpu.memory_space<vmem>>, vector<32x32xf32>
      %cst_98 = arith.constant dense<0.000000e+00> : vector<8x32xf32>
      %159 = tpu.matmul %4, %158, %cst_98 {dimension_numbers = #tpu.dot_dimension_numbers<[1], [0], [0], [1], [0, 0, 1, 1], [], []>} : vector<8x32xf32>, vector<32x32xf32>, vector<8x32xf32> -> vector<8x32xf32>
      %c0_99 = arith.constant 0 : index
      %c0_100 = arith.constant 0 : index
      %c0_101 = arith.constant 0 : index
      %160 = vector.load %arg12[%c0_99, %c0_100, %c0_101] : memref<4x8x8xf32, #tpu.memory_space<vmem>>, vector<1x8x8xf32>
      %161 = vector.shape_cast %160 : vector<1x8x8xf32> to vector<8x8xf32>
      %c0_102 = arith.constant 0 : index
      %c0_103 = arith.constant 0 : index
      %c0_104 = arith.constant 0 : index
      %162 = vector.load %arg11[%c0_102, %c0_103, %c0_104] : memref<4x8x1xf32, #tpu.memory_space<vmem>>, vector<1x8x1xf32>
      %163 = vector.shape_cast %162 : vector<1x8x1xf32> to vector<8x1xf32>
      %164 = tpu.reciprocal %163 {approx = true} : vector<8x1xf32> -> vector<8x1xf32>
      %165 = vector.broadcast %164 : vector<8x1xf32> to vector<8x8xf32>
      %166 = arith.mulf %161, %165 : vector<8x8xf32>
      %c0_105 = arith.constant 0 : index
      %c0_106 = arith.constant 0 : index
      %167 = vector.load %arg7[%c0_105, %c0_106] : memref<32x32xf32, #tpu.memory_space<vmem>>, vector<8x32xf32>
      %cst_107 = arith.constant dense<0.000000e+00> : vector<8x32xf32>
      %168 = tpu.matmul %166, %167, %cst_107 {dimension_numbers = #tpu.dot_dimension_numbers<[1], [0], [0], [1], [0, 0, 1, 1], [], []>} : vector<8x8xf32>, vector<8x32xf32>, vector<8x32xf32> -> vector<8x32xf32>
      %169 = arith.addf %159, %168 : vector<8x32xf32>
      %c1_108 = arith.constant 1 : index
      %c0_109 = arith.constant 0 : index
      %c0_110 = arith.constant 0 : index
      %170 = vector.load %arg12[%c1_108, %c0_109, %c0_110] : memref<4x8x8xf32, #tpu.memory_space<vmem>>, vector<1x8x8xf32>
      %171 = vector.shape_cast %170 : vector<1x8x8xf32> to vector<8x8xf32>
      %c1_111 = arith.constant 1 : index
      %c0_112 = arith.constant 0 : index
      %c0_113 = arith.constant 0 : index
      %172 = vector.load %arg11[%c1_111, %c0_112, %c0_113] : memref<4x8x1xf32, #tpu.memory_space<vmem>>, vector<1x8x1xf32>
      %173 = vector.shape_cast %172 : vector<1x8x1xf32> to vector<8x1xf32>
      %174 = tpu.reciprocal %173 {approx = true} : vector<8x1xf32> -> vector<8x1xf32>
      %175 = vector.broadcast %174 : vector<8x1xf32> to vector<8x8xf32>
      %176 = arith.mulf %171, %175 : vector<8x8xf32>
      %c8 = arith.constant 8 : index
      %c0_114 = arith.constant 0 : index
      %177 = vector.load %arg7[%c8, %c0_114] : memref<32x32xf32, #tpu.memory_space<vmem>>, vector<8x32xf32>
      %cst_115 = arith.constant dense<0.000000e+00> : vector<8x32xf32>
      %178 = tpu.matmul %176, %177, %cst_115 {dimension_numbers = #tpu.dot_dimension_numbers<[1], [0], [0], [1], [0, 0, 1, 1], [], []>} : vector<8x8xf32>, vector<8x32xf32>, vector<8x32xf32> -> vector<8x32xf32>
      %179 = arith.addf %169, %178 : vector<8x32xf32>
      %c2_116 = arith.constant 2 : index
      %c0_117 = arith.constant 0 : index
      %c0_118 = arith.constant 0 : index
      %180 = vector.load %arg12[%c2_116, %c0_117, %c0_118] : memref<4x8x8xf32, #tpu.memory_space<vmem>>, vector<1x8x8xf32>
      %181 = vector.shape_cast %180 : vector<1x8x8xf32> to vector<8x8xf32>
      %c2_119 = arith.constant 2 : index
      %c0_120 = arith.constant 0 : index
      %c0_121 = arith.constant 0 : index
      %182 = vector.load %arg11[%c2_119, %c0_120, %c0_121] : memref<4x8x1xf32, #tpu.memory_space<vmem>>, vector<1x8x1xf32>
      %183 = vector.shape_cast %182 : vector<1x8x1xf32> to vector<8x1xf32>
      %184 = tpu.reciprocal %183 {approx = true} : vector<8x1xf32> -> vector<8x1xf32>
      %185 = vector.broadcast %184 : vector<8x1xf32> to vector<8x8xf32>
      %186 = arith.mulf %181, %185 : vector<8x8xf32>
      %c16 = arith.constant 16 : index
      %c0_122 = arith.constant 0 : index
      %187 = vector.load %arg7[%c16, %c0_122] : memref<32x32xf32, #tpu.memory_space<vmem>>, vector<8x32xf32>
      %cst_123 = arith.constant dense<0.000000e+00> : vector<8x32xf32>
      %188 = tpu.matmul %186, %187, %cst_123 {dimension_numbers = #tpu.dot_dimension_numbers<[1], [0], [0], [1], [0, 0, 1, 1], [], []>} : vector<8x8xf32>, vector<8x32xf32>, vector<8x32xf32> -> vector<8x32xf32>
      %189 = arith.addf %179, %188 : vector<8x32xf32>
      %c3_124 = arith.constant 3 : index
      %c0_125 = arith.constant 0 : index
      %c0_126 = arith.constant 0 : index
      %190 = vector.load %arg12[%c3_124, %c0_125, %c0_126] : memref<4x8x8xf32, #tpu.memory_space<vmem>>, vector<1x8x8xf32>
      %191 = vector.shape_cast %190 : vector<1x8x8xf32> to vector<8x8xf32>
      %c3_127 = arith.constant 3 : index
      %c0_128 = arith.constant 0 : index
      %c0_129 = arith.constant 0 : index
      %192 = vector.load %arg11[%c3_127, %c0_128, %c0_129] : memref<4x8x1xf32, #tpu.memory_space<vmem>>, vector<1x8x1xf32>
      %193 = vector.shape_cast %192 : vector<1x8x1xf32> to vector<8x1xf32>
      %194 = tpu.reciprocal %193 {approx = true} : vector<8x1xf32> -> vector<8x1xf32>
      %195 = vector.broadcast %194 : vector<8x1xf32> to vector<8x8xf32>
      %196 = arith.mulf %191, %195 : vector<8x8xf32>
      %c24 = arith.constant 24 : index
      %c0_130 = arith.constant 0 : index
      %197 = vector.load %arg7[%c24, %c0_130] : memref<32x32xf32, #tpu.memory_space<vmem>>, vector<8x32xf32>
      %cst_131 = arith.constant dense<0.000000e+00> : vector<8x32xf32>
      %198 = tpu.matmul %196, %197, %cst_131 {dimension_numbers = #tpu.dot_dimension_numbers<[1], [0], [0], [1], [0, 0, 1, 1], [], []>} : vector<8x8xf32>, vector<8x32xf32>, vector<8x32xf32> -> vector<8x32xf32>
      %199 = arith.addf %189, %198 : vector<8x32xf32>
      %c0_132 = arith.constant 0 : index
      %c0_133 = arith.constant 0 : index
      %200 = vector.load %arg8[%c0_132, %c0_133] : memref<1x32xf32, #tpu.memory_space<vmem>>, vector<1x32xf32>
      %201 = vector.broadcast %200 : vector<1x32xf32> to vector<8x32xf32>
      %202 = arith.addf %199, %201 : vector<8x32xf32>
      %203 = arith.negf %202 : vector<8x32xf32>
      %204 = math.exp %203 : vector<8x32xf32>
      %cst_134 = arith.constant 1.000000e+00 : f32
      %205 = vector.broadcast %cst_134 : f32 to vector<8x32xf32>
      %206 = arith.addf %205, %204 : vector<8x32xf32>
      %207 = arith.divf %205, %206 : vector<8x32xf32>
      %208 = math.tanh %202 : vector<8x32xf32>
      %209 = arith.mulf %207, %208 : vector<8x32xf32>
      %c0_135 = arith.constant 0 : index
      %c0_136 = arith.constant 0 : index
      %c0_137 = arith.constant 0 : index
      %210 = vector.load %arg9[%c0_135, %c0_136, %c0_137] : memref<1x8x32xf32, #tpu.memory_space<vmem>>, vector<1x8x32xf32>
      %211 = vector.shape_cast %210 : vector<1x8x32xf32> to vector<8x32xf32>
      %212 = vector.shape_cast %209 : vector<8x32xf32> to vector<1x8x32xf32>
      tpu.vector_store %arg9[%c0_135, %c0_136, %c0_137], %212 {strides = array<i32>} : memref<1x8x32xf32, #tpu.memory_space<vmem>>, vector<1x8x32xf32>,
    } else {
    }
    return
  }
  func.func @transform_0(%arg0: i32, %arg1: i32, %arg2: i32) -> (i32, i32, i32) {
    %c0_i32 = arith.constant 0 : i32
    %c0_i32_0 = arith.constant 0 : i32
    return %arg0, %arg1, %c0_i32 : i32, i32, i32
  }
  func.func @transform_1(%arg0: i32, %arg1: i32, %arg2: i32) -> (i32, i32, i32) {
    %c0_i32 = arith.constant 0 : i32
    %c0_i32_0 = arith.constant 0 : i32
    return %arg0, %arg2, %c0_i32 : i32, i32, i32
  }
  func.func @transform_2(%arg0: i32, %arg1: i32, %arg2: i32) -> (i32, i32, i32) {
    %c0_i32 = arith.constant 0 : i32
    %c0_i32_0 = arith.constant 0 : i32
    return %arg0, %c0_i32, %arg2 : i32, i32, i32
  }
  func.func @transform_3(%arg0: i32, %arg1: i32, %arg2: i32) -> (i32, i32) {
    %c0_i32 = arith.constant 0 : i32
    %c0_i32_0 = arith.constant 0 : i32
    %c0_i32_1 = arith.constant 0 : i32
    return %c0_i32, %c0_i32_0 : i32, i32
  }
  func.func @transform_4(%arg0: i32, %arg1: i32, %arg2: i32) -> (i32, i32) {
    %c0_i32 = arith.constant 0 : i32
    %c0_i32_0 = arith.constant 0 : i32
    %c0_i32_1 = arith.constant 0 : i32
    return %c0_i32, %c0_i32_0 : i32, i32
  }
  func.func @transform_5(%arg0: i32, %arg1: i32, %arg2: i32) -> (i32, i32) {
    %c0_i32 = arith.constant 0 : i32
    %c0_i32_0 = arith.constant 0 : i32
    %c0_i32_1 = arith.constant 0 : i32
    return %c0_i32, %c0_i32_0 : i32, i32
  }
  func.func @transform_6(%arg0: i32, %arg1: i32, %arg2: i32) -> (i32, i32, i32) {
    %c0_i32 = arith.constant 0 : i32
    %c0_i32_0 = arith.constant 0 : i32
    return %arg0, %arg1, %c0_i32 : i32, i32, i32
  }
}

</mosaic_0001>

<llo_original>
// kernel: tpu_custom_call.1
$region0: #{tpu_custom_call.1}
  #allocation0 [shape = 'u32[]', space=smem, size = 0x4, offset = 0x4, fixed_abs, tag = 'smem constant byte address 0x4 - core index']
  #allocation1 [shape = 'u32[144,128]{1,0:T(1,128)}', space=vmem, size = 0x12000, scoped, tag = 'internal scratch']
  #allocation2 [shape = 'f32[4,8,1]{2,1,0:T(8,128)}', space=vmem, size = 0x4000, scoped, tag = 'scratch operand']
  #allocation3 [shape = 'f32[4,8,1]{2,1,0:T(8,128)}', space=vmem, size = 0x4000, scoped, tag = 'scratch operand']
  #allocation4 [shape = 'f32[4,8,8]{2,1,0:T(8,128)}', space=vmem, size = 0x4000, scoped, tag = 'scratch operand']
  %s0 = inlined_call_operand.hbm [shape: f32[2,8,32], index: 0, kind: input, shape index: {}]
  %s1 = inlined_call_operand.hbm [shape: f32[2,8,32], index: 1, kind: input, shape index: {}]
  %s2 = inlined_call_operand.vmem [shape: f32[2,1,8], index: 2, kind: input, shape index: {}]
  %s3 = inlined_call_operand.hbm [shape: f32[32,32], index: 3, kind: input, shape index: {}]
  %s4 = inlined_call_operand.hbm [shape: f32[32,32], index: 4, kind: input, shape index: {}]
  %s5 = inlined_call_operand.vmem [shape: f32[1,32], index: 5, kind: input, shape index: {}]
  %s6 = inlined_call_operand.hbm [shape: f32[2,8,32], index: 6, kind: output, shape index: {}]
  %s7 = sld [smem:[#allocation0]]
  $region81: #{tpu_custom_call.1} parent=0
    _
  %s9 = ssub.s32 1, %s7
  %s10 = scalar_select 0, %s9, %s7
  $region1: #{tpu_custom_call.1} parent=0
    #allocation5 [shape = 'u8[8192]{0}', space=vmem, size = 0x2000, scoped, tag = 'input window, operand 0']
    #allocation6 [shape = 's32[2]{0}', space=sflag, size = 0x8, scoped, tag = 'scoped memory for tpu_custom_call.1']
    #allocation7 [shape = 's32[2]{0}', space=sflag, size = 0x8, scoped, tag = 'scoped memory for tpu_custom_call.1']
    #allocation8 [shape = 'u8[8192]{0}', space=vmem, size = 0x2000, scoped, tag = 'input window, operand 1']
    #allocation9 [shape = 's32[2]{0}', space=sflag, size = 0x8, scoped, tag = 'scoped memory for tpu_custom_call.1']
    #allocation10 [shape = 'u8[16384]{0}', space=vmem, size = 0x4000, scoped, tag = 'input window, operand 3, single buffered']
    #allocation11 [shape = 'u8[16384]{0}', space=vmem, size = 0x4000, scoped, tag = 'input window, operand 4, single buffered']
    #allocation12 [shape = 's32[1]{0}', space=sflag, size = 0x4, scoped, tag = 'scoped memory for tpu_custom_call.1']
    #allocation13 [shape = 'u8[8192]{0}', space=vmem, size = 0x2000, scoped, tag = 'output window, operand 0']
    %11 = vsyncpa [#allocation6], 0
    %s12 = scalar_lea.sflag [#allocation6], 1
    %13 = vsyncpa %s12, 0
    %14 = vsyncpa [#allocation9], 0
    %s15 = scalar_lea.sflag [#allocation9], 1
    %16 = vsyncpa %s15, 0
    %17 = vsyncpa [#allocation12], 0
    %18 = vsyncpa [#allocation7], 0
    %s19 = scalar_lea.sflag [#allocation7], 1
    %20 = vsyncpa %s19, 0
    loop: start=0, step=1, limit=4
    $region2: #{tpu_custom_call.1} parent=1 // loop_pre_header
      _
    $region3: #{tpu_custom_call.1} parent=1 // loop_header
      %s22 = sphi 0, %s26
      %p23 = scmp.ge.s32.totalorder %s22, 4
      %s29 = sphi 0, %s48
      %s30 = sphi 0, %s44
      %s31 = sphi 0, %s40
      %s32 = sphi 0, %s29
      %s33 = sphi 0, %s30
      %s34 = sphi 0, %s31
      %s35 = sphi 0, %s32
      %s36 = sphi 0, %s33
      %s37 = sphi 0, %s34
      %s53 = sphi 0, %s55
      %s56 = sphi 0, %s53
      %s57 = sphi 0, %s56
      %s73 = sphi 0, %s57
      %s81 = sphi 0, %s83
      %s84 = sphi 0, %s81
      %s85 = sphi 0, %s84
      %s101 = sphi 0, %s85
      %s109 = sphi 0, %s111
      %s112 = sphi 0, %s109
      %s113 = sphi 0, %s112
      %s129 = sphi 0, %s113
      %s133 = sphi 0, %s133
      %s135 = sphi 0, %s133
      %s136 = sphi 0, %s135
      %s150 = sphi 0, %s136
      %s154 = sphi 0, %s154
      %s156 = sphi 0, %s154
      %s157 = sphi 0, %s156
      %s171 = sphi 0, %s157
      %s175 = sphi 0, %s175
      %s177 = sphi 0, %s175
      %s178 = sphi 0, %s177
      %s192 = sphi 0, %s178
      %s200 = sphi 0, %s202
      %s203 = sphi 0, %s200
      %s204 = sphi 0, %s203
      %s220 = sphi 0, %s204
    $region4: #{tpu_custom_call.1} parent=1 // loop_header_branch
      %25 = sbr.rel (%p23) target = $region8
    $region5: #{tpu_custom_call.1} parent=1 // loop_body
      %s27 = ssub.s32 %s22, 1
      %s28 = ssub.s32 %s22, 2
      %s38 = sadd.s32 1, %s31
      %p39 = scmp.ge.s32.totalorder %s38, 1
      %s40 = scalar_select %p39, 0, %s38
      %s41 = sadd.s32 1, %s30
      %s42 = scalar_select %p39, %s41, %s30
      %p43 = scmp.ge.s32.totalorder %s42, 1
      %s44 = scalar_select %p43, 0, %s42
      %s45 = sadd.s32 1, %s29
      %s46 = scalar_select %p43, %s45, %s29
      %p47 = scmp.ge.s32.totalorder %s46, 2
      %s48 = scalar_select %p47, 0, %s46
      %s49 = ssub.s32 %s29, %s48
      %s50 = ssub.s32 %s30, %s44
      %s51 = sor.u32 %s49, %s50
      %p52 = scmp.eq.s32.totalorder %s51, 0
      %s54 = sadd.s32 %s53, 1
      %s55 = scalar_select %p52, %s53, %s54
      %p58 = pneg %p52
      %p59 = scmp.eq.s32.totalorder %s22, 1
      %p60 = por %p58, %p59
      %p61 = scmp.ne.s32.totalorder %s53, %s56
      %p62 = scmp.eq.s32.totalorder %s22, 0
      %p63 = por %p61, %p62
      %p64 = scmp.ne.s32.totalorder %s53, %s56
      %p65 = scmp.eq.s32.totalorder %s27, 1
      %p66 = por %p64, %p65
      %p67 = scmp.ne.s32.totalorder %s56, %s57
      %p68 = scmp.eq.s32.totalorder %s27, 0
      %p69 = por %p67, %p68
      %p70 = scmp.ne.s32.totalorder %s56, %s57
      %p71 = scmp.eq.s32.totalorder %s28, 1
      %p72 = por %p70, %p71
      %p74 = scmp.ne.s32.totalorder %s57, %s73
      %p75 = scmp.eq.s32.totalorder %s28, 0
      %p76 = por %p74, %p75
      %s77 = ssub.s32 %s29, %s48
      %s78 = ssub.s32 %s31, %s40
      %s79 = sor.u32 %s77, %s78
      %p80 = scmp.eq.s32.totalorder %s79, 0
      %s82 = sadd.s32 %s81, 1
      %s83 = scalar_select %p80, %s81, %s82
      %p86 = pneg %p80
      %p87 = scmp.eq.s32.totalorder %s22, 1
      %p88 = por %p86, %p87
      %p89 = scmp.ne.s32.totalorder %s81, %s84
      %p90 = scmp.eq.s32.totalorder %s22, 0
      %p91 = por %p89, %p90
      %p92 = scmp.ne.s32.totalorder %s81, %s84
      %p93 = scmp.eq.s32.totalorder %s27, 1
      %p94 = por %p92, %p93
      %p95 = scmp.ne.s32.totalorder %s84, %s85
      %p96 = scmp.eq.s32.totalorder %s27, 0
      %p97 = por %p95, %p96
      %p98 = scmp.ne.s32.totalorder %s84, %s85
      %p99 = scmp.eq.s32.totalorder %s28, 1
      %p100 = por %p98, %p99
      %p102 = scmp.ne.s32.totalorder %s85, %s101
      %p103 = scmp.eq.s32.totalorder %s28, 0
      %p104 = por %p102, %p103
      %s105 = ssub.s32 %s29, %s48
      %s106 = ssub.s32 %s31, %s40
      %s107 = sor.u32 %s105, %s106
      %p108 = scmp.eq.s32.totalorder %s107, 0
      %s110 = sadd.s32 %s109, 1
      %s111 = scalar_select %p108, %s109, %s110
      %p114 = pneg %p108
      %p115 = scmp.eq.s32.totalorder %s22, 1
      %p116 = por %p114, %p115
      %p117 = scmp.ne.s32.totalorder %s109, %s112
      %p118 = scmp.eq.s32.totalorder %s22, 0
      %p119 = por %p117, %p118
      %p120 = scmp.ne.s32.totalorder %s109, %s112
      %p121 = scmp.eq.s32.totalorder %s27, 1
      %p122 = por %p120, %p121
      %p123 = scmp.ne.s32.totalorder %s112, %s113
      %p124 = scmp.eq.s32.totalorder %s27, 0
      %p125 = por %p123, %p124
      %p126 = scmp.ne.s32.totalorder %s112, %s113
      %p127 = scmp.eq.s32.totalorder %s28, 1
      %p128 = por %p126, %p127
      %p130 = scmp.ne.s32.totalorder %s113, %s129
      %p131 = scmp.eq.s32.totalorder %s28, 0
      %p132 = por %p130, %p131
      %s134 = sadd.s32 %s133, 1
      %p137 = scmp.eq.s32.totalorder %s22, 1
      %p138 = scmp.ne.s32.totalorder %s133, %s135
      %p139 = scmp.eq.s32.totalorder %s22, 0
      %p140 = por %p138, %p139
      %p141 = scmp.ne.s32.totalorder %s133, %s135
      %p142 = scmp.eq.s32.totalorder %s27, 1
      %p143 = por %p141, %p142
      %p144 = scmp.ne.s32.totalorder %s135, %s136
      %p145 = scmp.eq.s32.totalorder %s27, 0
      %p146 = por %p144, %p145
      %p147 = scmp.ne.s32.totalorder %s135, %s136
      %p148 = scmp.eq.s32.totalorder %s28, 1
      %p149 = por %p147, %p148
      %p151 = scmp.ne.s32.totalorder %s136, %s150
      %p152 = scmp.eq.s32.totalorder %s28, 0
      %p153 = por %p151, %p152
      %s155 = sadd.s32 %s154, 1
      %p158 = scmp.eq.s32.totalorder %s22, 1
      %p159 = scmp.ne.s32.totalorder %s154, %s156
      %p160 = scmp.eq.s32.totalorder %s22, 0
      %p161 = por %p159, %p160
      %p162 = scmp.ne.s32.totalorder %s154, %s156
      %p163 = scmp.eq.s32.totalorder %s27, 1
      %p164 = por %p162, %p163
      %p165 = scmp.ne.s32.totalorder %s156, %s157
      %p166 = scmp.eq.s32.totalorder %s27, 0
      %p167 = por %p165, %p166
      %p168 = scmp.ne.s32.totalorder %s156, %s157
      %p169 = scmp.eq.s32.totalorder %s28, 1
      %p170 = por %p168, %p169
      %p172 = scmp.ne.s32.totalorder %s157, %s171
      %p173 = scmp.eq.s32.totalorder %s28, 0
      %p174 = por %p172, %p173
      %s176 = sadd.s32 %s175, 1
      %p179 = scmp.eq.s32.totalorder %s22, 1
      %p180 = scmp.ne.s32.totalorder %s175, %s177
      %p181 = scmp.eq.s32.totalorder %s22, 0
      %p182 = por %p180, %p181
      %p183 = scmp.ne.s32.totalorder %s175, %s177
      %p184 = scmp.eq.s32.totalorder %s27, 1
      %p185 = por %p183, %p184
      %p186 = scmp.ne.s32.totalorder %s177, %s178
      %p187 = scmp.eq.s32.totalorder %s27, 0
      %p188 = por %p186, %p187
      %p189 = scmp.ne.s32.totalorder %s177, %s178
      %p190 = scmp.eq.s32.totalorder %s28, 1
      %p191 = por %p189, %p190
      %p193 = scmp.ne.s32.totalorder %s178, %s192
      %p194 = scmp.eq.s32.totalorder %s28, 0
      %p195 = por %p193, %p194
      %s196 = ssub.s32 %s29, %s48
      %s197 = ssub.s32 %s30, %s44
      %s198 = sor.u32 %s196, %s197
      %p199 = scmp.eq.s32.totalorder %s198, 0
      %s201 = sadd.s32 %s200, 1
      %s202 = scalar_select %p199, %s200, %s201
      %p205 = pneg %p199
      %p206 = scmp.eq.s32.totalorder %s22, 1
      %p207 = por %p205, %p206
      %p208 = scmp.ne.s32.totalorder %s200, %s203
      %p209 = scmp.eq.s32.totalorder %s22, 0
      %p210 = por %p208, %p209
      %p211 = scmp.ne.s32.totalorder %s200, %s203
      %p212 = scmp.eq.s32.totalorder %s27, 1
      %p213 = por %p211, %p212
      %p214 = scmp.ne.s32.totalorder %s203, %s204
      %p215 = scmp.eq.s32.totalorder %s27, 0
      %p216 = por %p214, %p215
      %p217 = scmp.ne.s32.totalorder %s203, %s204
      %p218 = scmp.eq.s32.totalorder %s28, 1
      %p219 = por %p217, %p218
      %p221 = scmp.ne.s32.totalorder %s204, %s220
      %p222 = scmp.eq.s32.totalorder %s28, 0
      %p223 = por %p221, %p222
      %p224 = scmp.le.s32.totalorder 1, %s22
      %p225 = scmp.lt.s32.totalorder %s22, 3
      %p226 = pnand %p224, %p225
      %p227 = pneg %p226
      // Predicated region
      $region9: #{tpu_custom_call.1} parent=5 // pred_check
        _
      $region10: #{tpu_custom_call.1} parent=5 // pred_check_branch
        %229 = sbr.rel (%p226) target = $region12
      $region11: #{tpu_custom_call.1} parent=5 // pred_region
        %s230 = ssub.s32 %s22, 1
        // Predicated region
        $region13: #{tpu_custom_call.1} parent=11 // pred_check
          %p231 = pneg %p146
        $region14: #{tpu_custom_call.1} parent=11 // pred_check_branch
          %233 = sbr.rel (%p231) target = $region16
        $region15: #{tpu_custom_call.1} parent=11 // pred_region
          %s235 = ssub.s32 512, 512
          %236 = vsyncadd [#allocation9], %s235
          %s237 = sshll.u32 [#allocation10], 4
          %s238 = int_to_ptr.vmem [resolvable:$true] %s237
          %243 = dma.hbm_to_vmem [thread:$0]  %s3, 512, %s238, [#allocation9], 128, 128, 8
        $region16: #{tpu_custom_call.1} parent=11 // pred_fallthru
          _
        // Predicated region
        $region17: #{tpu_custom_call.1} parent=11 // pred_check
          %p244 = pneg %p167
        $region18: #{tpu_custom_call.1} parent=11 // pred_check_branch
          %246 = sbr.rel (%p244) target = $region20
        $region19: #{tpu_custom_call.1} parent=11 // pred_region
          %s248 = ssub.s32 512, 512
          %249 = vsyncadd [#allocation12], %s248
          %s250 = sshll.u32 [#allocation11], 4
          %s251 = int_to_ptr.vmem [resolvable:$true] %s250
          %256 = dma.hbm_to_vmem [thread:$0]  %s4, 512, %s251, [#allocation12], 128, 128, 8
        $region20: #{tpu_custom_call.1} parent=11 // pred_fallthru
          _
        // Predicated region
        $region21: #{tpu_custom_call.1} parent=11 // pred_check
          %p257 = pneg %p188
        $region22: #{tpu_custom_call.1} parent=11 // pred_check_branch
          %259 = sbr.rel (%p257) target = $region24
        $region23: #{tpu_custom_call.1} parent=11 // pred_region
          _
        $region24: #{tpu_custom_call.1} parent=11 // pred_fallthru
          _
      $region12: #{tpu_custom_call.1} parent=5 // pred_fallthru
        _
      %p260 = scmp.lt.s32.totalorder %s22, 2
      // Predicated region
      $region25: #{tpu_custom_call.1} parent=5 // pred_check
        %p261 = pneg %p260
      $region26: #{tpu_custom_call.1} parent=5 // pred_check_branch
        %263 = sbr.rel (%p261) target = $region28
      $region27: #{tpu_custom_call.1} parent=5 // pred_region
        // Predicated region
        $region29: #{tpu_custom_call.1} parent=27 // pred_check
          %p264 = pneg %p63
        $region30: #{tpu_custom_call.1} parent=27 // pred_check_branch
          %266 = sbr.rel (%p264) target = $region32
        $region31: #{tpu_custom_call.1} parent=27 // pred_region
          %s267 = sand.u32 %s53, 1
          %s268 = scalar_lea.sflag [#allocation6], %s267
          %s269 = sand.u32 %s53, 1
          %s270 = smul.addr %s269, 8
          %s271 = scalar_lea.vmem [#allocation5], %s270
          %s273 = ssub.s32 128, 128
          %274 = vsyncadd %s268, %s273
          %s275 = sadd.s32 %s30, %s29
          %s276 = smul.addr %s275, 128
          %s277 = scalar_lea.hbm %s0, %s276
          %s279 = sshll.u32 %s271, 4
          %s280 = int_to_ptr.vmem [resolvable:$true] %s279
          %282 = dma.hbm_to_vmem [thread:$0]  %s277, 128, %s280, %s268
        $region32: #{tpu_custom_call.1} parent=27 // pred_fallthru
          _
        // Predicated region
        $region33: #{tpu_custom_call.1} parent=27 // pred_check
          %p283 = pneg %p91
        $region34: #{tpu_custom_call.1} parent=27 // pred_check_branch
          %285 = sbr.rel (%p283) target = $region36
        $region35: #{tpu_custom_call.1} parent=27 // pred_region
          %s286 = sand.u32 %s22, 1
          %s287 = scalar_lea.sflag [#allocation9], %s286
          %s288 = sand.u32 %s81, 1
          %s289 = smul.addr %s288, 8
          %s290 = scalar_lea.vmem [#allocation8], %s289
          %s292 = ssub.s32 128, 128
          %293 = vsyncadd %s287, %s292
          %s294 = sadd.s32 %s31, %s29
          %s295 = smul.addr %s294, 128
          %s296 = scalar_lea.hbm %s1, %s295
          %s298 = sshll.u32 %s290, 4
          %s299 = int_to_ptr.vmem [resolvable:$true] %s298
          %301 = dma.hbm_to_vmem [thread:$0]  %s296, 128, %s299, %s287
        $region36: #{tpu_custom_call.1} parent=27 // pred_fallthru
          _
        // Predicated region
        $region37: #{tpu_custom_call.1} parent=27 // pred_check
          %p302 = pneg %p119
        $region38: #{tpu_custom_call.1} parent=27 // pred_check_branch
          %304 = sbr.rel (%p302) target = $region40
        $region39: #{tpu_custom_call.1} parent=27 // pred_region
          %p305 = scmp.lt.s32.totalorder %s29, 1
          %s306 = scalar_select %p305, %s29, 1
          %p307 = scmp.lt.s32.totalorder %s31, 0
          %s308 = scalar_select %p307, %s31, 0
          %s309 = sadd.s32 %s308, %s306
          %s310 = scalar_lea.vmem %s2, %s309
        $region40: #{tpu_custom_call.1} parent=27 // pred_fallthru
          _
      $region28: #{tpu_custom_call.1} parent=5 // pred_fallthru
        _
      %p311 = scmp.le.s32.totalorder 1, %s22
      %p312 = scmp.lt.s32.totalorder %s22, 3
      %p313 = pnand %p311, %p312
      %p314 = pneg %p313
      // Predicated region
      $region41: #{tpu_custom_call.1} parent=5 // pred_check
        _
      $region42: #{tpu_custom_call.1} parent=5 // pred_check_branch
        %316 = sbr.rel (%p313) target = $region44
      $region43: #{tpu_custom_call.1} parent=5 // pred_region
        %s317 = ssub.s32 %s22, 1
        %s318 = sand.u32 %s56, 1
        %s319 = scalar_lea.sflag [#allocation6], %s318
        %s320 = sand.u32 %s56, 1
        %s321 = smul.addr %s320, 8
        %s322 = scalar_lea.vmem [#allocation5], %s321
        // Predicated region
        $region45: #{tpu_custom_call.1} parent=43 // pred_check
          %p323 = pneg %p69
        $region46: #{tpu_custom_call.1} parent=43 // pred_check_branch
          %325 = sbr.rel (%p323) target = $region48
        $region47: #{tpu_custom_call.1} parent=43 // pred_region
          %326 = dma.done %s319, 128
        $region48: #{tpu_custom_call.1} parent=43 // pred_fallthru
          _
        %s327 = sand.u32 %s27, 1
        %s328 = scalar_lea.sflag [#allocation9], %s327
        %s329 = sand.u32 %s84, 1
        %s330 = smul.addr %s329, 8
        %s331 = scalar_lea.vmem [#allocation8], %s330
        // Predicated region
        $region49: #{tpu_custom_call.1} parent=43 // pred_check
          %p332 = pneg %p97
        $region50: #{tpu_custom_call.1} parent=43 // pred_check_branch
          %334 = sbr.rel (%p332) target = $region52
        $region51: #{tpu_custom_call.1} parent=43 // pred_region
          %335 = dma.done %s328, 128
        $region52: #{tpu_custom_call.1} parent=43 // pred_fallthru
          _
        // Predicated region
        $region53: #{tpu_custom_call.1} parent=43 // pred_check
          %p336 = pneg %p146
        $region54: #{tpu_custom_call.1} parent=43 // pred_check_branch
          %338 = sbr.rel (%p336) target = $region56
        $region55: #{tpu_custom_call.1} parent=43 // pred_region
          %339 = dma.done [#allocation9], 512
        $region56: #{tpu_custom_call.1} parent=43 // pred_fallthru
          _
        // Predicated region
        $region57: #{tpu_custom_call.1} parent=43 // pred_check
          %p340 = pneg %p167
        $region58: #{tpu_custom_call.1} parent=43 // pred_check_branch
          %342 = sbr.rel (%p340) target = $region60
        $region59: #{tpu_custom_call.1} parent=43 // pred_region
          %343 = dma.done [#allocation12], 512
        $region60: #{tpu_custom_call.1} parent=43 // pred_fallthru
          _
        %s344 = sand.u32 %s56, 1
        %s345 = scalar_lea.sflag [#allocation6], %s344
        %s346 = sand.u32 %s56, 1
        %s347 = smul.addr %s346, 8
        %s348 = scalar_lea.vmem [#allocation5], %s347
        %p349 = pneg %p69
        %p350 = pneg %p66
        %s351 = sand.u32 %s27, 1
        %s352 = scalar_lea.sflag [#allocation9], %s351
        %s353 = sand.u32 %s84, 1
        %s354 = smul.addr %s353, 8
        %s355 = scalar_lea.vmem [#allocation8], %s354
        %p356 = pneg %p97
        %p357 = pneg %p94
        %p358 = scmp.lt.s32.totalorder %s32, 1
        %s359 = scalar_select %p358, %s32, 1
        %p360 = scmp.lt.s32.totalorder %s34, 0
        %s361 = scalar_select %p360, %s34, 0
        %s362 = sadd.s32 %s361, %s359
        %s363 = scalar_lea.vmem %s2, %s362
        %p364 = pneg %p125
        %p365 = pneg %p122
        %p366 = pneg %p146
        %p367 = pneg %p143
        %p368 = pneg %p167
        %p369 = pneg %p164
        %p370 = pneg %p188
        %p371 = pneg %p185
        %p372 = pneg %p216
        %p373 = pneg %p213
        %s374 = sand.u32 %s203, 1
        %s375 = scalar_lea.sflag [#allocation7], %s374
        %s376 = sand.u32 %s203, 1
        %s377 = smul.addr %s376, 8
        %s378 = scalar_lea.vmem [#allocation13], %s377
        %p379 = scmp.lt.s32.totalorder %s32, 1
        %s380 = scalar_select %p379, %s32, 1
        %p381 = scmp.lt.s32.totalorder %s34, 0
        %s382 = scalar_select %p381, %s34, 0
        %s383 = sadd.s32 %s382, %s380
        %s384 = scalar_lea.vmem %s2, %s383
        %p385 = scmp.eq.s32.totalorder %s34, 0
        // Predicated region
        $region61: #{tpu_custom_call.1} parent=43 // pred_check
          %p386 = pneg %p385
        $region62: #{tpu_custom_call.1} parent=43 // pred_check_branch
          %388 = sbr.rel (%p386) target = $region64
        $region63: #{tpu_custom_call.1} parent=43 // pred_region
          %vm389 = vcmask 7168
          %390 = vst.msk [vmem:[#allocation2] sm:$0xff] %vm389, -inf
          %391 = vst.msk [vmem:[#allocation2 + $0x8] sm:$0xff] %vm389, -inf
          %392 = vst.msk [vmem:[#allocation2 + $0x10] sm:$0xff] %vm389, -inf
          %393 = vst.msk [vmem:[#allocation2 + $0x18] sm:$0xff] %vm389, -inf
          %394 = vst.msk [vmem:[#allocation3] sm:$0xff] %vm389, 0.0
          %395 = vst.msk [vmem:[#allocation3 + $0x8] sm:$0xff] %vm389, 0.0
          %396 = vst.msk [vmem:[#allocation3 + $0x10] sm:$0xff] %vm389, 0.0
          %397 = vst.msk [vmem:[#allocation3 + $0x18] sm:$0xff] %vm389, 0.0
          %vm398 = vcmask 64512
          %399 = vst.msk [vmem:[#allocation4] sm:$0xff] %vm398, 0.0
          %400 = vst.msk [vmem:[#allocation4 + $0x8] sm:$0xff] %vm398, 0.0
          %401 = vst.msk [vmem:[#allocation4 + $0x10] sm:$0xff] %vm398, 0.0
          %402 = vst.msk [vmem:[#allocation4 + $0x18] sm:$0xff] %vm398, 0.0
        $region64: #{tpu_custom_call.1} parent=43 // pred_fallthru
          _
        %v403 = vld [vmem:[%s322] sm:$0xff]
        %v404 = vld [vmem:[%s331] sm:$0xff]
        %v405 = vld [vmem:[%s384] sm:$0x1]
        %v406 = vmul.f32 %v403, 0.35355338
        %v408 = vlaneseq
        %v409 = vshrl.u32 %v408, 7
        %v410 = vsub.s32 0, %v409
        %v411 = vrot.slane %v405, %v410
        %vm413 = vcmask 64512
        %v415 = vsel %vm413, %v406, 0
        %v418 = vsel %vm413, %v404, 0
        %420 = vmatprep.subr.mxu0 0.0
        %421 = vmatpush1.xpose.msra.mxu0 0.0
        %422 = vmatprep.subr.mxu0 0.0
        %423 = vmatpush1.xpose.msra.mxu0 0.0
        %424 = vmatprep.subr.mxu0 0.0
        %425 = vmatpush1.xpose.msra.mxu0 0.0
        %426 = vmatprep.subr.mxu0 0.0
        %427 = vmatpush1.xpose.msra.mxu0 0.0
        %428 = vmatprep.subr.mxu0 0.0
        %429 = vmatpush1.xpose.msra.mxu0 0.0
        %430 = vmatprep.subr.mxu0 0.0
        %431 = vmatpush1.xpose.msra.mxu0 0.0
        %432 = vmatprep.subr.mxu0 0.0
        %433 = vmatpush1.xpose.msra.mxu0 0.0
        %434 = vmatprep.subr.mxu0 0.0
        %435 = vmatpush1.xpose.msra.mxu0 0.0
        %436 = vmatprep.subr.mxu0 0.0
        %437 = vmatpush1.xpose.msra.mxu0 0.0
        %438 = vmatprep.subr.mxu0 0.0
        %439 = vmatpush1.xpose.msra.mxu0 0.0
        %440 = vmatprep.subr.mxu0 0.0
        %441 = vmatpush1.xpose.msra.mxu0 0.0
        %442 = vmatprep.subr.mxu0 0.0
        %443 = vmatpush1.xpose.msra.mxu0 0.0
        %444 = vmatprep.subr.mxu0 0.0
        %445 = vmatpush1.xpose.msra.mxu0 0.0
        %446 = vmatprep.subr.mxu0 0.0
        %447 = vmatpush1.xpose.msra.mxu0 0.0
        %448 = vmatprep.subr.mxu0 0.0
        %449 = vmatpush1.xpose.msra.mxu0 0.0
        %450 = vmatprep.subr.mxu0 0.0
        %451 = vmatpush1.xpose.msra.mxu0 %v418
        %452 = vmatprep.subr.mxu0 0.0
        %453 = vmatpush2.xpose.msra.mxu0 0.0
        %454 = vmatprep.subr.mxu0 0.0
        %455 = vmatpush2.xpose.msra.mxu0 0.0
        %456 = vmatprep.subr.mxu0 0.0
        %457 = vmatpush2.xpose.msra.mxu0 0.0
        %458 = vmatprep.subr.mxu0 0.0
        %459 = vmatpush2.xpose.msra.mxu0 0.0
        %460 = vmatprep.subr.mxu0 0.0
        %461 = vmatpush2.xpose.msra.mxu0 0.0
        %462 = vmatprep.subr.mxu0 0.0
        %463 = vmatpush2.xpose.msra.mxu0 0.0
        %464 = vmatprep.subr.mxu0 0.0
        %465 = vmatpush2.xpose.msra.mxu0 0.0
        %466 = vmatprep.subr.mxu0 0.0
        %467 = vmatpush2.xpose.msra.mxu0 0.0
        %468 = vmatprep.subr.mxu0 0.0
        %469 = vmatpush2.xpose.msra.mxu0 0.0
        %470 = vmatprep.subr.mxu0 0.0
        %471 = vmatpush2.xpose.msra.mxu0 0.0
        %472 = vmatprep.subr.mxu0 0.0
        %473 = vmatpush2.xpose.msra.mxu0 0.0
        %474 = vmatprep.subr.mxu0 0.0
        %475 = vmatpush2.xpose.msra.mxu0 0.0
        %476 = vmatprep.subr.mxu0 0.0
        %477 = vmatpush2.xpose.msra.mxu0 0.0
        %478 = vmatprep.subr.mxu0 0.0
        %479 = vmatpush2.xpose.msra.mxu0 0.0
        %480 = vmatprep.subr.mxu0 0.0
        %481 = vmatpush2.xpose.msra.mxu0 0.0
        %482 = vmatprep.subr.mxu0 0.0
        %483 = vmatpush2.xpose.msra.mxu0 0.0
        %484 = vmatprep.mubr.f32.mxu0 0.0
        %485 = vmatmul.mubr.f32.gmra.mxu0 %v415
        %v486 = vpop.f32.mrf.mxu0
        %v487 = vadd.f32 %v411, %v486
        %v488 = vpop.f32.mrf.mxu0
        %489 = vdwg.mxu0
        %v490 = vld [vmem:[#allocation2] sm:$0xff]
        %v491 = vsel %vm413, %v487, -inf
        %492 = vmax.xlane.f32.xlu0 %v491
        %v493 = vpop.xlane.xlu0 %492
        %v494 = vmax.f32 %v490, %v493
        %v495 = vsub.f32 %v490, %v494
        %v496 = vmul.f32 %v495, 1.442695
        %v497 = vpow.pop %v496
        %499 = vset.pattern.permute.xlu0 0
        %500 = vperm.xlu0 %499, %v494
        %v501 = vpop.permute.xlu0 %500
        %v503 = vsub.f32 %v487, %v501
        %v504 = vmul.f32 %v503, 1.442695
        %v505 = vpow.pop %v504
        %v506 = vld [vmem:[#allocation3] sm:$0xff]
        %v507 = vmul.f32 %v497, %v506
        %v508 = vsel %vm413, %v505, 0.0
        %509 = vadd.xlane.f32.xlu0 %v508
        %v510 = vpop.xlane.xlu0 %509
        %v511 = vadd.f32 %v507, %v510
        %vm512 = vcmask 7168
        %513 = vst.msk [vmem:[#allocation3] sm:$0xff] %vm512, %v511
        %v514 = vld [vmem:[#allocation4] sm:$0xff]
        %516 = vset.pattern.permute.xlu0 0
        %517 = vperm.xlu0 %516, %v497
        %v518 = vpop.permute.xlu0 %517
        %v520 = vmul.f32 %v518, %v514
        %v522 = vsel %vm413, %v505, 0
        %524 = vmatprep.subr.mxu0 0.0
        %525 = vmatpush1.msra.mxu0 0.0
        %526 = vmatprep.subr.mxu0 0.0
        %527 = vmatpush1.msra.mxu0 0.0
        %528 = vmatprep.subr.mxu0 0.0
        %529 = vmatpush1.msra.mxu0 0.0
        %530 = vmatprep.subr.mxu0 0.0
        %531 = vmatpush1.msra.mxu0 0.0
        %532 = vmatprep.subr.mxu0 0.0
        %533 = vmatpush1.msra.mxu0 0.0
        %534 = vmatprep.subr.mxu0 0.0
        %535 = vmatpush1.msra.mxu0 0.0
        %536 = vmatprep.subr.mxu0 0.0
        %537 = vmatpush1.msra.mxu0 0.0
        %538 = vmatprep.subr.mxu0 0.0
        %539 = vmatpush1.msra.mxu0 0.0
        %540 = vmatprep.subr.mxu0 0.0
        %541 = vmatpush1.msra.mxu0 0.0
        %542 = vmatprep.subr.mxu0 0.0
        %543 = vmatpush1.msra.mxu0 0.0
        %544 = vmatprep.subr.mxu0 0.0
        %545 = vmatpush1.msra.mxu0 0.0
        %546 = vmatprep.subr.mxu0 0.0
        %547 = vmatpush1.msra.mxu0 0.0
        %548 = vmatprep.subr.mxu0 0.0
        %549 = vmatpush1.msra.mxu0 0.0
        %550 = vmatprep.subr.mxu0 0.0
        %551 = vmatpush1.msra.mxu0 0.0
        %552 = vmatprep.subr.mxu0 0.0
        %553 = vmatpush1.msra.mxu0 0.0
        %554 = vmatprep.subr.mxu0 0.0
        %555 = vmatpush1.msra.mxu0 %v404
        %556 = vmatprep.subr.mxu0 0.0
        %557 = vmatpush2.msra.mxu0 0.0
        %558 = vmatprep.subr.mxu0 0.0
        %559 = vmatpush2.msra.mxu0 0.0
        %560 = vmatprep.subr.mxu0 0.0
        %561 = vmatpush2.msra.mxu0 0.0
        %562 = vmatprep.subr.mxu0 0.0
        %563 = vmatpush2.msra.mxu0 0.0
        %564 = vmatprep.subr.mxu0 0.0
        %565 = vmatpush2.msra.mxu0 0.0
        %566 = vmatprep.subr.mxu0 0.0
        %567 = vmatpush2.msra.mxu0 0.0
        %568 = vmatprep.subr.mxu0 0.0
        %569 = vmatpush2.msra.mxu0 0.0
        %570 = vmatprep.subr.mxu0 0.0
        %571 = vmatpush2.msra.mxu0 0.0
        %572 = vmatprep.subr.mxu0 0.0
        %573 = vmatpush2.msra.mxu0 0.0
        %574 = vmatprep.subr.mxu0 0.0
        %575 = vmatpush2.msra.mxu0 0.0
        %576 = vmatprep.subr.mxu0 0.0
        %577 = vmatpush2.msra.mxu0 0.0
        %578 = vmatprep.subr.mxu0 0.0
        %579 = vmatpush2.msra.mxu0 0.0
        %580 = vmatprep.subr.mxu0 0.0
        %581 = vmatpush2.msra.mxu0 0.0
        %582 = vmatprep.subr.mxu0 0.0
        %583 = vmatpush2.msra.mxu0 0.0
        %584 = vmatprep.subr.mxu0 0.0
        %585 = vmatpush2.msra.mxu0 0.0
        %586 = vmatprep.subr.mxu0 0.0
        %587 = vmatpush2.msra.mxu0 0.0
        %588 = vmatprep.mubr.f32.mxu0 0.0
        %589 = vmatmul.mubr.f32.gmra.mxu0 %v522
        %v590 = vpop.f32.mrf.mxu0
        %v591 = vadd.f32 0.0, %v590
        %v592 = vpop.f32.mrf.mxu0
        %593 = vdwg.mxu0
        %v594 = vadd.f32 %v520, %v591
        %595 = vst.msk [vmem:[#allocation4] sm:$0xff] %vm413, %v594
        %596 = vst.msk [vmem:[#allocation2] sm:$0xff] %vm512, %v494
        %597 = vrot.lane.b32.xlu0 %v406, 120
        %v598 = vpop.permute.xlu0 %597
        %599 = vrot.lane.b32.xlu0 %v404, 120
        %v600 = vpop.permute.xlu0 %599
        %v601 = vsel %vm413, %v598, 0
        %v603 = vsel %vm413, %v600, 0
        %605 = vmatprep.subr.mxu0 0.0
        %606 = vmatpush1.xpose.msra.mxu0 0.0
        %607 = vmatprep.subr.mxu0 0.0
        %608 = vmatpush1.xpose.msra.mxu0 0.0
        %609 = vmatprep.subr.mxu0 0.0
        %610 = vmatpush1.xpose.msra.mxu0 0.0
        %611 = vmatprep.subr.mxu0 0.0
        %612 = vmatpush1.xpose.msra.mxu0 0.0
        %613 = vmatprep.subr.mxu0 0.0
        %614 = vmatpush1.xpose.msra.mxu0 0.0
        %615 = vmatprep.subr.mxu0 0.0
        %616 = vmatpush1.xpose.msra.mxu0 0.0
        %617 = vmatprep.subr.mxu0 0.0
        %618 = vmatpush1.xpose.msra.mxu0 0.0
        %619 = vmatprep.subr.mxu0 0.0
        %620 = vmatpush1.xpose.msra.mxu0 0.0
        %621 = vmatprep.subr.mxu0 0.0
        %622 = vmatpush1.xpose.msra.mxu0 0.0
        %623 = vmatprep.subr.mxu0 0.0
        %624 = vmatpush1.xpose.msra.mxu0 0.0
        %625 = vmatprep.subr.mxu0 0.0
        %626 = vmatpush1.xpose.msra.mxu0 0.0
        %627 = vmatprep.subr.mxu0 0.0
        %628 = vmatpush1.xpose.msra.mxu0 0.0
        %629 = vmatprep.subr.mxu0 0.0
        %630 = vmatpush1.xpose.msra.mxu0 0.0
        %631 = vmatprep.subr.mxu0 0.0
        %632 = vmatpush1.xpose.msra.mxu0 0.0
        %633 = vmatprep.subr.mxu0 0.0
        %634 = vmatpush1.xpose.msra.mxu0 0.0
        %635 = vmatprep.subr.mxu0 0.0
        %636 = vmatpush1.xpose.msra.mxu0 %v603
        %637 = vmatprep.subr.mxu0 0.0
        %638 = vmatpush2.xpose.msra.mxu0 0.0
        %639 = vmatprep.subr.mxu0 0.0
        %640 = vmatpush2.xpose.msra.mxu0 0.0
        %641 = vmatprep.subr.mxu0 0.0
        %642 = vmatpush2.xpose.msra.mxu0 0.0
        %643 = vmatprep.subr.mxu0 0.0
        %644 = vmatpush2.xpose.msra.mxu0 0.0
        %645 = vmatprep.subr.mxu0 0.0
        %646 = vmatpush2.xpose.msra.mxu0 0.0
        %647 = vmatprep.subr.mxu0 0.0
        %648 = vmatpush2.xpose.msra.mxu0 0.0
        %649 = vmatprep.subr.mxu0 0.0
        %650 = vmatpush2.xpose.msra.mxu0 0.0
        %651 = vmatprep.subr.mxu0 0.0
        %652 = vmatpush2.xpose.msra.mxu0 0.0
        %653 = vmatprep.subr.mxu0 0.0
        %654 = vmatpush2.xpose.msra.mxu0 0.0
        %655 = vmatprep.subr.mxu0 0.0
        %656 = vmatpush2.xpose.msra.mxu0 0.0
        %657 = vmatprep.subr.mxu0 0.0
        %658 = vmatpush2.xpose.msra.mxu0 0.0
        %659 = vmatprep.subr.mxu0 0.0
        %660 = vmatpush2.xpose.msra.mxu0 0.0
        %661 = vmatprep.subr.mxu0 0.0
        %662 = vmatpush2.xpose.msra.mxu0 0.0
        %663 = vmatprep.subr.mxu0 0.0
        %664 = vmatpush2.xpose.msra.mxu0 0.0
        %665 = vmatprep.subr.mxu0 0.0
        %666 = vmatpush2.xpose.msra.mxu0 0.0
        %667 = vmatprep.subr.mxu0 0.0
        %668 = vmatpush2.xpose.msra.mxu0 0.0
        %669 = vmatprep.mubr.f32.mxu0 0.0
        %670 = vmatmul.mubr.f32.gmra.mxu0 %v601
        %v671 = vpop.f32.mrf.mxu0
        %v672 = vadd.f32 %v411, %v671
        %v673 = vpop.f32.mrf.mxu0
        %674 = vdwg.mxu0
        %s675 = scalar_lea.vmem [#allocation2], 8
        %v676 = vld [vmem:[%s675] sm:$0xff]
        %v677 = vsel %vm413, %v672, -inf
        %678 = vmax.xlane.f32.xlu0 %v677
        %v679 = vpop.xlane.xlu0 %678
        %v680 = vmax.f32 %v676, %v679
        %v681 = vsub.f32 %v676, %v680
        %v682 = vmul.f32 %v681, 1.442695
        %v683 = vpow.pop %v682
        %685 = vset.pattern.permute.xlu0 0
        %686 = vperm.xlu0 %685, %v680
        %v687 = vpop.permute.xlu0 %686
        %v689 = vsub.f32 %v672, %v687
        %v690 = vmul.f32 %v689, 1.442695
        %v691 = vpow.pop %v690
        %s692 = scalar_lea.vmem [#allocation3], 8
        %v693 = vld [vmem:[%s692] sm:$0xff]
        %v694 = vmul.f32 %v683, %v693
        %v695 = vsel %vm413, %v691, 0.0
        %696 = vadd.xlane.f32.xlu0 %v695
        %v697 = vpop.xlane.xlu0 %696
        %v698 = vadd.f32 %v694, %v697
        %699 = vst.msk [vmem:[%s692] sm:$0xff] %vm512, %v698
        %s700 = scalar_lea.vmem [#allocation4], 8
        %v701 = vld [vmem:[%s700] sm:$0xff]
        %703 = vset.pattern.permute.xlu0 0
        %704 = vperm.xlu0 %703, %v683
        %v705 = vpop.permute.xlu0 %704
        %v707 = vmul.f32 %v705, %v701
        %v710 = vsel %vm413, %v691, 0
        %712 = vmatprep.subr.mxu0 0.0
        %713 = vmatpush1.msra.mxu0 0.0
        %714 = vmatprep.subr.mxu0 0.0
        %715 = vmatpush1.msra.mxu0 0.0
        %716 = vmatprep.subr.mxu0 0.0
        %717 = vmatpush1.msra.mxu0 0.0
        %718 = vmatprep.subr.mxu0 0.0
        %719 = vmatpush1.msra.mxu0 0.0
        %720 = vmatprep.subr.mxu0 0.0
        %721 = vmatpush1.msra.mxu0 0.0
        %722 = vmatprep.subr.mxu0 0.0
        %723 = vmatpush1.msra.mxu0 0.0
        %724 = vmatprep.subr.mxu0 0.0
        %725 = vmatpush1.msra.mxu0 0.0
        %726 = vmatprep.subr.mxu0 0.0
        %727 = vmatpush1.msra.mxu0 0.0
        %728 = vmatprep.subr.mxu0 0.0
        %729 = vmatpush1.msra.mxu0 0.0
        %730 = vmatprep.subr.mxu0 0.0
        %731 = vmatpush1.msra.mxu0 0.0
        %732 = vmatprep.subr.mxu0 0.0
        %733 = vmatpush1.msra.mxu0 0.0
        %734 = vmatprep.subr.mxu0 0.0
        %735 = vmatpush1.msra.mxu0 0.0
        %736 = vmatprep.subr.mxu0 0.0
        %737 = vmatpush1.msra.mxu0 0.0
        %738 = vmatprep.subr.mxu0 0.0
        %739 = vmatpush1.msra.mxu0 0.0
        %740 = vmatprep.subr.mxu0 0.0
        %741 = vmatpush1.msra.mxu0 0.0
        %742 = vmatprep.subr.mxu0 0.0
        %743 = vmatpush1.msra.mxu0 %v600
        %744 = vmatprep.subr.mxu0 0.0
        %745 = vmatpush2.msra.mxu0 0.0
        %746 = vmatprep.subr.mxu0 0.0
        %747 = vmatpush2.msra.mxu0 0.0
        %748 = vmatprep.subr.mxu0 0.0
        %749 = vmatpush2.msra.mxu0 0.0
        %750 = vmatprep.subr.mxu0 0.0
        %751 = vmatpush2.msra.mxu0 0.0
        %752 = vmatprep.subr.mxu0 0.0
        %753 = vmatpush2.msra.mxu0 0.0
        %754 = vmatprep.subr.mxu0 0.0
        %755 = vmatpush2.msra.mxu0 0.0
        %756 = vmatprep.subr.mxu0 0.0
        %757 = vmatpush2.msra.mxu0 0.0
        %758 = vmatprep.subr.mxu0 0.0
        %759 = vmatpush2.msra.mxu0 0.0
        %760 = vmatprep.subr.mxu0 0.0
        %761 = vmatpush2.msra.mxu0 0.0
        %762 = vmatprep.subr.mxu0 0.0
        %763 = vmatpush2.msra.mxu0 0.0
        %764 = vmatprep.subr.mxu0 0.0
        %765 = vmatpush2.msra.mxu0 0.0
        %766 = vmatprep.subr.mxu0 0.0
        %767 = vmatpush2.msra.mxu0 0.0
        %768 = vmatprep.subr.mxu0 0.0
        %769 = vmatpush2.msra.mxu0 0.0
        %770 = vmatprep.subr.mxu0 0.0
        %771 = vmatpush2.msra.mxu0 0.0
        %772 = vmatprep.subr.mxu0 0.0
        %773 = vmatpush2.msra.mxu0 0.0
        %774 = vmatprep.subr.mxu0 0.0
        %775 = vmatpush2.msra.mxu0 0.0
        %776 = vmatprep.mubr.f32.mxu0 0.0
        %777 = vmatmul.mubr.f32.gmra.mxu0 %v710
        %v778 = vpop.f32.mrf.mxu0
        %v779 = vadd.f32 0.0, %v778
        %v780 = vpop.f32.mrf.mxu0
        %781 = vdwg.mxu0
        %v782 = vadd.f32 %v707, %v779
        %783 = vst.msk [vmem:[%s700] sm:$0xff] %vm413, %v782
        %784 = vst.msk [vmem:[%s675] sm:$0xff] %vm512, %v680
        %785 = vrot.lane.b32.xlu0 %v406, 112
        %v786 = vpop.permute.xlu0 %785
        %787 = vrot.lane.b32.xlu0 %v404, 112
        %v788 = vpop.permute.xlu0 %787
        %v789 = vsel %vm413, %v786, 0
        %v791 = vsel %vm413, %v788, 0
        %793 = vmatprep.subr.mxu0 0.0
        %794 = vmatpush1.xpose.msra.mxu0 0.0
        %795 = vmatprep.subr.mxu0 0.0
        %796 = vmatpush1.xpose.msra.mxu0 0.0
        %797 = vmatprep.subr.mxu0 0.0
        %798 = vmatpush1.xpose.msra.mxu0 0.0
        %799 = vmatprep.subr.mxu0 0.0
        %800 = vmatpush1.xpose.msra.mxu0 0.0
        %801 = vmatprep.subr.mxu0 0.0
        %802 = vmatpush1.xpose.msra.mxu0 0.0
        %803 = vmatprep.subr.mxu0 0.0
        %804 = vmatpush1.xpose.msra.mxu0 0.0
        %805 = vmatprep.subr.mxu0 0.0
        %806 = vmatpush1.xpose.msra.mxu0 0.0
        %807 = vmatprep.subr.mxu0 0.0
        %808 = vmatpush1.xpose.msra.mxu0 0.0
        %809 = vmatprep.subr.mxu0 0.0
        %810 = vmatpush1.xpose.msra.mxu0 0.0
        %811 = vmatprep.subr.mxu0 0.0
        %812 = vmatpush1.xpose.msra.mxu0 0.0
        %813 = vmatprep.subr.mxu0 0.0
        %814 = vmatpush1.xpose.msra.mxu0 0.0
        %815 = vmatprep.subr.mxu0 0.0
        %816 = vmatpush1.xpose.msra.mxu0 0.0
        %817 = vmatprep.subr.mxu0 0.0
        %818 = vmatpush1.xpose.msra.mxu0 0.0
        %819 = vmatprep.subr.mxu0 0.0
        %820 = vmatpush1.xpose.msra.mxu0 0.0
        %821 = vmatprep.subr.mxu0 0.0
        %822 = vmatpush1.xpose.msra.mxu0 0.0
        %823 = vmatprep.subr.mxu0 0.0
        %824 = vmatpush1.xpose.msra.mxu0 %v791
        %825 = vmatprep.subr.mxu0 0.0
        %826 = vmatpush2.xpose.msra.mxu0 0.0
        %827 = vmatprep.subr.mxu0 0.0
        %828 = vmatpush2.xpose.msra.mxu0 0.0
        %829 = vmatprep.subr.mxu0 0.0
        %830 = vmatpush2.xpose.msra.mxu0 0.0
        %831 = vmatprep.subr.mxu0 0.0
        %832 = vmatpush2.xpose.msra.mxu0 0.0
        %833 = vmatprep.subr.mxu0 0.0
        %834 = vmatpush2.xpose.msra.mxu0 0.0
        %835 = vmatprep.subr.mxu0 0.0
        %836 = vmatpush2.xpose.msra.mxu0 0.0
        %837 = vmatprep.subr.mxu0 0.0
        %838 = vmatpush2.xpose.msra.mxu0 0.0
        %839 = vmatprep.subr.mxu0 0.0
        %840 = vmatpush2.xpose.msra.mxu0 0.0
        %841 = vmatprep.subr.mxu0 0.0
        %842 = vmatpush2.xpose.msra.mxu0 0.0
        %843 = vmatprep.subr.mxu0 0.0
        %844 = vmatpush2.xpose.msra.mxu0 0.0
        %845 = vmatprep.subr.mxu0 0.0
        %846 = vmatpush2.xpose.msra.mxu0 0.0
        %847 = vmatprep.subr.mxu0 0.0
        %848 = vmatpush2.xpose.msra.mxu0 0.0
        %849 = vmatprep.subr.mxu0 0.0
        %850 = vmatpush2.xpose.msra.mxu0 0.0
        %851 = vmatprep.subr.mxu0 0.0
        %852 = vmatpush2.xpose.msra.mxu0 0.0
        %853 = vmatprep.subr.mxu0 0.0
        %854 = vmatpush2.xpose.msra.mxu0 0.0
        %855 = vmatprep.subr.mxu0 0.0
        %856 = vmatpush2.xpose.msra.mxu0 0.0
        %857 = vmatprep.mubr.f32.mxu0 0.0
        %858 = vmatmul.mubr.f32.gmra.mxu0 %v789
        %v859 = vpop.f32.mrf.mxu0
        %v860 = vadd.f32 %v411, %v859
        %v861 = vpop.f32.mrf.mxu0
        %862 = vdwg.mxu0
        %s863 = scalar_lea.vmem [#allocation2], 16
        %v864 = vld [vmem:[%s863] sm:$0xff]
        %v865 = vsel %vm413, %v860, -inf
        %866 = vmax.xlane.f32.xlu0 %v865
        %v867 = vpop.xlane.xlu0 %866
        %v868 = vmax.f32 %v864, %v867
        %v869 = vsub.f32 %v864, %v868
        %v870 = vmul.f32 %v869, 1.442695
        %v871 = vpow.pop %v870
        %873 = vset.pattern.permute.xlu0 0
        %874 = vperm.xlu0 %873, %v868
        %v875 = vpop.permute.xlu0 %874
        %v877 = vsub.f32 %v860, %v875
        %v878 = vmul.f32 %v877, 1.442695
        %v879 = vpow.pop %v878
        %s880 = scalar_lea.vmem [#allocation3], 16
        %v881 = vld [vmem:[%s880] sm:$0xff]
        %v882 = vmul.f32 %v871, %v881
        %v883 = vsel %vm413, %v879, 0.0
        %884 = vadd.xlane.f32.xlu0 %v883
        %v885 = vpop.xlane.xlu0 %884
        %v886 = vadd.f32 %v882, %v885
        %887 = vst.msk [vmem:[%s880] sm:$0xff] %vm512, %v886
        %s888 = scalar_lea.vmem [#allocation4], 16
        %v889 = vld [vmem:[%s888] sm:$0xff]
        %891 = vset.pattern.permute.xlu0 0
        %892 = vperm.xlu0 %891, %v871
        %v893 = vpop.permute.xlu0 %892
        %v895 = vmul.f32 %v893, %v889
        %v898 = vsel %vm413, %v879, 0
        %900 = vmatprep.subr.mxu0 0.0
        %901 = vmatpush1.msra.mxu0 0.0
        %902 = vmatprep.subr.mxu0 0.0
        %903 = vmatpush1.msra.mxu0 0.0
        %904 = vmatprep.subr.mxu0 0.0
        %905 = vmatpush1.msra.mxu0 0.0
        %906 = vmatprep.subr.mxu0 0.0
        %907 = vmatpush1.msra.mxu0 0.0
        %908 = vmatprep.subr.mxu0 0.0
        %909 = vmatpush1.msra.mxu0 0.0
        %910 = vmatprep.subr.mxu0 0.0
        %911 = vmatpush1.msra.mxu0 0.0
        %912 = vmatprep.subr.mxu0 0.0
        %913 = vmatpush1.msra.mxu0 0.0
        %914 = vmatprep.subr.mxu0 0.0
        %915 = vmatpush1.msra.mxu0 0.0
        %916 = vmatprep.subr.mxu0 0.0
        %917 = vmatpush1.msra.mxu0 0.0
        %918 = vmatprep.subr.mxu0 0.0
        %919 = vmatpush1.msra.mxu0 0.0
        %920 = vmatprep.subr.mxu0 0.0
        %921 = vmatpush1.msra.mxu0 0.0
        %922 = vmatprep.subr.mxu0 0.0
        %923 = vmatpush1.msra.mxu0 0.0
        %924 = vmatprep.subr.mxu0 0.0
        %925 = vmatpush1.msra.mxu0 0.0
        %926 = vmatprep.subr.mxu0 0.0
        %927 = vmatpush1.msra.mxu0 0.0
        %928 = vmatprep.subr.mxu0 0.0
        %929 = vmatpush1.msra.mxu0 0.0
        %930 = vmatprep.subr.mxu0 0.0
        %931 = vmatpush1.msra.mxu0 %v788
        %932 = vmatprep.subr.mxu0 0.0
        %933 = vmatpush2.msra.mxu0 0.0
        %934 = vmatprep.subr.mxu0 0.0
        %935 = vmatpush2.msra.mxu0 0.0
        %936 = vmatprep.subr.mxu0 0.0
        %937 = vmatpush2.msra.mxu0 0.0
        %938 = vmatprep.subr.mxu0 0.0
        %939 = vmatpush2.msra.mxu0 0.0
        %940 = vmatprep.subr.mxu0 0.0
        %941 = vmatpush2.msra.mxu0 0.0
        %942 = vmatprep.subr.mxu0 0.0
        %943 = vmatpush2.msra.mxu0 0.0
        %944 = vmatprep.subr.mxu0 0.0
        %945 = vmatpush2.msra.mxu0 0.0
        %946 = vmatprep.subr.mxu0 0.0
        %947 = vmatpush2.msra.mxu0 0.0
        %948 = vmatprep.subr.mxu0 0.0
        %949 = vmatpush2.msra.mxu0 0.0
        %950 = vmatprep.subr.mxu0 0.0
        %951 = vmatpush2.msra.mxu0 0.0
        %952 = vmatprep.subr.mxu0 0.0
        %953 = vmatpush2.msra.mxu0 0.0
        %954 = vmatprep.subr.mxu0 0.0
        %955 = vmatpush2.msra.mxu0 0.0
        %956 = vmatprep.subr.mxu0 0.0
        %957 = vmatpush2.msra.mxu0 0.0
        %958 = vmatprep.subr.mxu0 0.0
        %959 = vmatpush2.msra.mxu0 0.0
        %960 = vmatprep.subr.mxu0 0.0
        %961 = vmatpush2.msra.mxu0 0.0
        %962 = vmatprep.subr.mxu0 0.0
        %963 = vmatpush2.msra.mxu0 0.0
        %964 = vmatprep.mubr.f32.mxu0 0.0
        %965 = vmatmul.mubr.f32.gmra.mxu0 %v898
        %v966 = vpop.f32.mrf.mxu0
        %v967 = vadd.f32 0.0, %v966
        %v968 = vpop.f32.mrf.mxu0
        %969 = vdwg.mxu0
        %v970 = vadd.f32 %v895, %v967
        %971 = vst.msk [vmem:[%s888] sm:$0xff] %vm413, %v970
        %972 = vst.msk [vmem:[%s863] sm:$0xff] %vm512, %v868
        %973 = vrot.lane.b32.xlu0 %v406, 104
        %v974 = vpop.permute.xlu0 %973
        %975 = vrot.lane.b32.xlu0 %v404, 104
        %v976 = vpop.permute.xlu0 %975
        %v977 = vsel %vm413, %v974, 0
        %v979 = vsel %vm413, %v976, 0
        %981 = vmatprep.subr.mxu0 0.0
        %982 = vmatpush1.xpose.msra.mxu0 0.0
        %983 = vmatprep.subr.mxu0 0.0
        %984 = vmatpush1.xpose.msra.mxu0 0.0
        %985 = vmatprep.subr.mxu0 0.0
        %986 = vmatpush1.xpose.msra.mxu0 0.0
        %987 = vmatprep.subr.mxu0 0.0
        %988 = vmatpush1.xpose.msra.mxu0 0.0
        %989 = vmatprep.subr.mxu0 0.0
        %990 = vmatpush1.xpose.msra.mxu0 0.0
        %991 = vmatprep.subr.mxu0 0.0
        %992 = vmatpush1.xpose.msra.mxu0 0.0
        %993 = vmatprep.subr.mxu0 0.0
        %994 = vmatpush1.xpose.msra.mxu0 0.0
        %995 = vmatprep.subr.mxu0 0.0
        %996 = vmatpush1.xpose.msra.mxu0 0.0
        %997 = vmatprep.subr.mxu0 0.0
        %998 = vmatpush1.xpose.msra.mxu0 0.0
        %999 = vmatprep.subr.mxu0 0.0
        %1000 = vmatpush1.xpose.msra.mxu0 0.0
        %1001 = vmatprep.subr.mxu0 0.0
        %1002 = vmatpush1.xpose.msra.mxu0 0.0
        %1003 = vmatprep.subr.mxu0 0.0
        %1004 = vmatpush1.xpose.msra.mxu0 0.0
        %1005 = vmatprep.subr.mxu0 0.0
        %1006 = vmatpush1.xpose.msra.mxu0 0.0
        %1007 = vmatprep.subr.mxu0 0.0
        %1008 = vmatpush1.xpose.msra.mxu0 0.0
        %1009 = vmatprep.subr.mxu0 0.0
        %1010 = vmatpush1.xpose.msra.mxu0 0.0
        %1011 = vmatprep.subr.mxu0 0.0
        %1012 = vmatpush1.xpose.msra.mxu0 %v979
        %1013 = vmatprep.subr.mxu0 0.0
        %1014 = vmatpush2.xpose.msra.mxu0 0.0
        %1015 = vmatprep.subr.mxu0 0.0
        %1016 = vmatpush2.xpose.msra.mxu0 0.0
        %1017 = vmatprep.subr.mxu0 0.0
        %1018 = vmatpush2.xpose.msra.mxu0 0.0
        %1019 = vmatprep.subr.mxu0 0.0
        %1020 = vmatpush2.xpose.msra.mxu0 0.0
        %1021 = vmatprep.subr.mxu0 0.0
        %1022 = vmatpush2.xpose.msra.mxu0 0.0
        %1023 = vmatprep.subr.mxu0 0.0
        %1024 = vmatpush2.xpose.msra.mxu0 0.0
        %1025 = vmatprep.subr.mxu0 0.0
        %1026 = vmatpush2.xpose.msra.mxu0 0.0
        %1027 = vmatprep.subr.mxu0 0.0
        %1028 = vmatpush2.xpose.msra.mxu0 0.0
        %1029 = vmatprep.subr.mxu0 0.0
        %1030 = vmatpush2.xpose.msra.mxu0 0.0
        %1031 = vmatprep.subr.mxu0 0.0
        %1032 = vmatpush2.xpose.msra.mxu0 0.0
        %1033 = vmatprep.subr.mxu0 0.0
        %1034 = vmatpush2.xpose.msra.mxu0 0.0
        %1035 = vmatprep.subr.mxu0 0.0
        %1036 = vmatpush2.xpose.msra.mxu0 0.0
        %1037 = vmatprep.subr.mxu0 0.0
        %1038 = vmatpush2.xpose.msra.mxu0 0.0
        %1039 = vmatprep.subr.mxu0 0.0
        %1040 = vmatpush2.xpose.msra.mxu0 0.0
        %1041 = vmatprep.subr.mxu0 0.0
        %1042 = vmatpush2.xpose.msra.mxu0 0.0
        %1043 = vmatprep.subr.mxu0 0.0
        %1044 = vmatpush2.xpose.msra.mxu0 0.0
        %1045 = vmatprep.mubr.f32.mxu0 0.0
        %1046 = vmatmul.mubr.f32.gmra.mxu0 %v977
        %v1047 = vpop.f32.mrf.mxu0
        %v1048 = vadd.f32 %v411, %v1047
        %v1049 = vpop.f32.mrf.mxu0
        %1050 = vdwg.mxu0
        %s1051 = scalar_lea.vmem [#allocation2], 24
        %v1052 = vld [vmem:[%s1051] sm:$0xff]
        %v1053 = vsel %vm413, %v1048, -inf
        %1054 = vmax.xlane.f32.xlu0 %v1053
        %v1055 = vpop.xlane.xlu0 %1054
        %v1056 = vmax.f32 %v1052, %v1055
        %v1057 = vsub.f32 %v1052, %v1056
        %v1058 = vmul.f32 %v1057, 1.442695
        %v1059 = vpow.pop %v1058
        %1061 = vset.pattern.permute.xlu0 0
        %1062 = vperm.xlu0 %1061, %v1056
        %v1063 = vpop.permute.xlu0 %1062
        %v1065 = vsub.f32 %v1048, %v1063
        %v1066 = vmul.f32 %v1065, 1.442695
        %v1067 = vpow.pop %v1066
        %s1068 = scalar_lea.vmem [#allocation3], 24
        %v1069 = vld [vmem:[%s1068] sm:$0xff]
        %v1070 = vmul.f32 %v1059, %v1069
        %v1071 = vsel %vm413, %v1067, 0.0
        %1072 = vadd.xlane.f32.xlu0 %v1071
        %v1073 = vpop.xlane.xlu0 %1072
        %v1074 = vadd.f32 %v1070, %v1073
        %1075 = vst.msk [vmem:[%s1068] sm:$0xff] %vm512, %v1074
        %s1076 = scalar_lea.vmem [#allocation4], 24
        %v1077 = vld [vmem:[%s1076] sm:$0xff]
        %1079 = vset.pattern.permute.xlu0 0
        %1080 = vperm.xlu0 %1079, %v1059
        %v1081 = vpop.permute.xlu0 %1080
        %v1083 = vmul.f32 %v1081, %v1077
        %v1086 = vsel %vm413, %v1067, 0
        %1088 = vmatprep.subr.mxu0 0.0
        %1089 = vmatpush1.msra.mxu0 0.0
        %1090 = vmatprep.subr.mxu0 0.0
        %1091 = vmatpush1.msra.mxu0 0.0
        %1092 = vmatprep.subr.mxu0 0.0
        %1093 = vmatpush1.msra.mxu0 0.0
        %1094 = vmatprep.subr.mxu0 0.0
        %1095 = vmatpush1.msra.mxu0 0.0
        %1096 = vmatprep.subr.mxu0 0.0
        %1097 = vmatpush1.msra.mxu0 0.0
        %1098 = vmatprep.subr.mxu0 0.0
        %1099 = vmatpush1.msra.mxu0 0.0
        %1100 = vmatprep.subr.mxu0 0.0
        %1101 = vmatpush1.msra.mxu0 0.0
        %1102 = vmatprep.subr.mxu0 0.0
        %1103 = vmatpush1.msra.mxu0 0.0
        %1104 = vmatprep.subr.mxu0 0.0
        %1105 = vmatpush1.msra.mxu0 0.0
        %1106 = vmatprep.subr.mxu0 0.0
        %1107 = vmatpush1.msra.mxu0 0.0
        %1108 = vmatprep.subr.mxu0 0.0
        %1109 = vmatpush1.msra.mxu0 0.0
        %1110 = vmatprep.subr.mxu0 0.0
        %1111 = vmatpush1.msra.mxu0 0.0
        %1112 = vmatprep.subr.mxu0 0.0
        %1113 = vmatpush1.msra.mxu0 0.0
        %1114 = vmatprep.subr.mxu0 0.0
        %1115 = vmatpush1.msra.mxu0 0.0
        %1116 = vmatprep.subr.mxu0 0.0
        %1117 = vmatpush1.msra.mxu0 0.0
        %1118 = vmatprep.subr.mxu0 0.0
        %1119 = vmatpush1.msra.mxu0 %v976
        %1120 = vmatprep.subr.mxu0 0.0
        %1121 = vmatpush2.msra.mxu0 0.0
        %1122 = vmatprep.subr.mxu0 0.0
        %1123 = vmatpush2.msra.mxu0 0.0
        %1124 = vmatprep.subr.mxu0 0.0
        %1125 = vmatpush2.msra.mxu0 0.0
        %1126 = vmatprep.subr.mxu0 0.0
        %1127 = vmatpush2.msra.mxu0 0.0
        %1128 = vmatprep.subr.mxu0 0.0
        %1129 = vmatpush2.msra.mxu0 0.0
        %1130 = vmatprep.subr.mxu0 0.0
        %1131 = vmatpush2.msra.mxu0 0.0
        %1132 = vmatprep.subr.mxu0 0.0
        %1133 = vmatpush2.msra.mxu0 0.0
        %1134 = vmatprep.subr.mxu0 0.0
        %1135 = vmatpush2.msra.mxu0 0.0
        %1136 = vmatprep.subr.mxu0 0.0
        %1137 = vmatpush2.msra.mxu0 0.0
        %1138 = vmatprep.subr.mxu0 0.0
        %1139 = vmatpush2.msra.mxu0 0.0
        %1140 = vmatprep.subr.mxu0 0.0
        %1141 = vmatpush2.msra.mxu0 0.0
        %1142 = vmatprep.subr.mxu0 0.0
        %1143 = vmatpush2.msra.mxu0 0.0
        %1144 = vmatprep.subr.mxu0 0.0
        %1145 = vmatpush2.msra.mxu0 0.0
        %1146 = vmatprep.subr.mxu0 0.0
        %1147 = vmatpush2.msra.mxu0 0.0
        %1148 = vmatprep.subr.mxu0 0.0
        %1149 = vmatpush2.msra.mxu0 0.0
        %1150 = vmatprep.subr.mxu0 0.0
        %1151 = vmatpush2.msra.mxu0 0.0
        %1152 = vmatprep.mubr.f32.mxu0 0.0
        %1153 = vmatmul.mubr.f32.gmra.mxu0 %v1086
        %v1154 = vpop.f32.mrf.mxu0
        %v1155 = vadd.f32 0.0, %v1154
        %v1156 = vpop.f32.mrf.mxu0
        %1157 = vdwg.mxu0
        %v1158 = vadd.f32 %v1083, %v1155
        %1159 = vst.msk [vmem:[%s1076] sm:$0xff] %vm413, %v1158
        %1160 = vst.msk [vmem:[%s1051] sm:$0xff] %vm512, %v1056
        // Predicated region
        $region65: #{tpu_custom_call.1} parent=43 // pred_check
          %p1161 = pneg %p385
        $region66: #{tpu_custom_call.1} parent=43 // pred_check_branch
          %1163 = sbr.rel (%p1161) target = $region68
        $region67: #{tpu_custom_call.1} parent=43 // pred_region
          %v1164 = vld [vmem:[#allocation10] sm:$0xff]
          %v1165 = vld [vmem:[#allocation10 + $0x8] sm:$0xff]
          %v1166 = vld [vmem:[#allocation10 + $0x10] sm:$0xff]
          %v1167 = vld [vmem:[#allocation10 + $0x18] sm:$0xff]
          %v1168 = vld [vmem:[#allocation4] sm:$0xff]
          %v1169 = vld [vmem:[#allocation3] sm:$0xff]
          %v1170 = vrcp.pop %v1169
          %1172 = vset.pattern.permute.xlu0 0
          %1173 = vperm.xlu0 %1172, %v1170
          %v1174 = vpop.permute.xlu0 %1173
          %v1176 = vmul.f32 %v1168, %v1174
          %v1177 = vld [vmem:[#allocation11] sm:$0xff]
          %v1179 = vsel %vm413, %v1176, 0
          %1181 = vmatprep.subr.mxu0 0.0
          %1182 = vmatpush1.msra.mxu0 0.0
          %1183 = vmatprep.subr.mxu0 0.0
          %1184 = vmatpush1.msra.mxu0 0.0
          %1185 = vmatprep.subr.mxu0 0.0
          %1186 = vmatpush1.msra.mxu0 0.0
          %1187 = vmatprep.subr.mxu0 0.0
          %1188 = vmatpush1.msra.mxu0 0.0
          %1189 = vmatprep.subr.mxu0 0.0
          %1190 = vmatpush1.msra.mxu0 0.0
          %1191 = vmatprep.subr.mxu0 0.0
          %1192 = vmatpush1.msra.mxu0 0.0
          %1193 = vmatprep.subr.mxu0 0.0
          %1194 = vmatpush1.msra.mxu0 0.0
          %1195 = vmatprep.subr.mxu0 0.0
          %1196 = vmatpush1.msra.mxu0 0.0
          %1197 = vmatprep.subr.mxu0 0.0
          %1198 = vmatpush1.msra.mxu0 0.0
          %1199 = vmatprep.subr.mxu0 0.0
          %1200 = vmatpush1.msra.mxu0 0.0
          %1201 = vmatprep.subr.mxu0 0.0
          %1202 = vmatpush1.msra.mxu0 0.0
          %1203 = vmatprep.subr.mxu0 0.0
          %1204 = vmatpush1.msra.mxu0 0.0
          %1205 = vmatprep.subr.mxu0 0.0
          %1206 = vmatpush1.msra.mxu0 0.0
          %1207 = vmatprep.subr.mxu0 0.0
          %1208 = vmatpush1.msra.mxu0 0.0
          %1209 = vmatprep.subr.mxu0 0.0
          %1210 = vmatpush1.msra.mxu0 0.0
          %1211 = vmatprep.subr.mxu0 0.0
          %1212 = vmatpush1.msra.mxu0 %v1177
          %1213 = vmatprep.subr.mxu0 0.0
          %1214 = vmatpush2.msra.mxu0 0.0
          %1215 = vmatprep.subr.mxu0 0.0
          %1216 = vmatpush2.msra.mxu0 0.0
          %1217 = vmatprep.subr.mxu0 0.0
          %1218 = vmatpush2.msra.mxu0 0.0
          %1219 = vmatprep.subr.mxu0 0.0
          %1220 = vmatpush2.msra.mxu0 0.0
          %1221 = vmatprep.subr.mxu0 0.0
          %1222 = vmatpush2.msra.mxu0 0.0
          %1223 = vmatprep.subr.mxu0 0.0
          %1224 = vmatpush2.msra.mxu0 0.0
          %1225 = vmatprep.subr.mxu0 0.0
          %1226 = vmatpush2.msra.mxu0 0.0
          %1227 = vmatprep.subr.mxu0 0.0
          %1228 = vmatpush2.msra.mxu0 0.0
          %1229 = vmatprep.subr.mxu0 0.0
          %1230 = vmatpush2.msra.mxu0 0.0
          %1231 = vmatprep.subr.mxu0 0.0
          %1232 = vmatpush2.msra.mxu0 0.0
          %1233 = vmatprep.subr.mxu0 0.0
          %1234 = vmatpush2.msra.mxu0 0.0
          %1235 = vmatprep.subr.mxu0 0.0
          %1236 = vmatpush2.msra.mxu0 0.0
          %1237 = vmatprep.subr.mxu0 0.0
          %1238 = vmatpush2.msra.mxu0 0.0
          %1239 = vmatprep.subr.mxu0 0.0
          %1240 = vmatpush2.msra.mxu0 0.0
          %1241 = vmatprep.subr.mxu0 0.0
          %1242 = vmatpush2.msra.mxu0 0.0
          %1243 = vmatprep.subr.mxu0 0.0
          %1244 = vmatpush2.msra.mxu0 0.0
          %1245 = vmatprep.mubr.f32.mxu0 0.0
          %1246 = vmatmul.mubr.f32.gmra.mxu0 %v1179
          %v1247 = vpop.f32.mrf.mxu0
          %v1248 = vadd.f32 0.0, %v1247
          %v1249 = vpop.f32.mrf.mxu0
          %1250 = vdwg.mxu0
          %vm1251 = vcmask 261120
          %v1253 = vsel %vm1251, %v403, 0
          %1255 = vmatprep.subr.mxu0 0.0
          %1256 = vmatpush1.msra.mxu0 0.0
          %1257 = vmatprep.subr.mxu0 0.0
          %1258 = vmatpush1.msra.mxu0 0.0
          %1259 = vmatprep.subr.mxu0 0.0
          %1260 = vmatpush1.msra.mxu0 0.0
          %1261 = vmatprep.subr.mxu0 0.0
          %1262 = vmatpush1.msra.mxu0 0.0
          %1263 = vmatprep.subr.mxu0 0.0
          %1264 = vmatpush1.msra.mxu0 0.0
          %1265 = vmatprep.subr.mxu0 0.0
          %1266 = vmatpush1.msra.mxu0 0.0
          %1267 = vmatprep.subr.mxu0 0.0
          %1268 = vmatpush1.msra.mxu0 0.0
          %1269 = vmatprep.subr.mxu0 0.0
          %1270 = vmatpush1.msra.mxu0 0.0
          %1271 = vmatprep.subr.mxu0 0.0
          %1272 = vmatpush1.msra.mxu0 0.0
          %1273 = vmatprep.subr.mxu0 0.0
          %1274 = vmatpush1.msra.mxu0 0.0
          %1275 = vmatprep.subr.mxu0 0.0
          %1276 = vmatpush1.msra.mxu0 0.0
          %1277 = vmatprep.subr.mxu0 0.0
          %1278 = vmatpush1.msra.mxu0 0.0
          %1279 = vmatprep.subr.mxu0 0.0
          %1280 = vmatpush1.msra.mxu0 %v1167
          %1281 = vmatprep.subr.mxu0 0.0
          %1282 = vmatpush1.msra.mxu0 %v1166
          %1283 = vmatprep.subr.mxu0 0.0
          %1284 = vmatpush1.msra.mxu0 %v1165
          %1285 = vmatprep.subr.mxu0 0.0
          %1286 = vmatpush1.msra.mxu0 %v1164
          %1287 = vmatprep.subr.mxu0 0.0
          %1288 = vmatpush2.msra.mxu0 0.0
          %1289 = vmatprep.subr.mxu0 0.0
          %1290 = vmatpush2.msra.mxu0 0.0
          %1291 = vmatprep.subr.mxu0 0.0
          %1292 = vmatpush2.msra.mxu0 0.0
          %1293 = vmatprep.subr.mxu0 0.0
          %1294 = vmatpush2.msra.mxu0 0.0
          %1295 = vmatprep.subr.mxu0 0.0
          %1296 = vmatpush2.msra.mxu0 0.0
          %1297 = vmatprep.subr.mxu0 0.0
          %1298 = vmatpush2.msra.mxu0 0.0
          %1299 = vmatprep.subr.mxu0 0.0
          %1300 = vmatpush2.msra.mxu0 0.0
          %1301 = vmatprep.subr.mxu0 0.0
          %1302 = vmatpush2.msra.mxu0 0.0
          %1303 = vmatprep.subr.mxu0 0.0
          %1304 = vmatpush2.msra.mxu0 0.0
          %1305 = vmatprep.subr.mxu0 0.0
          %1306 = vmatpush2.msra.mxu0 0.0
          %1307 = vmatprep.subr.mxu0 0.0
          %1308 = vmatpush2.msra.mxu0 0.0
          %1309 = vmatprep.subr.mxu0 0.0
          %1310 = vmatpush2.msra.mxu0 0.0
          %1311 = vmatprep.subr.mxu0 0.0
          %1312 = vmatpush2.msra.mxu0 0.0
          %1313 = vmatprep.subr.mxu0 0.0
          %1314 = vmatpush2.msra.mxu0 0.0
          %1315 = vmatprep.subr.mxu0 0.0
          %1316 = vmatpush2.msra.mxu0 0.0
          %1317 = vmatprep.subr.mxu0 0.0
          %1318 = vmatpush2.msra.mxu0 0.0
          %1319 = vmatprep.mubr.f32.mxu0 0.0
          %1320 = vmatmul.mubr.f32.gmra.mxu0 %v1253
          %v1321 = vpop.f32.mrf.mxu0
          %v1322 = vadd.f32 %v1248, %v1321
          %v1323 = vpop.f32.mrf.mxu0
          %1324 = vdwg.mxu0
          %v1325 = vld [vmem:[%s700] sm:$0xff]
          %v1326 = vld [vmem:[%s692] sm:$0xff]
          %v1327 = vrcp.pop %v1326
          %1329 = vset.pattern.permute.xlu0 0
          %1330 = vperm.xlu0 %1329, %v1327
          %v1331 = vpop.permute.xlu0 %1330
          %v1333 = vmul.f32 %v1325, %v1331
          %v1334 = vld [vmem:[#allocation11 + $0x8] sm:$0xff]
          %v1336 = vsel %vm413, %v1333, 0
          %1338 = vmatprep.subr.mxu0 0.0
          %1339 = vmatpush1.msra.mxu0 0.0
          %1340 = vmatprep.subr.mxu0 0.0
          %1341 = vmatpush1.msra.mxu0 0.0
          %1342 = vmatprep.subr.mxu0 0.0
          %1343 = vmatpush1.msra.mxu0 0.0
          %1344 = vmatprep.subr.mxu0 0.0
          %1345 = vmatpush1.msra.mxu0 0.0
          %1346 = vmatprep.subr.mxu0 0.0
          %1347 = vmatpush1.msra.mxu0 0.0
          %1348 = vmatprep.subr.mxu0 0.0
          %1349 = vmatpush1.msra.mxu0 0.0
          %1350 = vmatprep.subr.mxu0 0.0
          %1351 = vmatpush1.msra.mxu0 0.0
          %1352 = vmatprep.subr.mxu0 0.0
          %1353 = vmatpush1.msra.mxu0 0.0
          %1354 = vmatprep.subr.mxu0 0.0
          %1355 = vmatpush1.msra.mxu0 0.0
          %1356 = vmatprep.subr.mxu0 0.0
          %1357 = vmatpush1.msra.mxu0 0.0
          %1358 = vmatprep.subr.mxu0 0.0
          %1359 = vmatpush1.msra.mxu0 0.0
          %1360 = vmatprep.subr.mxu0 0.0
          %1361 = vmatpush1.msra.mxu0 0.0
          %1362 = vmatprep.subr.mxu0 0.0
          %1363 = vmatpush1.msra.mxu0 0.0
          %1364 = vmatprep.subr.mxu0 0.0
          %1365 = vmatpush1.msra.mxu0 0.0
          %1366 = vmatprep.subr.mxu0 0.0
          %1367 = vmatpush1.msra.mxu0 0.0
          %1368 = vmatprep.subr.mxu0 0.0
          %1369 = vmatpush1.msra.mxu0 %v1334
          %1370 = vmatprep.subr.mxu0 0.0
          %1371 = vmatpush2.msra.mxu0 0.0
          %1372 = vmatprep.subr.mxu0 0.0
          %1373 = vmatpush2.msra.mxu0 0.0
          %1374 = vmatprep.subr.mxu0 0.0
          %1375 = vmatpush2.msra.mxu0 0.0
          %1376 = vmatprep.subr.mxu0 0.0
          %1377 = vmatpush2.msra.mxu0 0.0
          %1378 = vmatprep.subr.mxu0 0.0
          %1379 = vmatpush2.msra.mxu0 0.0
          %1380 = vmatprep.subr.mxu0 0.0
          %1381 = vmatpush2.msra.mxu0 0.0
          %1382 = vmatprep.subr.mxu0 0.0
          %1383 = vmatpush2.msra.mxu0 0.0
          %1384 = vmatprep.subr.mxu0 0.0
          %1385 = vmatpush2.msra.mxu0 0.0
          %1386 = vmatprep.subr.mxu0 0.0
          %1387 = vmatpush2.msra.mxu0 0.0
          %1388 = vmatprep.subr.mxu0 0.0
          %1389 = vmatpush2.msra.mxu0 0.0
          %1390 = vmatprep.subr.mxu0 0.0
          %1391 = vmatpush2.msra.mxu0 0.0
          %1392 = vmatprep.subr.mxu0 0.0
          %1393 = vmatpush2.msra.mxu0 0.0
          %1394 = vmatprep.subr.mxu0 0.0
          %1395 = vmatpush2.msra.mxu0 0.0
          %1396 = vmatprep.subr.mxu0 0.0
          %1397 = vmatpush2.msra.mxu0 0.0
          %1398 = vmatprep.subr.mxu0 0.0
          %1399 = vmatpush2.msra.mxu0 0.0
          %1400 = vmatprep.subr.mxu0 0.0
          %1401 = vmatpush2.msra.mxu0 0.0
          %1402 = vmatprep.mubr.f32.mxu0 0.0
          %1403 = vmatmul.mubr.f32.gmra.mxu0 %v1336
          %v1404 = vpop.f32.mrf.mxu0
          %v1405 = vadd.f32 0.0, %v1404
          %v1406 = vpop.f32.mrf.mxu0
          %1407 = vdwg.mxu0
          %v1408 = vadd.f32 %v1322, %v1405
          %v1409 = vld [vmem:[%s888] sm:$0xff]
          %v1410 = vld [vmem:[%s880] sm:$0xff]
          %v1411 = vrcp.pop %v1410
          %1413 = vset.pattern.permute.xlu0 0
          %1414 = vperm.xlu0 %1413, %v1411
          %v1415 = vpop.permute.xlu0 %1414
          %v1417 = vmul.f32 %v1409, %v1415
          %v1418 = vld [vmem:[#allocation11 + $0x10] sm:$0xff]
          %v1420 = vsel %vm413, %v1417, 0
          %1422 = vmatprep.subr.mxu0 0.0
          %1423 = vmatpush1.msra.mxu0 0.0
          %1424 = vmatprep.subr.mxu0 0.0
          %1425 = vmatpush1.msra.mxu0 0.0
          %1426 = vmatprep.subr.mxu0 0.0
          %1427 = vmatpush1.msra.mxu0 0.0
          %1428 = vmatprep.subr.mxu0 0.0
          %1429 = vmatpush1.msra.mxu0 0.0
          %1430 = vmatprep.subr.mxu0 0.0
          %1431 = vmatpush1.msra.mxu0 0.0
          %1432 = vmatprep.subr.mxu0 0.0
          %1433 = vmatpush1.msra.mxu0 0.0
          %1434 = vmatprep.subr.mxu0 0.0
          %1435 = vmatpush1.msra.mxu0 0.0
          %1436 = vmatprep.subr.mxu0 0.0
          %1437 = vmatpush1.msra.mxu0 0.0
          %1438 = vmatprep.subr.mxu0 0.0
          %1439 = vmatpush1.msra.mxu0 0.0
          %1440 = vmatprep.subr.mxu0 0.0
          %1441 = vmatpush1.msra.mxu0 0.0
          %1442 = vmatprep.subr.mxu0 0.0
          %1443 = vmatpush1.msra.mxu0 0.0
          %1444 = vmatprep.subr.mxu0 0.0
          %1445 = vmatpush1.msra.mxu0 0.0
          %1446 = vmatprep.subr.mxu0 0.0
          %1447 = vmatpush1.msra.mxu0 0.0
          %1448 = vmatprep.subr.mxu0 0.0
          %1449 = vmatpush1.msra.mxu0 0.0
          %1450 = vmatprep.subr.mxu0 0.0
          %1451 = vmatpush1.msra.mxu0 0.0
          %1452 = vmatprep.subr.mxu0 0.0
          %1453 = vmatpush1.msra.mxu0 %v1418
          %1454 = vmatprep.subr.mxu0 0.0
          %1455 = vmatpush2.msra.mxu0 0.0
          %1456 = vmatprep.subr.mxu0 0.0
          %1457 = vmatpush2.msra.mxu0 0.0
          %1458 = vmatprep.subr.mxu0 0.0
          %1459 = vmatpush2.msra.mxu0 0.0
          %1460 = vmatprep.subr.mxu0 0.0
          %1461 = vmatpush2.msra.mxu0 0.0
          %1462 = vmatprep.subr.mxu0 0.0
          %1463 = vmatpush2.msra.mxu0 0.0
          %1464 = vmatprep.subr.mxu0 0.0
          %1465 = vmatpush2.msra.mxu0 0.0
          %1466 = vmatprep.subr.mxu0 0.0
          %1467 = vmatpush2.msra.mxu0 0.0
          %1468 = vmatprep.subr.mxu0 0.0
          %1469 = vmatpush2.msra.mxu0 0.0
          %1470 = vmatprep.subr.mxu0 0.0
          %1471 = vmatpush2.msra.mxu0 0.0
          %1472 = vmatprep.subr.mxu0 0.0
          %1473 = vmatpush2.msra.mxu0 0.0
          %1474 = vmatprep.subr.mxu0 0.0
          %1475 = vmatpush2.msra.mxu0 0.0
          %1476 = vmatprep.subr.mxu0 0.0
          %1477 = vmatpush2.msra.mxu0 0.0
          %1478 = vmatprep.subr.mxu0 0.0
          %1479 = vmatpush2.msra.mxu0 0.0
          %1480 = vmatprep.subr.mxu0 0.0
          %1481 = vmatpush2.msra.mxu0 0.0
          %1482 = vmatprep.subr.mxu0 0.0
          %1483 = vmatpush2.msra.mxu0 0.0
          %1484 = vmatprep.subr.mxu0 0.0
          %1485 = vmatpush2.msra.mxu0 0.0
          %1486 = vmatprep.mubr.f32.mxu0 0.0
          %1487 = vmatmul.mubr.f32.gmra.mxu0 %v1420
          %v1488 = vpop.f32.mrf.mxu0
          %v1489 = vadd.f32 0.0, %v1488
          %v1490 = vpop.f32.mrf.mxu0
          %1491 = vdwg.mxu0
          %v1492 = vadd.f32 %v1408, %v1489
          %v1493 = vld [vmem:[%s1076] sm:$0xff]
          %v1494 = vld [vmem:[%s1068] sm:$0xff]
          %v1495 = vrcp.pop %v1494
          %1497 = vset.pattern.permute.xlu0 0
          %1498 = vperm.xlu0 %1497, %v1495
          %v1499 = vpop.permute.xlu0 %1498
          %v1501 = vmul.f32 %v1493, %v1499
          %v1502 = vld [vmem:[#allocation11 + $0x18] sm:$0xff]
          %v1504 = vsel %vm413, %v1501, 0
          %1506 = vmatprep.subr.mxu0 0.0
          %1507 = vmatpush1.msra.mxu0 0.0
          %1508 = vmatprep.subr.mxu0 0.0
          %1509 = vmatpush1.msra.mxu0 0.0
          %1510 = vmatprep.subr.mxu0 0.0
          %1511 = vmatpush1.msra.mxu0 0.0
          %1512 = vmatprep.subr.mxu0 0.0
          %1513 = vmatpush1.msra.mxu0 0.0
          %1514 = vmatprep.subr.mxu0 0.0
          %1515 = vmatpush1.msra.mxu0 0.0
          %1516 = vmatprep.subr.mxu0 0.0
          %1517 = vmatpush1.msra.mxu0 0.0
          %1518 = vmatprep.subr.mxu0 0.0
          %1519 = vmatpush1.msra.mxu0 0.0
          %1520 = vmatprep.subr.mxu0 0.0
          %1521 = vmatpush1.msra.mxu0 0.0
          %1522 = vmatprep.subr.mxu0 0.0
          %1523 = vmatpush1.msra.mxu0 0.0
          %1524 = vmatprep.subr.mxu0 0.0
          %1525 = vmatpush1.msra.mxu0 0.0
          %1526 = vmatprep.subr.mxu0 0.0
          %1527 = vmatpush1.msra.mxu0 0.0
          %1528 = vmatprep.subr.mxu0 0.0
          %1529 = vmatpush1.msra.mxu0 0.0
          %1530 = vmatprep.subr.mxu0 0.0
          %1531 = vmatpush1.msra.mxu0 0.0
          %1532 = vmatprep.subr.mxu0 0.0
          %1533 = vmatpush1.msra.mxu0 0.0
          %1534 = vmatprep.subr.mxu0 0.0
          %1535 = vmatpush1.msra.mxu0 0.0
          %1536 = vmatprep.subr.mxu0 0.0
          %1537 = vmatpush1.msra.mxu0 %v1502
          %1538 = vmatprep.subr.mxu0 0.0
          %1539 = vmatpush2.msra.mxu0 0.0
          %1540 = vmatprep.subr.mxu0 0.0
          %1541 = vmatpush2.msra.mxu0 0.0
          %1542 = vmatprep.subr.mxu0 0.0
          %1543 = vmatpush2.msra.mxu0 0.0
          %1544 = vmatprep.subr.mxu0 0.0
          %1545 = vmatpush2.msra.mxu0 0.0
          %1546 = vmatprep.subr.mxu0 0.0
          %1547 = vmatpush2.msra.mxu0 0.0
          %1548 = vmatprep.subr.mxu0 0.0
          %1549 = vmatpush2.msra.mxu0 0.0
          %1550 = vmatprep.subr.mxu0 0.0
          %1551 = vmatpush2.msra.mxu0 0.0
          %1552 = vmatprep.subr.mxu0 0.0
          %1553 = vmatpush2.msra.mxu0 0.0
          %1554 = vmatprep.subr.mxu0 0.0
          %1555 = vmatpush2.msra.mxu0 0.0
          %1556 = vmatprep.subr.mxu0 0.0
          %1557 = vmatpush2.msra.mxu0 0.0
          %1558 = vmatprep.subr.mxu0 0.0
          %1559 = vmatpush2.msra.mxu0 0.0
          %1560 = vmatprep.subr.mxu0 0.0
          %1561 = vmatpush2.msra.mxu0 0.0
          %1562 = vmatprep.subr.mxu0 0.0
          %1563 = vmatpush2.msra.mxu0 0.0
          %1564 = vmatprep.subr.mxu0 0.0
          %1565 = vmatpush2.msra.mxu0 0.0
          %1566 = vmatprep.subr.mxu0 0.0
          %1567 = vmatpush2.msra.mxu0 0.0
          %1568 = vmatprep.subr.mxu0 0.0
          %1569 = vmatpush2.msra.mxu0 0.0
          %1570 = vmatprep.mubr.f32.mxu0 0.0
          %1571 = vmatmul.mubr.f32.gmra.mxu0 %v1504
          %v1572 = vpop.f32.mrf.mxu0
          %v1573 = vadd.f32 0.0, %v1572
          %v1574 = vpop.f32.mrf.mxu0
          %1575 = vdwg.mxu0
          %v1576 = vadd.f32 %v1492, %v1573
          %v1577 = vld [vmem:[%s5] sm:$0x1]
          %v1579 = vlaneseq
          %v1580 = vshrl.u32 %v1579, 7
          %v1581 = vsub.s32 0, %v1580
          %v1582 = vrot.slane %v1577, %v1581
          %v1584 = vadd.f32 %v1576, %v1582
          %v1585 = vxor.u32 %v1584, 2147483648
          %v1586 = vmul.f32 %v1585, 1.442695
          %v1587 = vpow.pop %v1586
          %v1588 = vadd.f32 %v1587, 1.0
          %v1589 = vrcp.pop %v1588
          %v1590 = vmul.f32 1.0, %v1589
          %v1591 = vtanh.pop %v1584
          %v1592 = vmul.f32 %v1590, %v1591
          %1593 = vst.msk [vmem:[%s378] sm:$0xff] %vm1251, %v1592
        $region68: #{tpu_custom_call.1} parent=43 // pred_fallthru
          _
        %s1594 = sand.u32 %s203, 1
        %s1595 = scalar_lea.sflag [#allocation7], %s1594
        %s1596 = sand.u32 %s203, 1
        %s1597 = smul.addr %s1596, 8
        %s1598 = scalar_lea.vmem [#allocation13], %s1597
        // Predicated region
        $region69: #{tpu_custom_call.1} parent=43 // pred_check
          %p1599 = pneg %p213
        $region70: #{tpu_custom_call.1} parent=43 // pred_check_branch
          %1601 = sbr.rel (%p1599) target = $region72
        $region71: #{tpu_custom_call.1} parent=43 // pred_region
          %s1603 = ssub.s32 128, 128
          %1604 = vsyncadd %s1595, %s1603
          %s1605 = sadd.s32 %s33, %s32
          %s1606 = smul.addr %s1605, 128
          %s1607 = scalar_lea.hbm %s6, %s1606
          %s1609 = sshll.u32 %s1598, 4
          %s1610 = int_to_ptr.vmem [resolvable:$true] %s1609
          %1612 = dma.vmem_to_hbm [thread:$0]  %s1610, 128, %s1607, %s1595
        $region72: #{tpu_custom_call.1} parent=43 // pred_fallthru
          _
      $region44: #{tpu_custom_call.1} parent=5 // pred_fallthru
        _
      %p1613 = scmp.le.s32.totalorder 2, %s22
      // Predicated region
      $region73: #{tpu_custom_call.1} parent=5 // pred_check
        %p1614 = pneg %p1613
      $region74: #{tpu_custom_call.1} parent=5 // pred_check_branch
        %1616 = sbr.rel (%p1614) target = $region76
      $region75: #{tpu_custom_call.1} parent=5 // pred_region
        %s1617 = ssub.s32 %s22, 2
        // Predicated region
        $region77: #{tpu_custom_call.1} parent=75 // pred_check
          %p1618 = pneg %p219
        $region78: #{tpu_custom_call.1} parent=75 // pred_check_branch
          %1620 = sbr.rel (%p1618) target = $region80
        $region79: #{tpu_custom_call.1} parent=75 // pred_region
          %s1621 = sand.u32 %s204, 1
          %s1622 = scalar_lea.sflag [#allocation7], %s1621
          %s1623 = sand.u32 %s204, 1
          %s1624 = smul.addr %s1623, 8
          %s1625 = scalar_lea.vmem [#allocation13], %s1624
          %1626 = dma.done %s1622, 128
        $region80: #{tpu_custom_call.1} parent=75 // pred_fallthru
          _
      $region76: #{tpu_custom_call.1} parent=5 // pred_fallthru
        _
    $region6: #{tpu_custom_call.1} parent=1 // loop_footer
      %s26 = sadd.s32 1, %s22
    $region7: #{tpu_custom_call.1} parent=1 // loop_footer_branch
      %21 = sbr.rel target = $region3
    $region8: #{tpu_custom_call.1} parent=1 // loop_exit
      _
    %1627 = vsyncpa [#allocation6], 1
    %s1628 = scalar_lea.sflag [#allocation6], 1
    %1629 = vsyncpa %s1628, 1
    %1630 = vsyncpa [#allocation9], 1
    %s1631 = scalar_lea.sflag [#allocation9], 1
    %1632 = vsyncpa %s1631, 1
    %1633 = vsyncpa [#allocation12], 1
    %1634 = vsyncpa [#allocation7], 1
    %s1635 = scalar_lea.sflag [#allocation7], 1
    %1636 = vsyncpa %s1635, 1

// kernel: tpu_custom_call.1
$region0: #{tpu_custom_call.1}
  #allocation0 [shape = 'u32[]', space=smem, size = 0x4, offset = 0x4, fixed_abs, tag = 'smem constant byte address 0x4 - core index']
  #allocation1 [shape = 'u32[144,128]{1,0:T(1,128)}', space=vmem, size = 0x12000, scoped, tag = 'internal scratch']
  #allocation2 [shape = 'f32[4,8,1]{2,1,0:T(8,128)}', space=vmem, size = 0x4000, scoped, tag = 'scratch operand']
  #allocation3 [shape = 'f32[4,8,1]{2,1,0:T(8,128)}', space=vmem, size = 0x4000, scoped, tag = 'scratch operand']
  #allocation4 [shape = 'f32[4,8,8]{2,1,0:T(8,128)}', space=vmem, size = 0x4000, scoped, tag = 'scratch operand']
  %s0 = inlined_call_operand.hbm [shape: f32[2,8,32], index: 0, kind: input, shape index: {}]
  %s1 = inlined_call_operand.hbm [shape: f32[2,8,32], index: 1, kind: input, shape index: {}]
  %s2 = inlined_call_operand.vmem [shape: f32[2,1,8], index: 2, kind: input, shape index: {}]
  %s3 = inlined_call_operand.hbm [shape: f32[32,32], index: 3, kind: input, shape index: {}]
  %s4 = inlined_call_operand.hbm [shape: f32[32,32], index: 4, kind: input, shape index: {}]
  %s5 = inlined_call_operand.vmem [shape: f32[1,32], index: 5, kind: input, shape index: {}]
  %s6 = inlined_call_operand.hbm [shape: f32[2,8,32], index: 6, kind: output, shape index: {}]
  %s7 = sld [smem:[#allocation0]]
  $region81: #{tpu_custom_call.1} parent=0
    _
  %s9 = ssub.s32 1, %s7
  %s10 = scalar_select 0, %s9, %s7
  $region1: #{tpu_custom_call.1} parent=0
    #allocation5 [shape = 'u8[8192]{0}', space=vmem, size = 0x2000, scoped, tag = 'input window, operand 0']
    #allocation6 [shape = 's32[2]{0}', space=sflag, size = 0x8, scoped, tag = 'scoped memory for tpu_custom_call.1']
    #allocation7 [shape = 's32[2]{0}', space=sflag, size = 0x8, scoped, tag = 'scoped memory for tpu_custom_call.1']
    #allocation8 [shape = 'u8[8192]{0}', space=vmem, size = 0x2000, scoped, tag = 'input window, operand 1']
    #allocation9 [shape = 's32[2]{0}', space=sflag, size = 0x8, scoped, tag = 'scoped memory for tpu_custom_call.1']
    #allocation10 [shape = 'u8[16384]{0}', space=vmem, size = 0x4000, scoped, tag = 'input window, operand 3, single buffered']
    #allocation11 [shape = 'u8[16384]{0}', space=vmem, size = 0x4000, scoped, tag = 'input window, operand 4, single buffered']
    #allocation12 [shape = 's32[1]{0}', space=sflag, size = 0x4, scoped, tag = 'scoped memory for tpu_custom_call.1']
    #allocation13 [shape = 'u8[8192]{0}', space=vmem, size = 0x2000, scoped, tag = 'output window, operand 0']
    %11 = vsyncpa [#allocation6], 0
    %s12 = scalar_lea.sflag [#allocation6], 1
    %13 = vsyncpa %s12, 0
    %14 = vsyncpa [#allocation9], 0
    %s15 = scalar_lea.sflag [#allocation9], 1
    %16 = vsyncpa %s15, 0
    %17 = vsyncpa [#allocation12], 0
    %18 = vsyncpa [#allocation7], 0
    %s19 = scalar_lea.sflag [#allocation7], 1
    %20 = vsyncpa %s19, 0
    loop: start=0, step=1, limit=4
    $region2: #{tpu_custom_call.1} parent=1 // loop_pre_header
      _
    $region3: #{tpu_custom_call.1} parent=1 // loop_header
      %s22 = sphi 0, %s26
      %p23 = scmp.ge.s32.totalorder %s22, 4
      %s29 = sphi 0, %s48
      %s30 = sphi 0, %s44
      %s31 = sphi 0, %s40
      %s32 = sphi 0, %s29
      %s33 = sphi 0, %s30
      %s34 = sphi 0, %s31
      %s35 = sphi 0, %s32
      %s36 = sphi 0, %s33
      %s37 = sphi 0, %s34
      %s53 = sphi 0, %s55
      %s56 = sphi 0, %s53
      %s57 = sphi 0, %s56
      %s73 = sphi 0, %s57
      %s81 = sphi 0, %s83
      %s84 = sphi 0, %s81
      %s85 = sphi 0, %s84
      %s101 = sphi 0, %s85
      %s109 = sphi 0, %s111
      %s112 = sphi 0, %s109
      %s113 = sphi 0, %s112
      %s129 = sphi 0, %s113
      %s133 = sphi 0, %s133
      %s135 = sphi 0, %s133
      %s136 = sphi 0, %s135
      %s150 = sphi 0, %s136
      %s154 = sphi 0, %s154
      %s156 = sphi 0, %s154
      %s157 = sphi 0, %s156
      %s171 = sphi 0, %s157
      %s175 = sphi 0, %s175
      %s177 = sphi 0, %s175
      %s178 = sphi 0, %s177
      %s192 = sphi 0, %s178
      %s200 = sphi 0, %s202
      %s203 = sphi 0, %s200
      %s204 = sphi 0, %s203
      %s220 = sphi 0, %s204
    $region4: #{tpu_custom_call.1} parent=1 // loop_header_branch
      %25 = sbr.rel (%p23) target = $region8
    $region5: #{tpu_custom_call.1} parent=1 // loop_body
      %s27 = ssub.s32 %s22, 1
      %s28 = ssub.s32 %s22, 2
      %s38 = sadd.s32 1, %s31
      %p39 = scmp.ge.s32.totalorder %s38, 1
      %s40 = scalar_select %p39, 0, %s38
      %s41 = sadd.s32 1, %s30
      %s42 = scalar_select %p39, %s41, %s30
      %p43 = scmp.ge.s32.totalorder %s42, 1
      %s44 = scalar_select %p43, 0, %s42
      %s45 = sadd.s32 1, %s29
      %s46 = scalar_select %p43, %s45, %s29
      %p47 = scmp.ge.s32.totalorder %s46, 2
      %s48 = scalar_select %p47, 0, %s46
      %s49 = ssub.s32 %s29, %s48
      %s50 = ssub.s32 %s30, %s44
      %s51 = sor.u32 %s49, %s50
      %p52 = scmp.eq.s32.totalorder %s51, 0
      %s54 = sadd.s32 %s53, 1
      %s55 = scalar_select %p52, %s53, %s54
      %p58 = pneg %p52
      %p59 = scmp.eq.s32.totalorder %s22, 1
      %p60 = por %p58, %p59
      %p61 = scmp.ne.s32.totalorder %s53, %s56
      %p62 = scmp.eq.s32.totalorder %s22, 0
      %p63 = por %p61, %p62
      %p64 = scmp.ne.s32.totalorder %s53, %s56
      %p65 = scmp.eq.s32.totalorder %s27, 1
      %p66 = por %p64, %p65
      %p67 = scmp.ne.s32.totalorder %s56, %s57
      %p68 = scmp.eq.s32.totalorder %s27, 0
      %p69 = por %p67, %p68
      %p70 = scmp.ne.s32.totalorder %s56, %s57
      %p71 = scmp.eq.s32.totalorder %s28, 1
      %p72 = por %p70, %p71
      %p74 = scmp.ne.s32.totalorder %s57, %s73
      %p75 = scmp.eq.s32.totalorder %s28, 0
      %p76 = por %p74, %p75
      %s77 = ssub.s32 %s29, %s48
      %s78 = ssub.s32 %s31, %s40
      %s79 = sor.u32 %s77, %s78
      %p80 = scmp.eq.s32.totalorder %s79, 0
      %s82 = sadd.s32 %s81, 1
      %s83 = scalar_select %p80, %s81, %s82
      %p86 = pneg %p80
      %p87 = scmp.eq.s32.totalorder %s22, 1
      %p88 = por %p86, %p87
      %p89 = scmp.ne.s32.totalorder %s81, %s84
      %p90 = scmp.eq.s32.totalorder %s22, 0
      %p91 = por %p89, %p90
      %p92 = scmp.ne.s32.totalorder %s81, %s84
      %p93 = scmp.eq.s32.totalorder %s27, 1
      %p94 = por %p92, %p93
      %p95 = scmp.ne.s32.totalorder %s84, %s85
      %p96 = scmp.eq.s32.totalorder %s27, 0
      %p97 = por %p95, %p96
      %p98 = scmp.ne.s32.totalorder %s84, %s85
      %p99 = scmp.eq.s32.totalorder %s28, 1
      %p100 = por %p98, %p99
      %p102 = scmp.ne.s32.totalorder %s85, %s101
      %p103 = scmp.eq.s32.totalorder %s28, 0
      %p104 = por %p102, %p103
      %s105 = ssub.s32 %s29, %s48
      %s106 = ssub.s32 %s31, %s40
      %s107 = sor.u32 %s105, %s106
      %p108 = scmp.eq.s32.totalorder %s107, 0
      %s110 = sadd.s32 %s109, 1
      %s111 = scalar_select %p108, %s109, %s110
      %p114 = pneg %p108
      %p115 = scmp.eq.s32.totalorder %s22, 1
      %p116 = por %p114, %p115
      %p117 = scmp.ne.s32.totalorder %s109, %s112
      %p118 = scmp.eq.s32.totalorder %s22, 0
      %p119 = por %p117, %p118
      %p120 = scmp.ne.s32.totalorder %s109, %s112
      %p121 = scmp.eq.s32.totalorder %s27, 1
      %p122 = por %p120, %p121
      %p123 = scmp.ne.s32.totalorder %s112, %s113
      %p124 = scmp.eq.s32.totalorder %s27, 0
      %p125 = por %p123, %p124
      %p126 = scmp.ne.s32.totalorder %s112, %s113
      %p127 = scmp.eq.s32.totalorder %s28, 1
      %p128 = por %p126, %p127
      %p130 = scmp.ne.s32.totalorder %s113, %s129
      %p131 = scmp.eq.s32.totalorder %s28, 0
      %p132 = por %p130, %p131
      %s134 = sadd.s32 %s133, 1
      %p137 = scmp.eq.s32.totalorder %s22, 1
      %p138 = scmp.ne.s32.totalorder %s133, %s135
      %p139 = scmp.eq.s32.totalorder %s22, 0
      %p140 = por %p138, %p139
      %p141 = scmp.ne.s32.totalorder %s133, %s135
      %p142 = scmp.eq.s32.totalorder %s27, 1
      %p143 = por %p141, %p142
      %p144 = scmp.ne.s32.totalorder %s135, %s136
      %p145 = scmp.eq.s32.totalorder %s27, 0
      %p146 = por %p144, %p145
      %p147 = scmp.ne.s32.totalorder %s135, %s136
      %p148 = scmp.eq.s32.totalorder %s28, 1
      %p149 = por %p147, %p148
      %p151 = scmp.ne.s32.totalorder %s136, %s150
      %p152 = scmp.eq.s32.totalorder %s28, 0
      %p153 = por %p151, %p152
      %s155 = sadd.s32 %s154, 1
      %p158 = scmp.eq.s32.totalorder %s22, 1
      %p159 = scmp.ne.s32.totalorder %s154, %s156
      %p160 = scmp.eq.s32.totalorder %s22, 0
      %p161 = por %p159, %p160
      %p162 = scmp.ne.s32.totalorder %s154, %s156
      %p163 = scmp.eq.s32.totalorder %s27, 1
      %p164 = por %p162, %p163
      %p165 = scmp.ne.s32.totalorder %s156, %s157
      %p166 = scmp.eq.s32.totalorder %s27, 0
      %p167 = por %p165, %p166
      %p168 = scmp.ne.s32.totalorder %s156, %s157
      %p169 = scmp.eq.s32.totalorder %s28, 1
      %p170 = por %p168, %p169
      %p172 = scmp.ne.s32.totalorder %s157, %s171
      %p173 = scmp.eq.s32.totalorder %s28, 0
      %p174 = por %p172, %p173
      %s176 = sadd.s32 %s175, 1
      %p179 = scmp.eq.s32.totalorder %s22, 1
      %p180 = scmp.ne.s32.totalorder %s175, %s177
      %p181 = scmp.eq.s32.totalorder %s22, 0
      %p182 = por %p180, %p181
      %p183 = scmp.ne.s32.totalorder %s175, %s177
      %p184 = scmp.eq.s32.totalorder %s27, 1
      %p185 = por %p183, %p184
      %p186 = scmp.ne.s32.totalorder %s177, %s178
      %p187 = scmp.eq.s32.totalorder %s27, 0
      %p188 = por %p186, %p187
      %p189 = scmp.ne.s32.totalorder %s177, %s178
      %p190 = scmp.eq.s32.totalorder %s28, 1
      %p191 = por %p189, %p190
      %p193 = scmp.ne.s32.totalorder %s178, %s192
      %p194 = scmp.eq.s32.totalorder %s28, 0
      %p195 = por %p193, %p194
      %s196 = ssub.s32 %s29, %s48
      %s197 = ssub.s32 %s30, %s44
      %s198 = sor.u32 %s196, %s197
      %p199 = scmp.eq.s32.totalorder %s198, 0
      %s201 = sadd.s32 %s200, 1
      %s202 = scalar_select %p199, %s200, %s201
      %p205 = pneg %p199
      %p206 = scmp.eq.s32.totalorder %s22, 1
      %p207 = por %p205, %p206
      %p208 = scmp.ne.s32.totalorder %s200, %s203
      %p209 = scmp.eq.s32.totalorder %s22, 0
      %p210 = por %p208, %p209
      %p211 = scmp.ne.s32.totalorder %s200, %s203
      %p212 = scmp.eq.s32.totalorder %s27, 1
      %p213 = por %p211, %p212
      %p214 = scmp.ne.s32.totalorder %s203, %s204
      %p215 = scmp.eq.s32.totalorder %s27, 0
      %p216 = por %p214, %p215
      %p217 = scmp.ne.s32.totalorder %s203, %s204
      %p218 = scmp.eq.s32.totalorder %s28, 1
      %p219 = por %p217, %p218
      %p221 = scmp.ne.s32.totalorder %s204, %s220
      %p222 = scmp.eq.s32.totalorder %s28, 0
      %p223 = por %p221, %p222
      %p224 = scmp.le.s32.totalorder 1, %s22
      %p225 = scmp.lt.s32.totalorder %s22, 3
      %p226 = pnand %p224, %p225
      %p227 = pneg %p226
      // Predicated region
      $region9: #{tpu_custom_call.1} parent=5 // pred_check
        _
      $region10: #{tpu_custom_call.1} parent=5 // pred_check_branch
        %229 = sbr.rel (%p226) target = $region12
      $region11: #{tpu_custom_call.1} parent=5 // pred_region
        %s230 = ssub.s32 %s22, 1
        // Predicated region
        $region13: #{tpu_custom_call.1} parent=11 // pred_check
          %p231 = pneg %p146
        $region14: #{tpu_custom_call.1} parent=11 // pred_check_branch
          %233 = sbr.rel (%p231) target = $region16
        $region15: #{tpu_custom_call.1} parent=11 // pred_region
          %s235 = ssub.s32 512, 512
          %236 = vsyncadd [#allocation9], %s235
          %s237 = sshll.u32 [#allocation10], 4
          %s238 = int_to_ptr.vmem [resolvable:$true] %s237
          %243 = dma.hbm_to_vmem [thread:$0]  %s3, 512, %s238, [#allocation9], 128, 128, 8
        $region16: #{tpu_custom_call.1} parent=11 // pred_fallthru
          _
        // Predicated region
        $region17: #{tpu_custom_call.1} parent=11 // pred_check
          %p244 = pneg %p167
        $region18: #{tpu_custom_call.1} parent=11 // pred_check_branch
          %246 = sbr.rel (%p244) target = $region20
        $region19: #{tpu_custom_call.1} parent=11 // pred_region
          %s248 = ssub.s32 512, 512
          %249 = vsyncadd [#allocation12], %s248
          %s250 = sshll.u32 [#allocation11], 4
          %s251 = int_to_ptr.vmem [resolvable:$true] %s250
          %256 = dma.hbm_to_vmem [thread:$0]  %s4, 512, %s251, [#allocation12], 128, 128, 8
        $region20: #{tpu_custom_call.1} parent=11 // pred_fallthru
          _
        // Predicated region
        $region21: #{tpu_custom_call.1} parent=11 // pred_check
          %p257 = pneg %p188
        $region22: #{tpu_custom_call.1} parent=11 // pred_check_branch
          %259 = sbr.rel (%p257) target = $region24
        $region23: #{tpu_custom_call.1} parent=11 // pred_region
          _
        $region24: #{tpu_custom_call.1} parent=11 // pred_fallthru
          _
      $region12: #{tpu_custom_call.1} parent=5 // pred_fallthru
        _
      %p260 = scmp.lt.s32.totalorder %s22, 2
      // Predicated region
      $region25: #{tpu_custom_call.1} parent=5 // pred_check
        %p261 = pneg %p260
      $region26: #{tpu_custom_call.1} parent=5 // pred_check_branch
        %263 = sbr.rel (%p261) target = $region28
      $region27: #{tpu_custom_call.1} parent=5 // pred_region
        // Predicated region
        $region29: #{tpu_custom_call.1} parent=27 // pred_check
          %p264 = pneg %p63
        $region30: #{tpu_custom_call.1} parent=27 // pred_check_branch
          %266 = sbr.rel (%p264) target = $region32
        $region31: #{tpu_custom_call.1} parent=27 // pred_region
          %s267 = sand.u32 %s53, 1
          %s268 = scalar_lea.sflag [#allocation6], %s267
          %s269 = sand.u32 %s53, 1
          %s270 = smul.addr %s269, 8
          %s271 = scalar_lea.vmem [#allocation5], %s270
          %s273 = ssub.s32 128, 128
          %274 = vsyncadd %s268, %s273
          %s275 = sadd.s32 %s30, %s29
          %s276 = smul.addr %s275, 128
          %s277 = scalar_lea.hbm %s0, %s276
          %s279 = sshll.u32 %s271, 4
          %s280 = int_to_ptr.vmem [resolvable:$true] %s279
          %282 = dma.hbm_to_vmem [thread:$0]  %s277, 128, %s280, %s268
        $region32: #{tpu_custom_call.1} parent=27 // pred_fallthru
          _
        // Predicated region
        $region33: #{tpu_custom_call.1} parent=27 // pred_check
          %p283 = pneg %p91
        $region34: #{tpu_custom_call.1} parent=27 // pred_check_branch
          %285 = sbr.rel (%p283) target = $region36
        $region35: #{tpu_custom_call.1} parent=27 // pred_region
          %s286 = sand.u32 %s22, 1
          %s287 = scalar_lea.sflag [#allocation9], %s286
          %s288 = sand.u32 %s81, 1
          %s289 = smul.addr %s288, 8
          %s290 = scalar_lea.vmem [#allocation8], %s289
          %s292 = ssub.s32 128, 128
          %293 = vsyncadd %s287, %s292
          %s294 = sadd.s32 %s31, %s29
          %s295 = smul.addr %s294, 128
          %s296 = scalar_lea.hbm %s1, %s295
          %s298 = sshll.u32 %s290, 4
          %s299 = int_to_ptr.vmem [resolvable:$true] %s298
          %301 = dma.hbm_to_vmem [thread:$0]  %s296, 128, %s299, %s287
        $region36: #{tpu_custom_call.1} parent=27 // pred_fallthru
          _
        // Predicated region
        $region37: #{tpu_custom_call.1} parent=27 // pred_check
          %p302 = pneg %p119
        $region38: #{tpu_custom_call.1} parent=27 // pred_check_branch
          %304 = sbr.rel (%p302) target = $region40
        $region39: #{tpu_custom_call.1} parent=27 // pred_region
          %p305 = scmp.lt.s32.totalorder %s29, 1
          %s306 = scalar_select %p305, %s29, 1
          %p307 = scmp.lt.s32.totalorder %s31, 0
          %s308 = scalar_select %p307, %s31, 0
          %s309 = sadd.s32 %s308, %s306
          %s310 = scalar_lea.vmem %s2, %s309
        $region40: #{tpu_custom_call.1} parent=27 // pred_fallthru
          _
      $region28: #{tpu_custom_call.1} parent=5 // pred_fallthru
        _
      %p311 = scmp.le.s32.totalorder 1, %s22
      %p312 = scmp.lt.s32.totalorder %s22, 3
      %p313 = pnand %p311, %p312
      %p314 = pneg %p313
      // Predicated region
      $region41: #{tpu_custom_call.1} parent=5 // pred_check
        _
      $region42: #{tpu_custom_call.1} parent=5 // pred_check_branch
        %316 = sbr.rel (%p313) target = $region44
      $region43: #{tpu_custom_call.1} parent=5 // pred_region
        %s317 = ssub.s32 %s22, 1
        %s318 = sand.u32 %s56, 1
        %s319 = scalar_lea.sflag [#allocation6], %s318
        %s320 = sand.u32 %s56, 1
        %s321 = smul.addr %s320, 8
        %s322 = scalar_lea.vmem [#allocation5], %s321
        // Predicated region
        $region45: #{tpu_custom_call.1} parent=43 // pred_check
          %p323 = pneg %p69
        $region46: #{tpu_custom_call.1} parent=43 // pred_check_branch
          %325 = sbr.rel (%p323) target = $region48
        $region47: #{tpu_custom_call.1} parent=43 // pred_region
          %326 = dma.done %s319, 128
        $region48: #{tpu_custom_call.1} parent=43 // pred_fallthru
          _
        %s327 = sand.u32 %s27, 1
        %s328 = scalar_lea.sflag [#allocation9], %s327
        %s329 = sand.u32 %s84, 1
        %s330 = smul.addr %s329, 8
        %s331 = scalar_lea.vmem [#allocation8], %s330
        // Predicated region
        $region49: #{tpu_custom_call.1} parent=43 // pred_check
          %p332 = pneg %p97
        $region50: #{tpu_custom_call.1} parent=43 // pred_check_branch
          %334 = sbr.rel (%p332) target = $region52
        $region51: #{tpu_custom_call.1} parent=43 // pred_region
          %335 = dma.done %s328, 128
        $region52: #{tpu_custom_call.1} parent=43 // pred_fallthru
          _
        // Predicated region
        $region53: #{tpu_custom_call.1} parent=43 // pred_check
          %p336 = pneg %p146
        $region54: #{tpu_custom_call.1} parent=43 // pred_check_branch
          %338 = sbr.rel (%p336) target = $region56
        $region55: #{tpu_custom_call.1} parent=43 // pred_region
          %339 = dma.done [#allocation9], 512
        $region56: #{tpu_custom_call.1} parent=43 // pred_fallthru
          _
        // Predicated region
        $region57: #{tpu_custom_call.1} parent=43 // pred_check
          %p340 = pneg %p167
        $region58: #{tpu_custom_call.1} parent=43 // pred_check_branch
          %342 = sbr.rel (%p340) target = $region60
        $region59: #{tpu_custom_call.1} parent=43 // pred_region
          %343 = dma.done [#allocation12], 512
        $region60: #{tpu_custom_call.1} parent=43 // pred_fallthru
          _
        %s344 = sand.u32 %s56, 1
        %s345 = scalar_lea.sflag [#allocation6], %s344
        %s346 = sand.u32 %s56, 1
        %s347 = smul.addr %s346, 8
        %s348 = scalar_lea.vmem [#allocation5], %s347
        %p349 = pneg %p69
        %p350 = pneg %p66
        %s351 = sand.u32 %s27, 1
        %s352 = scalar_lea.sflag [#allocation9], %s351
        %s353 = sand.u32 %s84, 1
        %s354 = smul.addr %s353, 8
        %s355 = scalar_lea.vmem [#allocation8], %s354
        %p356 = pneg %p97
        %p357 = pneg %p94
        %p358 = scmp.lt.s32.totalorder %s32, 1
        %s359 = scalar_select %p358, %s32, 1
        %p360 = scmp.lt.s32.totalorder %s34, 0
        %s361 = scalar_select %p360, %s34, 0
        %s362 = sadd.s32 %s361, %s359
        %s363 = scalar_lea.vmem %s2, %s362
        %p364 = pneg %p125
        %p365 = pneg %p122
        %p366 = pneg %p146
        %p367 = pneg %p143
        %p368 = pneg %p167
        %p369 = pneg %p164
        %p370 = pneg %p188
        %p371 = pneg %p185
        %p372 = pneg %p216
        %p373 = pneg %p213
        %s374 = sand.u32 %s203, 1
        %s375 = scalar_lea.sflag [#allocation7], %s374
        %s376 = sand.u32 %s203, 1
        %s377 = smul.addr %s376, 8
        %s378 = scalar_lea.vmem [#allocation13], %s377
        %p379 = scmp.lt.s32.totalorder %s32, 1
        %s380 = scalar_select %p379, %s32, 1
        %p381 = scmp.lt.s32.totalorder %s34, 0
        %s382 = scalar_select %p381, %s34, 0
        %s383 = sadd.s32 %s382, %s380
        %s384 = scalar_lea.vmem %s2, %s383
        %p385 = scmp.eq.s32.totalorder %s34, 0
        // Predicated region
        $region61: #{tpu_custom_call.1} parent=43 // pred_check
          %p386 = pneg %p385
        $region62: #{tpu_custom_call.1} parent=43 // pred_check_branch
          %388 = sbr.rel (%p386) target = $region64
        $region63: #{tpu_custom_call.1} parent=43 // pred_region
          %vm389 = vcmask 7168
          %390 = vst.msk [vmem:[#allocation2] sm:$0xff] %vm389, -inf
          %391 = vst.msk [vmem:[#allocation2 + $0x8] sm:$0xff] %vm389, -inf
          %392 = vst.msk [vmem:[#allocation2 + $0x10] sm:$0xff] %vm389, -inf
          %393 = vst.msk [vmem:[#allocation2 + $0x18] sm:$0xff] %vm389, -inf
          %394 = vst.msk [vmem:[#allocation3] sm:$0xff] %vm389, 0.0
          %395 = vst.msk [vmem:[#allocation3 + $0x8] sm:$0xff] %vm389, 0.0
          %396 = vst.msk [vmem:[#allocation3 + $0x10] sm:$0xff] %vm389, 0.0
          %397 = vst.msk [vmem:[#allocation3 + $0x18] sm:$0xff] %vm389, 0.0
          %vm398 = vcmask 64512
          %399 = vst.msk [vmem:[#allocation4] sm:$0xff] %vm398, 0.0
          %400 = vst.msk [vmem:[#allocation4 + $0x8] sm:$0xff] %vm398, 0.0
          %401 = vst.msk [vmem:[#allocation4 + $0x10] sm:$0xff] %vm398, 0.0
          %402 = vst.msk [vmem:[#allocation4 + $0x18] sm:$0xff] %vm398, 0.0
        $region64: #{tpu_custom_call.1} parent=43 // pred_fallthru
          _
        %v403 = vld [vmem:[%s322] sm:$0xff]
        %v404 = vld [vmem:[%s331] sm:$0xff]
        %v405 = vld [vmem:[%s384] sm:$0x1]
        %v406 = vmul.f32 %v403, 0.35355338
        %v408 = vlaneseq
        %v409 = vshrl.u32 %v408, 7
        %v410 = vsub.s32 0, %v409
        %v411 = vrot.slane %v405, %v410
        %vm413 = vcmask 64512
        %v415 = vsel %vm413, %v406, 0
        %v418 = vsel %vm413, %v404, 0
        %420 = vmatprep.subr.mxu0 0.0
        %421 = vmatpush1.xpose.msra.mxu0 0.0
        %422 = vmatprep.subr.mxu0 0.0
        %423 = vmatpush1.xpose.msra.mxu0 0.0
        %424 = vmatprep.subr.mxu0 0.0
        %425 = vmatpush1.xpose.msra.mxu0 0.0
        %426 = vmatprep.subr.mxu0 0.0
        %427 = vmatpush1.xpose.msra.mxu0 0.0
        %428 = vmatprep.subr.mxu0 0.0
        %429 = vmatpush1.xpose.msra.mxu0 0.0
        %430 = vmatprep.subr.mxu0 0.0
        %431 = vmatpush1.xpose.msra.mxu0 0.0
        %432 = vmatprep.subr.mxu0 0.0
        %433 = vmatpush1.xpose.msra.mxu0 0.0
        %434 = vmatprep.subr.mxu0 0.0
        %435 = vmatpush1.xpose.msra.mxu0 0.0
        %436 = vmatprep.subr.mxu0 0.0
        %437 = vmatpush1.xpose.msra.mxu0 0.0
        %438 = vmatprep.subr.mxu0 0.0
        %439 = vmatpush1.xpose.msra.mxu0 0.0
        %440 = vmatprep.subr.mxu0 0.0
        %441 = vmatpush1.xpose.msra.mxu0 0.0
        %442 = vmatprep.subr.mxu0 0.0
        %443 = vmatpush1.xpose.msra.mxu0 0.0
        %444 = vmatprep.subr.mxu0 0.0
        %445 = vmatpush1.xpose.msra.mxu0 0.0
        %446 = vmatprep.subr.mxu0 0.0
        %447 = vmatpush1.xpose.msra.mxu0 0.0
        %448 = vmatprep.subr.mxu0 0.0
        %449 = vmatpush1.xpose.msra.mxu0 0.0
        %450 = vmatprep.subr.mxu0 0.0
        %451 = vmatpush1.xpose.msra.mxu0 %v418
        %452 = vmatprep.subr.mxu0 0.0
        %453 = vmatpush2.xpose.msra.mxu0 0.0
        %454 = vmatprep.subr.mxu0 0.0
        %455 = vmatpush2.xpose.msra.mxu0 0.0
        %456 = vmatprep.subr.mxu0 0.0
        %457 = vmatpush2.xpose.msra.mxu0 0.0
        %458 = vmatprep.subr.mxu0 0.0
        %459 = vmatpush2.xpose.msra.mxu0 0.0
        %460 = vmatprep.subr.mxu0 0.0
        %461 = vmatpush2.xpose.msra.mxu0 0.0
        %462 = vmatprep.subr.mxu0 0.0
        %463 = vmatpush2.xpose.msra.mxu0 0.0
        %464 = vmatprep.subr.mxu0 0.0
        %465 = vmatpush2.xpose.msra.mxu0 0.0
        %466 = vmatprep.subr.mxu0 0.0
        %467 = vmatpush2.xpose.msra.mxu0 0.0
        %468 = vmatprep.subr.mxu0 0.0
        %469 = vmatpush2.xpose.msra.mxu0 0.0
        %470 = vmatprep.subr.mxu0 0.0
        %471 = vmatpush2.xpose.msra.mxu0 0.0
        %472 = vmatprep.subr.mxu0 0.0
        %473 = vmatpush2.xpose.msra.mxu0 0.0
        %474 = vmatprep.subr.mxu0 0.0
        %475 = vmatpush2.xpose.msra.mxu0 0.0
        %476 = vmatprep.subr.mxu0 0.0
        %477 = vmatpush2.xpose.msra.mxu0 0.0
        %478 = vmatprep.subr.mxu0 0.0
        %479 = vmatpush2.xpose.msra.mxu0 0.0
        %480 = vmatprep.subr.mxu0 0.0
        %481 = vmatpush2.xpose.msra.mxu0 0.0
        %482 = vmatprep.subr.mxu0 0.0
        %483 = vmatpush2.xpose.msra.mxu0 0.0
        %484 = vmatprep.mubr.f32.mxu0 0.0
        %485 = vmatmul.mubr.f32.gmra.mxu0 %v415
        %v486 = vpop.f32.mrf.mxu0
        %v487 = vadd.f32 %v411, %v486
        %v488 = vpop.f32.mrf.mxu0
        %489 = vdwg.mxu0
        %v490 = vld [vmem:[#allocation2] sm:$0xff]
        %v491 = vsel %vm413, %v487, -inf
        %492 = vmax.xlane.f32.xlu0 %v491
        %v493 = vpop.xlane.xlu0 %492
        %v494 = vmax.f32 %v490, %v493
        %v495 = vsub.f32 %v490, %v494
        %v496 = vmul.f32 %v495, 1.442695
        %v497 = vpow.pop %v496
        %499 = vset.pattern.permute.xlu0 0
        %500 = vperm.xlu0 %499, %v494
        %v501 = vpop.permute.xlu0 %500
        %v503 = vsub.f32 %v487, %v501
        %v504 = vmul.f32 %v503, 1.442695
        %v505 = vpow.pop %v504
        %v506 = vld [vmem:[#allocation3] sm:$0xff]
        %v507 = vmul.f32 %v497, %v506
        %v508 = vsel %vm413, %v505, 0.0
        %509 = vadd.xlane.f32.xlu0 %v508
        %v510 = vpop.xlane.xlu0 %509
        %v511 = vadd.f32 %v507, %v510
        %vm512 = vcmask 7168
        %513 = vst.msk [vmem:[#allocation3] sm:$0xff] %vm512, %v511
        %v514 = vld [vmem:[#allocation4] sm:$0xff]
        %516 = vset.pattern.permute.xlu0 0
        %517 = vperm.xlu0 %516, %v497
        %v518 = vpop.permute.xlu0 %517
        %v520 = vmul.f32 %v518, %v514
        %v522 = vsel %vm413, %v505, 0
        %524 = vmatprep.subr.mxu0 0.0
        %525 = vmatpush1.msra.mxu0 0.0
        %526 = vmatprep.subr.mxu0 0.0
        %527 = vmatpush1.msra.mxu0 0.0
        %528 = vmatprep.subr.mxu0 0.0
        %529 = vmatpush1.msra.mxu0 0.0
        %530 = vmatprep.subr.mxu0 0.0
        %531 = vmatpush1.msra.mxu0 0.0
        %532 = vmatprep.subr.mxu0 0.0
        %533 = vmatpush1.msra.mxu0 0.0
        %534 = vmatprep.subr.mxu0 0.0
        %535 = vmatpush1.msra.mxu0 0.0
        %536 = vmatprep.subr.mxu0 0.0
        %537 = vmatpush1.msra.mxu0 0.0
        %538 = vmatprep.subr.mxu0 0.0
        %539 = vmatpush1.msra.mxu0 0.0
        %540 = vmatprep.subr.mxu0 0.0
        %541 = vmatpush1.msra.mxu0 0.0
        %542 = vmatprep.subr.mxu0 0.0
        %543 = vmatpush1.msra.mxu0 0.0
        %544 = vmatprep.subr.mxu0 0.0
        %545 = vmatpush1.msra.mxu0 0.0
        %546 = vmatprep.subr.mxu0 0.0
        %547 = vmatpush1.msra.mxu0 0.0
        %548 = vmatprep.subr.mxu0 0.0
        %549 = vmatpush1.msra.mxu0 0.0
        %550 = vmatprep.subr.mxu0 0.0
        %551 = vmatpush1.msra.mxu0 0.0
        %552 = vmatprep.subr.mxu0 0.0
        %553 = vmatpush1.msra.mxu0 0.0
        %554 = vmatprep.subr.mxu0 0.0
        %555 = vmatpush1.msra.mxu0 %v404
        %556 = vmatprep.subr.mxu0 0.0
        %557 = vmatpush2.msra.mxu0 0.0
        %558 = vmatprep.subr.mxu0 0.0
        %559 = vmatpush2.msra.mxu0 0.0
        %560 = vmatprep.subr.mxu0 0.0
        %561 = vmatpush2.msra.mxu0 0.0
        %562 = vmatprep.subr.mxu0 0.0
        %563 = vmatpush2.msra.mxu0 0.0
        %564 = vmatprep.subr.mxu0 0.0
        %565 = vmatpush2.msra.mxu0 0.0
        %566 = vmatprep.subr.mxu0 0.0
        %567 = vmatpush2.msra.mxu0 0.0
        %568 = vmatprep.subr.mxu0 0.0
        %569 = vmatpush2.msra.mxu0 0.0
        %570 = vmatprep.subr.mxu0 0.0
        %571 = vmatpush2.msra.mxu0 0.0
        %572 = vmatprep.subr.mxu0 0.0
        %573 = vmatpush2.msra.mxu0 0.0
        %574 = vmatprep.subr.mxu0 0.0
        %575 = vmatpush2.msra.mxu0 0.0
        %576 = vmatprep.subr.mxu0 0.0
        %577 = vmatpush2.msra.mxu0 0.0
        %578 = vmatprep.subr.mxu0 0.0
        %579 = vmatpush2.msra.mxu0 0.0
        %580 = vmatprep.subr.mxu0 0.0
        %581 = vmatpush2.msra.mxu0 0.0
        %582 = vmatprep.subr.mxu0 0.0
        %583 = vmatpush2.msra.mxu0 0.0
        %584 = vmatprep.subr.mxu0 0.0
        %585 = vmatpush2.msra.mxu0 0.0
        %586 = vmatprep.subr.mxu0 0.0
        %587 = vmatpush2.msra.mxu0 0.0
        %588 = vmatprep.mubr.f32.mxu0 0.0
        %589 = vmatmul.mubr.f32.gmra.mxu0 %v522
        %v590 = vpop.f32.mrf.mxu0
        %v591 = vadd.f32 0.0, %v590
        %v592 = vpop.f32.mrf.mxu0
        %593 = vdwg.mxu0
        %v594 = vadd.f32 %v520, %v591
        %595 = vst.msk [vmem:[#allocation4] sm:$0xff] %vm413, %v594
        %596 = vst.msk [vmem:[#allocation2] sm:$0xff] %vm512, %v494
        %597 = vrot.lane.b32.xlu0 %v406, 120
        %v598 = vpop.permute.xlu0 %597
        %599 = vrot.lane.b32.xlu0 %v404, 120
        %v600 = vpop.permute.xlu0 %599
        %v601 = vsel %vm413, %v598, 0
        %v603 = vsel %vm413, %v600, 0
        %605 = vmatprep.subr.mxu0 0.0
        %606 = vmatpush1.xpose.msra.mxu0 0.0
        %607 = vmatprep.subr.mxu0 0.0
        %608 = vmatpush1.xpose.msra.mxu0 0.0
        %609 = vmatprep.subr.mxu0 0.0
        %610 = vmatpush1.xpose.msra.mxu0 0.0
        %611 = vmatprep.subr.mxu0 0.0
        %612 = vmatpush1.xpose.msra.mxu0 0.0
        %613 = vmatprep.subr.mxu0 0.0
        %614 = vmatpush1.xpose.msra.mxu0 0.0
        %615 = vmatprep.subr.mxu0 0.0
        %616 = vmatpush1.xpose.msra.mxu0 0.0
        %617 = vmatprep.subr.mxu0 0.0
        %618 = vmatpush1.xpose.msra.mxu0 0.0
        %619 = vmatprep.subr.mxu0 0.0
        %620 = vmatpush1.xpose.msra.mxu0 0.0
        %621 = vmatprep.subr.mxu0 0.0
        %622 = vmatpush1.xpose.msra.mxu0 0.0
        %623 = vmatprep.subr.mxu0 0.0
        %624 = vmatpush1.xpose.msra.mxu0 0.0
        %625 = vmatprep.subr.mxu0 0.0
        %626 = vmatpush1.xpose.msra.mxu0 0.0
        %627 = vmatprep.subr.mxu0 0.0
        %628 = vmatpush1.xpose.msra.mxu0 0.0
        %629 = vmatprep.subr.mxu0 0.0
        %630 = vmatpush1.xpose.msra.mxu0 0.0
        %631 = vmatprep.subr.mxu0 0.0
        %632 = vmatpush1.xpose.msra.mxu0 0.0
        %633 = vmatprep.subr.mxu0 0.0
        %634 = vmatpush1.xpose.msra.mxu0 0.0
        %635 = vmatprep.subr.mxu0 0.0
        %636 = vmatpush1.xpose.msra.mxu0 %v603
        %637 = vmatprep.subr.mxu0 0.0
        %638 = vmatpush2.xpose.msra.mxu0 0.0
        %639 = vmatprep.subr.mxu0 0.0
        %640 = vmatpush2.xpose.msra.mxu0 0.0
        %641 = vmatprep.subr.mxu0 0.0
        %642 = vmatpush2.xpose.msra.mxu0 0.0
        %643 = vmatprep.subr.mxu0 0.0
        %644 = vmatpush2.xpose.msra.mxu0 0.0
        %645 = vmatprep.subr.mxu0 0.0
        %646 = vmatpush2.xpose.msra.mxu0 0.0
        %647 = vmatprep.subr.mxu0 0.0
        %648 = vmatpush2.xpose.msra.mxu0 0.0
        %649 = vmatprep.subr.mxu0 0.0
        %650 = vmatpush2.xpose.msra.mxu0 0.0
        %651 = vmatprep.subr.mxu0 0.0
        %652 = vmatpush2.xpose.msra.mxu0 0.0
        %653 = vmatprep.subr.mxu0 0.0
        %654 = vmatpush2.xpose.msra.mxu0 0.0
        %655 = vmatprep.subr.mxu0 0.0
        %656 = vmatpush2.xpose.msra.mxu0 0.0
        %657 = vmatprep.subr.mxu0 0.0
        %658 = vmatpush2.xpose.msra.mxu0 0.0
        %659 = vmatprep.subr.mxu0 0.0
        %660 = vmatpush2.xpose.msra.mxu0 0.0
        %661 = vmatprep.subr.mxu0 0.0
        %662 = vmatpush2.xpose.msra.mxu0 0.0
        %663 = vmatprep.subr.mxu0 0.0
        %664 = vmatpush2.xpose.msra.mxu0 0.0
        %665 = vmatprep.subr.mxu0 0.0
        %666 = vmatpush2.xpose.msra.mxu0 0.0
        %667 = vmatprep.subr.mxu0 0.0
        %668 = vmatpush2.xpose.msra.mxu0 0.0
        %669 = vmatprep.mubr.f32.mxu0 0.0
        %670 = vmatmul.mubr.f32.gmra.mxu0 %v601
        %v671 = vpop.f32.mrf.mxu0
        %v672 = vadd.f32 %v411, %v671
        %v673 = vpop.f32.mrf.mxu0
        %674 = vdwg.mxu0
        %s675 = scalar_lea.vmem [#allocation2], 8
        %v676 = vld [vmem:[%s675] sm:$0xff]
        %v677 = vsel %vm413, %v672, -inf
        %678 = vmax.xlane.f32.xlu0 %v677
        %v679 = vpop.xlane.xlu0 %678
        %v680 = vmax.f32 %v676, %v679
        %v681 = vsub.f32 %v676, %v680
        %v682 = vmul.f32 %v681, 1.442695
        %v683 = vpow.pop %v682
        %685 = vset.pattern.permute.xlu0 0
        %686 = vperm.xlu0 %685, %v680
        %v687 = vpop.permute.xlu0 %686
        %v689 = vsub.f32 %v672, %v687
        %v690 = vmul.f32 %v689, 1.442695
        %v691 = vpow.pop %v690
        %s692 = scalar_lea.vmem [#allocation3], 8
        %v693 = vld [vmem:[%s692] sm:$0xff]
        %v694 = vmul.f32 %v683, %v693
        %v695 = vsel %vm413, %v691, 0.0
        %696 = vadd.xlane.f32.xlu0 %v695
        %v697 = vpop.xlane.xlu0 %696
        %v698 = vadd.f32 %v694, %v697
        %699 = vst.msk [vmem:[%s692] sm:$0xff] %vm512, %v698
        %s700 = scalar_lea.vmem [#allocation4], 8
        %v701 = vld [vmem:[%s700] sm:$0xff]
        %703 = vset.pattern.permute.xlu0 0
        %704 = vperm.xlu0 %703, %v683
        %v705 = vpop.permute.xlu0 %704
        %v707 = vmul.f32 %v705, %v701
        %v710 = vsel %vm413, %v691, 0
        %712 = vmatprep.subr.mxu0 0.0
        %713 = vmatpush1.msra.mxu0 0.0
        %714 = vmatprep.subr.mxu0 0.0
        %715 = vmatpush1.msra.mxu0 0.0
        %716 = vmatprep.subr.mxu0 0.0
        %717 = vmatpush1.msra.mxu0 0.0
        %718 = vmatprep.subr.mxu0 0.0
        %719 = vmatpush1.msra.mxu0 0.0
        %720 = vmatprep.subr.mxu0 0.0
        %721 = vmatpush1.msra.mxu0 0.0
        %722 = vmatprep.subr.mxu0 0.0
        %723 = vmatpush1.msra.mxu0 0.0
        %724 = vmatprep.subr.mxu0 0.0
        %725 = vmatpush1.msra.mxu0 0.0
        %726 = vmatprep.subr.mxu0 0.0
        %727 = vmatpush1.msra.mxu0 0.0
        %728 = vmatprep.subr.mxu0 0.0
        %729 = vmatpush1.msra.mxu0 0.0
        %730 = vmatprep.subr.mxu0 0.0
        %731 = vmatpush1.msra.mxu0 0.0
        %732 = vmatprep.subr.mxu0 0.0
        %733 = vmatpush1.msra.mxu0 0.0
        %734 = vmatprep.subr.mxu0 0.0
        %735 = vmatpush1.msra.mxu0 0.0
        %736 = vmatprep.subr.mxu0 0.0
        %737 = vmatpush1.msra.mxu0 0.0
        %738 = vmatprep.subr.mxu0 0.0
        %739 = vmatpush1.msra.mxu0 0.0
        %740 = vmatprep.subr.mxu0 0.0
        %741 = vmatpush1.msra.mxu0 0.0
        %742 = vmatprep.subr.mxu0 0.0
        %743 = vmatpush1.msra.mxu0 %v600
        %744 = vmatprep.subr.mxu0 0.0
        %745 = vmatpush2.msra.mxu0 0.0
        %746 = vmatprep.subr.mxu0 0.0
        %747 = vmatpush2.msra.mxu0 0.0
        %748 = vmatprep.subr.mxu0 0.0
        %749 = vmatpush2.msra.mxu0 0.0
        %750 = vmatprep.subr.mxu0 0.0
        %751 = vmatpush2.msra.mxu0 0.0
        %752 = vmatprep.subr.mxu0 0.0
        %753 = vmatpush2.msra.mxu0 0.0
        %754 = vmatprep.subr.mxu0 0.0
        %755 = vmatpush2.msra.mxu0 0.0
        %756 = vmatprep.subr.mxu0 0.0
        %757 = vmatpush2.msra.mxu0 0.0
        %758 = vmatprep.subr.mxu0 0.0
        %759 = vmatpush2.msra.mxu0 0.0
        %760 = vmatprep.subr.mxu0 0.0
        %761 = vmatpush2.msra.mxu0 0.0
        %762 = vmatprep.subr.mxu0 0.0
        %763 = vmatpush2.msra.mxu0 0.0
        %764 = vmatprep.subr.mxu0 0.0
        %765 = vmatpush2.msra.mxu0 0.0
        %766 = vmatprep.subr.mxu0 0.0
        %767 = vmatpush2.msra.mxu0 0.0
        %768 = vmatprep.subr.mxu0 0.0
        %769 = vmatpush2.msra.mxu0 0.0
        %770 = vmatprep.subr.mxu0 0.0
        %771 = vmatpush2.msra.mxu0 0.0
        %772 = vmatprep.subr.mxu0 0.0
        %773 = vmatpush2.msra.mxu0 0.0
        %774 = vmatprep.subr.mxu0 0.0
        %775 = vmatpush2.msra.mxu0 0.0
        %776 = vmatprep.mubr.f32.mxu0 0.0
        %777 = vmatmul.mubr.f32.gmra.mxu0 %v710
        %v778 = vpop.f32.mrf.mxu0
        %v779 = vadd.f32 0.0, %v778
        %v780 = vpop.f32.mrf.mxu0
        %781 = vdwg.mxu0
        %v782 = vadd.f32 %v707, %v779
        %783 = vst.msk [vmem:[%s700] sm:$0xff] %vm413, %v782
        %784 = vst.msk [vmem:[%s675] sm:$0xff] %vm512, %v680
        %785 = vrot.lane.b32.xlu0 %v406, 112
        %v786 = vpop.permute.xlu0 %785
        %787 = vrot.lane.b32.xlu0 %v404, 112
        %v788 = vpop.permute.xlu0 %787
        %v789 = vsel %vm413, %v786, 0
        %v791 = vsel %vm413, %v788, 0
        %793 = vmatprep.subr.mxu0 0.0
        %794 = vmatpush1.xpose.msra.mxu0 0.0
        %795 = vmatprep.subr.mxu0 0.0
        %796 = vmatpush1.xpose.msra.mxu0 0.0
        %797 = vmatprep.subr.mxu0 0.0
        %798 = vmatpush1.xpose.msra.mxu0 0.0
        %799 = vmatprep.subr.mxu0 0.0
        %800 = vmatpush1.xpose.msra.mxu0 0.0
        %801 = vmatprep.subr.mxu0 0.0
        %802 = vmatpush1.xpose.msra.mxu0 0.0
        %803 = vmatprep.subr.mxu0 0.0
        %804 = vmatpush1.xpose.msra.mxu0 0.0
        %805 = vmatprep.subr.mxu0 0.0
        %806 = vmatpush1.xpose.msra.mxu0 0.0
        %807 = vmatprep.subr.mxu0 0.0
        %808 = vmatpush1.xpose.msra.mxu0 0.0
        %809 = vmatprep.subr.mxu0 0.0
        %810 = vmatpush1.xpose.msra.mxu0 0.0
        %811 = vmatprep.subr.mxu0 0.0
        %812 = vmatpush1.xpose.msra.mxu0 0.0
        %813 = vmatprep.subr.mxu0 0.0
        %814 = vmatpush1.xpose.msra.mxu0 0.0
        %815 = vmatprep.subr.mxu0 0.0
        %816 = vmatpush1.xpose.msra.mxu0 0.0
        %817 = vmatprep.subr.mxu0 0.0
        %818 = vmatpush1.xpose.msra.mxu0 0.0
        %819 = vmatprep.subr.mxu0 0.0
        %820 = vmatpush1.xpose.msra.mxu0 0.0
        %821 = vmatprep.subr.mxu0 0.0
        %822 = vmatpush1.xpose.msra.mxu0 0.0
        %823 = vmatprep.subr.mxu0 0.0
        %824 = vmatpush1.xpose.msra.mxu0 %v791
        %825 = vmatprep.subr.mxu0 0.0
        %826 = vmatpush2.xpose.msra.mxu0 0.0
        %827 = vmatprep.subr.mxu0 0.0
        %828 = vmatpush2.xpose.msra.mxu0 0.0
        %829 = vmatprep.subr.mxu0 0.0
        %830 = vmatpush2.xpose.msra.mxu0 0.0
        %831 = vmatprep.subr.mxu0 0.0
        %832 = vmatpush2.xpose.msra.mxu0 0.0
        %833 = vmatprep.subr.mxu0 0.0
        %834 = vmatpush2.xpose.msra.mxu0 0.0
        %835 = vmatprep.subr.mxu0 0.0
        %836 = vmatpush2.xpose.msra.mxu0 0.0
        %837 = vmatprep.subr.mxu0 0.0
        %838 = vmatpush2.xpose.msra.mxu0 0.0
        %839 = vmatprep.subr.mxu0 0.0
        %840 = vmatpush2.xpose.msra.mxu0 0.0
        %841 = vmatprep.subr.mxu0 0.0
        %842 = vmatpush2.xpose.msra.mxu0 0.0
        %843 = vmatprep.subr.mxu0 0.0
        %844 = vmatpush2.xpose.msra.mxu0 0.0
        %845 = vmatprep.subr.mxu0 0.0
        %846 = vmatpush2.xpose.msra.mxu0 0.0
        %847 = vmatprep.subr.mxu0 0.0
        %848 = vmatpush2.xpose.msra.mxu0 0.0
        %849 = vmatprep.subr.mxu0 0.0
        %850 = vmatpush2.xpose.msra.mxu0 0.0
        %851 = vmatprep.subr.mxu0 0.0
        %852 = vmatpush2.xpose.msra.mxu0 0.0
        %853 = vmatprep.subr.mxu0 0.0
        %854 = vmatpush2.xpose.msra.mxu0 0.0
        %855 = vmatprep.subr.mxu0 0.0
        %856 = vmatpush2.xpose.msra.mxu0 0.0
        %857 = vmatprep.mubr.f32.mxu0 0.0
        %858 = vmatmul.mubr.f32.gmra.mxu0 %v789
        %v859 = vpop.f32.mrf.mxu0
        %v860 = vadd.f32 %v411, %v859
        %v861 = vpop.f32.mrf.mxu0
        %862 = vdwg.mxu0
        %s863 = scalar_lea.vmem [#allocation2], 16
        %v864 = vld [vmem:[%s863] sm:$0xff]
        %v865 = vsel %vm413, %v860, -inf
        %866 = vmax.xlane.f32.xlu0 %v865
        %v867 = vpop.xlane.xlu0 %866
        %v868 = vmax.f32 %v864, %v867
        %v869 = vsub.f32 %v864, %v868
        %v870 = vmul.f32 %v869, 1.442695
        %v871 = vpow.pop %v870
        %873 = vset.pattern.permute.xlu0 0
        %874 = vperm.xlu0 %873, %v868
        %v875 = vpop.permute.xlu0 %874
        %v877 = vsub.f32 %v860, %v875
        %v878 = vmul.f32 %v877, 1.442695
        %v879 = vpow.pop %v878
        %s880 = scalar_lea.vmem [#allocation3], 16
        %v881 = vld [vmem:[%s880] sm:$0xff]
        %v882 = vmul.f32 %v871, %v881
        %v883 = vsel %vm413, %v879, 0.0
        %884 = vadd.xlane.f32.xlu0 %v883
        %v885 = vpop.xlane.xlu0 %884
        %v886 = vadd.f32 %v882, %v885
        %887 = vst.msk [vmem:[%s880] sm:$0xff] %vm512, %v886
        %s888 = scalar_lea.vmem [#allocation4], 16
        %v889 = vld [vmem:[%s888] sm:$0xff]
        %891 = vset.pattern.permute.xlu0 0
        %892 = vperm.xlu0 %891, %v871
        %v893 = vpop.permute.xlu0 %892
        %v895 = vmul.f32 %v893, %v889
        %v898 = vsel %vm413, %v879, 0
        %900 = vmatprep.subr.mxu0 0.0
        %901 = vmatpush1.msra.mxu0 0.0
        %902 = vmatprep.subr.mxu0 0.0
        %903 = vmatpush1.msra.mxu0 0.0
        %904 = vmatprep.subr.mxu0 0.0
        %905 = vmatpush1.msra.mxu0 0.0
        %906 = vmatprep.subr.mxu0 0.0
        %907 = vmatpush1.msra.mxu0 0.0
        %908 = vmatprep.subr.mxu0 0.0
        %909 = vmatpush1.msra.mxu0 0.0
        %910 = vmatprep.subr.mxu0 0.0
        %911 = vmatpush1.msra.mxu0 0.0
        %912 = vmatprep.subr.mxu0 0.0
        %913 = vmatpush1.msra.mxu0 0.0
        %914 = vmatprep.subr.mxu0 0.0
        %915 = vmatpush1.msra.mxu0 0.0
        %916 = vmatprep.subr.mxu0 0.0
        %917 = vmatpush1.msra.mxu0 0.0
        %918 = vmatprep.subr.mxu0 0.0
        %919 = vmatpush1.msra.mxu0 0.0
        %920 = vmatprep.subr.mxu0 0.0
        %921 = vmatpush1.msra.mxu0 0.0
        %922 = vmatprep.subr.mxu0 0.0
        %923 = vmatpush1.msra.mxu0 0.0
        %924 = vmatprep.subr.mxu0 0.0
        %925 = vmatpush1.msra.mxu0 0.0
        %926 = vmatprep.subr.mxu0 0.0
        %927 = vmatpush1.msra.mxu0 0.0
        %928 = vmatprep.subr.mxu0 0.0
        %929 = vmatpush1.msra.mxu0 0.0
        %930 = vmatprep.subr.mxu0 0.0
        %931 = vmatpush1.msra.mxu0 %v788
        %932 = vmatprep.subr.mxu0 0.0
        %933 = vmatpush2.msra.mxu0 0.0
        %934 = vmatprep.subr.mxu0 0.0
        %935 = vmatpush2.msra.mxu0 0.0
        %936 = vmatprep.subr.mxu0 0.0
        %937 = vmatpush2.msra.mxu0 0.0
        %938 = vmatprep.subr.mxu0 0.0
        %939 = vmatpush2.msra.mxu0 0.0
        %940 = vmatprep.subr.mxu0 0.0
        %941 = vmatpush2.msra.mxu0 0.0
        %942 = vmatprep.subr.mxu0 0.0
        %943 = vmatpush2.msra.mxu0 0.0
        %944 = vmatprep.subr.mxu0 0.0
        %945 = vmatpush2.msra.mxu0 0.0
        %946 = vmatprep.subr.mxu0 0.0
        %947 = vmatpush2.msra.mxu0 0.0
        %948 = vmatprep.subr.mxu0 0.0
        %949 = vmatpush2.msra.mxu0 0.0
        %950 = vmatprep.subr.mxu0 0.0
        %951 = vmatpush2.msra.mxu0 0.0
        %952 = vmatprep.subr.mxu0 0.0
        %953 = vmatpush2.msra.mxu0 0.0
        %954 = vmatprep.subr.mxu0 0.0
        %955 = vmatpush2.msra.mxu0 0.0
        %956 = vmatprep.subr.mxu0 0.0
        %957 = vmatpush2.msra.mxu0 0.0
        %958 = vmatprep.subr.mxu0 0.0
        %959 = vmatpush2.msra.mxu0 0.0
        %960 = vmatprep.subr.mxu0 0.0
        %961 = vmatpush2.msra.mxu0 0.0
        %962 = vmatprep.subr.mxu0 0.0
        %963 = vmatpush2.msra.mxu0 0.0
        %964 = vmatprep.mubr.f32.mxu0 0.0
        %965 = vmatmul.mubr.f32.gmra.mxu0 %v898
        %v966 = vpop.f32.mrf.mxu0
        %v967 = vadd.f32 0.0, %v966
        %v968 = vpop.f32.mrf.mxu0
        %969 = vdwg.mxu0
        %v970 = vadd.f32 %v895, %v967
        %971 = vst.msk [vmem:[%s888] sm:$0xff] %vm413, %v970
        %972 = vst.msk [vmem:[%s863] sm:$0xff] %vm512, %v868
        %973 = vrot.lane.b32.xlu0 %v406, 104
        %v974 = vpop.permute.xlu0 %973
        %975 = vrot.lane.b32.xlu0 %v404, 104
        %v976 = vpop.permute.xlu0 %975
        %v977 = vsel %vm413, %v974, 0
        %v979 = vsel %vm413, %v976, 0
        %981 = vmatprep.subr.mxu0 0.0
        %982 = vmatpush1.xpose.msra.mxu0 0.0
        %983 = vmatprep.subr.mxu0 0.0
        %984 = vmatpush1.xpose.msra.mxu0 0.0
        %985 = vmatprep.subr.mxu0 0.0
        %986 = vmatpush1.xpose.msra.mxu0 0.0
        %987 = vmatprep.subr.mxu0 0.0
        %988 = vmatpush1.xpose.msra.mxu0 0.0
        %989 = vmatprep.subr.mxu0 0.0
        %990 = vmatpush1.xpose.msra.mxu0 0.0
        %991 = vmatprep.subr.mxu0 0.0
        %992 = vmatpush1.xpose.msra.mxu0 0.0
        %993 = vmatprep.subr.mxu0 0.0
        %994 = vmatpush1.xpose.msra.mxu0 0.0
        %995 = vmatprep.subr.mxu0 0.0
        %996 = vmatpush1.xpose.msra.mxu0 0.0
        %997 = vmatprep.subr.mxu0 0.0
        %998 = vmatpush1.xpose.msra.mxu0 0.0
        %999 = vmatprep.subr.mxu0 0.0
        %1000 = vmatpush1.xpose.msra.mxu0 0.0
        %1001 = vmatprep.subr.mxu0 0.0
        %1002 = vmatpush1.xpose.msra.mxu0 0.0
        %1003 = vmatprep.subr.mxu0 0.0
        %1004 = vmatpush1.xpose.msra.mxu0 0.0
        %1005 = vmatprep.subr.mxu0 0.0
        %1006 = vmatpush1.xpose.msra.mxu0 0.0
        %1007 = vmatprep.subr.mxu0 0.0
        %1008 = vmatpush1.xpose.msra.mxu0 0.0
        %1009 = vmatprep.subr.mxu0 0.0
        %1010 = vmatpush1.xpose.msra.mxu0 0.0
        %1011 = vmatprep.subr.mxu0 0.0
        %1012 = vmatpush1.xpose.msra.mxu0 %v979
        %1013 = vmatprep.subr.mxu0 0.0
        %1014 = vmatpush2.xpose.msra.mxu0 0.0
        %1015 = vmatprep.subr.mxu0 0.0
        %1016 = vmatpush2.xpose.msra.mxu0 0.0
        %1017 = vmatprep.subr.mxu0 0.0
        %1018 = vmatpush2.xpose.msra.mxu0 0.0
        %1019 = vmatprep.subr.mxu0 0.0
        %1020 = vmatpush2.xpose.msra.mxu0 0.0
        %1021 = vmatprep.subr.mxu0 0.0
        %1022 = vmatpush2.xpose.msra.mxu0 0.0
        %1023 = vmatprep.subr.mxu0 0.0
        %1024 = vmatpush2.xpose.msra.mxu0 0.0
        %1025 = vmatprep.subr.mxu0 0.0
        %1026 = vmatpush2.xpose.msra.mxu0 0.0
        %1027 = vmatprep.subr.mxu0 0.0
        %1028 = vmatpush2.xpose.msra.mxu0 0.0
        %1029 = vmatprep.subr.mxu0 0.0
        %1030 = vmatpush2.xpose.msra.mxu0 0.0
        %1031 = vmatprep.subr.mxu0 0.0
        %1032 = vmatpush2.xpose.msra.mxu0 0.0
        %1033 = vmatprep.subr.mxu0 0.0
        %1034 = vmatpush2.xpose.msra.mxu0 0.0
        %1035 = vmatprep.subr.mxu0 0.0
        %1036 = vmatpush2.xpose.msra.mxu0 0.0
        %1037 = vmatprep.subr.mxu0 0.0
        %1038 = vmatpush2.xpose.msra.mxu0 0.0
        %1039 = vmatprep.subr.mxu0 0.0
        %1040 = vmatpush2.xpose.msra.mxu0 0.0
        %1041 = vmatprep.subr.mxu0 0.0
        %1042 = vmatpush2.xpose.msra.mxu0 0.0
        %1043 = vmatprep.subr.mxu0 0.0
        %1044 = vmatpush2.xpose.msra.mxu0 0.0
        %1045 = vmatprep.mubr.f32.mxu0 0.0
        %1046 = vmatmul.mubr.f32.gmra.mxu0 %v977
        %v1047 = vpop.f32.mrf.mxu0
        %v1048 = vadd.f32 %v411, %v1047
        %v1049 = vpop.f32.mrf.mxu0
        %1050 = vdwg.mxu0
        %s1051 = scalar_lea.vmem [#allocation2], 24
        %v1052 = vld [vmem:[%s1051] sm:$0xff]
        %v1053 = vsel %vm413, %v1048, -inf
        %1054 = vmax.xlane.f32.xlu0 %v1053
        %v1055 = vpop.xlane.xlu0 %1054
        %v1056 = vmax.f32 %v1052, %v1055
        %v1057 = vsub.f32 %v1052, %v1056
        %v1058 = vmul.f32 %v1057, 1.442695
        %v1059 = vpow.pop %v1058
        %1061 = vset.pattern.permute.xlu0 0
        %1062 = vperm.xlu0 %1061, %v1056
        %v1063 = vpop.permute.xlu0 %1062
        %v1065 = vsub.f32 %v1048, %v1063
        %v1066 = vmul.f32 %v1065, 1.442695
        %v1067 = vpow.pop %v1066
        %s1068 = scalar_lea.vmem [#allocation3], 24
        %v1069 = vld [vmem:[%s1068] sm:$0xff]
        %v1070 = vmul.f32 %v1059, %v1069
        %v1071 = vsel %vm413, %v1067, 0.0
        %1072 = vadd.xlane.f32.xlu0 %v1071
        %v1073 = vpop.xlane.xlu0 %1072
        %v1074 = vadd.f32 %v1070, %v1073
        %1075 = vst.msk [vmem:[%s1068] sm:$0xff] %vm512, %v1074
        %s1076 = scalar_lea.vmem [#allocation4], 24
        %v1077 = vld [vmem:[%s1076] sm:$0xff]
        %1079 = vset.pattern.permute.xlu0 0
        %1080 = vperm.xlu0 %1079, %v1059
        %v1081 = vpop.permute.xlu0 %1080
        %v1083 = vmul.f32 %v1081, %v1077
        %v1086 = vsel %vm413, %v1067, 0
        %1088 = vmatprep.subr.mxu0 0.0
        %1089 = vmatpush1.msra.mxu0 0.0
        %1090 = vmatprep.subr.mxu0 0.0
        %1091 = vmatpush1.msra.mxu0 0.0
        %1092 = vmatprep.subr.mxu0 0.0
        %1093 = vmatpush1.msra.mxu0 0.0
        %1094 = vmatprep.subr.mxu0 0.0
        %1095 = vmatpush1.msra.mxu0 0.0
        %1096 = vmatprep.subr.mxu0 0.0
        %1097 = vmatpush1.msra.mxu0 0.0
        %1098 = vmatprep.subr.mxu0 0.0
        %1099 = vmatpush1.msra.mxu0 0.0
        %1100 = vmatprep.subr.mxu0 0.0
        %1101 = vmatpush1.msra.mxu0 0.0
        %1102 = vmatprep.subr.mxu0 0.0
        %1103 = vmatpush1.msra.mxu0 0.0
        %1104 = vmatprep.subr.mxu0 0.0
        %1105 = vmatpush1.msra.mxu0 0.0
        %1106 = vmatprep.subr.mxu0 0.0
        %1107 = vmatpush1.msra.mxu0 0.0
        %1108 = vmatprep.subr.mxu0 0.0
        %1109 = vmatpush1.msra.mxu0 0.0
        %1110 = vmatprep.subr.mxu0 0.0
        %1111 = vmatpush1.msra.mxu0 0.0
        %1112 = vmatprep.subr.mxu0 0.0
        %1113 = vmatpush1.msra.mxu0 0.0
        %1114 = vmatprep.subr.mxu0 0.0
        %1115 = vmatpush1.msra.mxu0 0.0
        %1116 = vmatprep.subr.mxu0 0.0
        %1117 = vmatpush1.msra.mxu0 0.0
        %1118 = vmatprep.subr.mxu0 0.0
        %1119 = vmatpush1.msra.mxu0 %v976
        %1120 = vmatprep.subr.mxu0 0.0
        %1121 = vmatpush2.msra.mxu0 0.0
        %1122 = vmatprep.subr.mxu0 0.0
        %1123 = vmatpush2.msra.mxu0 0.0
        %1124 = vmatprep.subr.mxu0 0.0
        %1125 = vmatpush2.msra.mxu0 0.0
        %1126 = vmatprep.subr.mxu0 0.0
        %1127 = vmatpush2.msra.mxu0 0.0
        %1128 = vmatprep.subr.mxu0 0.0
        %1129 = vmatpush2.msra.mxu0 0.0
        %1130 = vmatprep.subr.mxu0 0.0
        %1131 = vmatpush2.msra.mxu0 0.0
        %1132 = vmatprep.subr.mxu0 0.0
        %1133 = vmatpush2.msra.mxu0 0.0
        %1134 = vmatprep.subr.mxu0 0.0
        %1135 = vmatpush2.msra.mxu0 0.0
        %1136 = vmatprep.subr.mxu0 0.0
        %1137 = vmatpush2.msra.mxu0 0.0
        %1138 = vmatprep.subr.mxu0 0.0
        %1139 = vmatpush2.msra.mxu0 0.0
        %1140 = vmatprep.subr.mxu0 0.0
        %1141 = vmatpush2.msra.mxu0 0.0
        %1142 = vmatprep.subr.mxu0 0.0
        %1143 = vmatpush2.msra.mxu0 0.0
        %1144 = vmatprep.subr.mxu0 0.0
        %1145 = vmatpush2.msra.mxu0 0.0
        %1146 = vmatprep.subr.mxu0 0.0
        %1147 = vmatpush2.msra.mxu0 0.0
        %1148 = vmatprep.subr.mxu0 0.0
        %1149 = vmatpush2.msra.mxu0 0.0
        %1150 = vmatprep.subr.mxu0 0.0
        %1151 = vmatpush2.msra.mxu0 0.0
        %1152 = vmatprep.mubr.f32.mxu0 0.0
        %1153 = vmatmul.mubr.f32.gmra.mxu0 %v1086
        %v1154 = vpop.f32.mrf.mxu0
        %v1155 = vadd.f32 0.0, %v1154
        %v1156 = vpop.f32.mrf.mxu0
        %1157 = vdwg.mxu0
        %v1158 = vadd.f32 %v1083, %v1155
        %1159 = vst.msk [vmem:[%s1076] sm:$0xff] %vm413, %v1158
        %1160 = vst.msk [vmem:[%s1051] sm:$0xff] %vm512, %v1056
        // Predicated region
        $region65: #{tpu_custom_call.1} parent=43 // pred_check
          %p1161 = pneg %p385
        $region66: #{tpu_custom_call.1} parent=43 // pred_check_branch
          %1163 = sbr.rel (%p1161) target = $region68
        $region67: #{tpu_custom_call.1} parent=43 // pred_region
          %v1164 = vld [vmem:[#allocation10] sm:$0xff]
          %v1165 = vld [vmem:[#allocation10 + $0x8] sm:$0xff]
          %v1166 = vld [vmem:[#allocation10 + $0x10] sm:$0xff]
          %v1167 = vld [vmem:[#allocation10 + $0x18] sm:$0xff]
          %v1168 = vld [vmem:[#allocation4] sm:$0xff]
          %v1169 = vld [vmem:[#allocation3] sm:$0xff]
          %v1170 = vrcp.pop %v1169
          %1172 = vset.pattern.permute.xlu0 0
          %1173 = vperm.xlu0 %1172, %v1170
          %v1174 = vpop.permute.xlu0 %1173
          %v1176 = vmul.f32 %v1168, %v1174
          %v1177 = vld [vmem:[#allocation11] sm:$0xff]
          %v1179 = vsel %vm413, %v1176, 0
          %1181 = vmatprep.subr.mxu0 0.0
          %1182 = vmatpush1.msra.mxu0 0.0
          %1183 = vmatprep.subr.mxu0 0.0
          %1184 = vmatpush1.msra.mxu0 0.0
          %1185 = vmatprep.subr.mxu0 0.0
          %1186 = vmatpush1.msra.mxu0 0.0
          %1187 = vmatprep.subr.mxu0 0.0
          %1188 = vmatpush1.msra.mxu0 0.0
          %1189 = vmatprep.subr.mxu0 0.0
          %1190 = vmatpush1.msra.mxu0 0.0
          %1191 = vmatprep.subr.mxu0 0.0
          %1192 = vmatpush1.msra.mxu0 0.0
          %1193 = vmatprep.subr.mxu0 0.0
          %1194 = vmatpush1.msra.mxu0 0.0
          %1195 = vmatprep.subr.mxu0 0.0
          %1196 = vmatpush1.msra.mxu0 0.0
          %1197 = vmatprep.subr.mxu0 0.0
          %1198 = vmatpush1.msra.mxu0 0.0
          %1199 = vmatprep.subr.mxu0 0.0
          %1200 = vmatpush1.msra.mxu0 0.0
          %1201 = vmatprep.subr.mxu0 0.0
          %1202 = vmatpush1.msra.mxu0 0.0
          %1203 = vmatprep.subr.mxu0 0.0
          %1204 = vmatpush1.msra.mxu0 0.0
          %1205 = vmatprep.subr.mxu0 0.0
          %1206 = vmatpush1.msra.mxu0 0.0
          %1207 = vmatprep.subr.mxu0 0.0
          %1208 = vmatpush1.msra.mxu0 0.0
          %1209 = vmatprep.subr.mxu0 0.0
          %1210 = vmatpush1.msra.mxu0 0.0
          %1211 = vmatprep.subr.mxu0 0.0
          %1212 = vmatpush1.msra.mxu0 %v1177
          %1213 = vmatprep.subr.mxu0 0.0
          %1214 = vmatpush2.msra.mxu0 0.0
          %1215 = vmatprep.subr.mxu0 0.0
          %1216 = vmatpush2.msra.mxu0 0.0
          %1217 = vmatprep.subr.mxu0 0.0
          %1218 = vmatpush2.msra.mxu0 0.0
          %1219 = vmatprep.subr.mxu0 0.0
          %1220 = vmatpush2.msra.mxu0 0.0
          %1221 = vmatprep.subr.mxu0 0.0
          %1222 = vmatpush2.msra.mxu0 0.0
          %1223 = vmatprep.subr.mxu0 0.0
          %1224 = vmatpush2.msra.mxu0 0.0
          %1225 = vmatprep.subr.mxu0 0.0
          %1226 = vmatpush2.msra.mxu0 0.0
          %1227 = vmatprep.subr.mxu0 0.0
          %1228 = vmatpush2.msra.mxu0 0.0
          %1229 = vmatprep.subr.mxu0 0.0
          %1230 = vmatpush2.msra.mxu0 0.0
          %1231 = vmatprep.subr.mxu0 0.0
          %1232 = vmatpush2.msra.mxu0 0.0
          %1233 = vmatprep.subr.mxu0 0.0
          %1234 = vmatpush2.msra.mxu0 0.0
          %1235 = vmatprep.subr.mxu0 0.0
          %1236 = vmatpush2.msra.mxu0 0.0
          %1237 = vmatprep.subr.mxu0 0.0
          %1238 = vmatpush2.msra.mxu0 0.0
          %1239 = vmatprep.subr.mxu0 0.0
          %1240 = vmatpush2.msra.mxu0 0.0
          %1241 = vmatprep.subr.mxu0 0.0
          %1242 = vmatpush2.msra.mxu0 0.0
          %1243 = vmatprep.subr.mxu0 0.0
          %1244 = vmatpush2.msra.mxu0 0.0
          %1245 = vmatprep.mubr.f32.mxu0 0.0
          %1246 = vmatmul.mubr.f32.gmra.mxu0 %v1179
          %v1247 = vpop.f32.mrf.mxu0
          %v1248 = vadd.f32 0.0, %v1247
          %v1249 = vpop.f32.mrf.mxu0
          %1250 = vdwg.mxu0
          %vm1251 = vcmask 261120
          %v1253 = vsel %vm1251, %v403, 0
          %1255 = vmatprep.subr.mxu0 0.0
          %1256 = vmatpush1.msra.mxu0 0.0
          %1257 = vmatprep.subr.mxu0 0.0
          %1258 = vmatpush1.msra.mxu0 0.0
          %1259 = vmatprep.subr.mxu0 0.0
          %1260 = vmatpush1.msra.mxu0 0.0
          %1261 = vmatprep.subr.mxu0 0.0
          %1262 = vmatpush1.msra.mxu0 0.0
          %1263 = vmatprep.subr.mxu0 0.0
          %1264 = vmatpush1.msra.mxu0 0.0
          %1265 = vmatprep.subr.mxu0 0.0
          %1266 = vmatpush1.msra.mxu0 0.0
          %1267 = vmatprep.subr.mxu0 0.0
          %1268 = vmatpush1.msra.mxu0 0.0
          %1269 = vmatprep.subr.mxu0 0.0
          %1270 = vmatpush1.msra.mxu0 0.0
          %1271 = vmatprep.subr.mxu0 0.0
          %1272 = vmatpush1.msra.mxu0 0.0
          %1273 = vmatprep.subr.mxu0 0.0
          %1274 = vmatpush1.msra.mxu0 0.0
          %1275 = vmatprep.subr.mxu0 0.0
          %1276 = vmatpush1.msra.mxu0 0.0
          %1277 = vmatprep.subr.mxu0 0.0
          %1278 = vmatpush1.msra.mxu0 0.0
          %1279 = vmatprep.subr.mxu0 0.0
          %1280 = vmatpush1.msra.mxu0 %v1167
          %1281 = vmatprep.subr.mxu0 0.0
          %1282 = vmatpush1.msra.mxu0 %v1166
          %1283 = vmatprep.subr.mxu0 0.0
          %1284 = vmatpush1.msra.mxu0 %v1165
          %1285 = vmatprep.subr.mxu0 0.0
          %1286 = vmatpush1.msra.mxu0 %v1164
          %1287 = vmatprep.subr.mxu0 0.0
          %1288 = vmatpush2.msra.mxu0 0.0
          %1289 = vmatprep.subr.mxu0 0.0
          %1290 = vmatpush2.msra.mxu0 0.0
          %1291 = vmatprep.subr.mxu0 0.0
          %1292 = vmatpush2.msra.mxu0 0.0
          %1293 = vmatprep.subr.mxu0 0.0
          %1294 = vmatpush2.msra.mxu0 0.0
          %1295 = vmatprep.subr.mxu0 0.0
          %1296 = vmatpush2.msra.mxu0 0.0
          %1297 = vmatprep.subr.mxu0 0.0
          %1298 = vmatpush2.msra.mxu0 0.0
          %1299 = vmatprep.subr.mxu0 0.0
          %1300 = vmatpush2.msra.mxu0 0.0
          %1301 = vmatprep.subr.mxu0 0.0
          %1302 = vmatpush2.msra.mxu0 0.0
          %1303 = vmatprep.subr.mxu0 0.0
          %1304 = vmatpush2.msra.mxu0 0.0
          %1305 = vmatprep.subr.mxu0 0.0
          %1306 = vmatpush2.msra.mxu0 0.0
          %1307 = vmatprep.subr.mxu0 0.0
          %1308 = vmatpush2.msra.mxu0 0.0
          %1309 = vmatprep.subr.mxu0 0.0
          %1310 = vmatpush2.msra.mxu0 0.0
          %1311 = vmatprep.subr.mxu0 0.0
          %1312 = vmatpush2.msra.mxu0 0.0
          %1313 = vmatprep.subr.mxu0 0.0
          %1314 = vmatpush2.msra.mxu0 0.0
          %1315 = vmatprep.subr.mxu0 0.0
          %1316 = vmatpush2.msra.mxu0 0.0
          %1317 = vmatprep.subr.mxu0 0.0
          %1318 = vmatpush2.msra.mxu0 0.0
          %1319 = vmatprep.mubr.f32.mxu0 0.0
          %1320 = vmatmul.mubr.f32.gmra.mxu0 %v1253
          %v1321 = vpop.f32.mrf.mxu0
          %v1322 = vadd.f32 %v1248, %v1321
          %v1323 = vpop.f32.mrf.mxu0
          %1324 = vdwg.mxu0
          %v1325 = vld [vmem:[%s700] sm:$0xff]
          %v1326 = vld [vmem:[%s692] sm:$0xff]
          %v1327 = vrcp.pop %v1326
          %1329 = vset.pattern.permute.xlu0 0
          %1330 = vperm.xlu0 %1329, %v1327
          %v1331 = vpop.permute.xlu0 %1330
          %v1333 = vmul.f32 %v1325, %v1331
          %v1334 = vld [vmem:[#allocation11 + $0x8] sm:$0xff]
          %v1336 = vsel %vm413, %v1333, 0
          %1338 = vmatprep.subr.mxu0 0.0
          %1339 = vmatpush1.msra.mxu0 0.0
          %1340 = vmatprep.subr.mxu0 0.0
          %1341 = vmatpush1.msra.mxu0 0.0
          %1342 = vmatprep.subr.mxu0 0.0
          %1343 = vmatpush1.msra.mxu0 0.0
          %1344 = vmatprep.subr.mxu0 0.0
          %1345 = vmatpush1.msra.mxu0 0.0
          %1346 = vmatprep.subr.mxu0 0.0
          %1347 = vmatpush1.msra.mxu0 0.0
          %1348 = vmatprep.subr.mxu0 0.0
          %1349 = vmatpush1.msra.mxu0 0.0
          %1350 = vmatprep.subr.mxu0 0.0
          %1351 = vmatpush1.msra.mxu0 0.0
          %1352 = vmatprep.subr.mxu0 0.0
          %1353 = vmatpush1.msra.mxu0 0.0
          %1354 = vmatprep.subr.mxu0 0.0
          %1355 = vmatpush1.msra.mxu0 0.0
          %1356 = vmatprep.subr.mxu0 0.0
          %1357 = vmatpush1.msra.mxu0 0.0
          %1358 = vmatprep.subr.mxu0 0.0
          %1359 = vmatpush1.msra.mxu0 0.0
          %1360 = vmatprep.subr.mxu0 0.0
          %1361 = vmatpush1.msra.mxu0 0.0
          %1362 = vmatprep.subr.mxu0 0.0
          %1363 = vmatpush1.msra.mxu0 0.0
          %1364 = vmatprep.subr.mxu0 0.0
          %1365 = vmatpush1.msra.mxu0 0.0
          %1366 = vmatprep.subr.mxu0 0.0
          %1367 = vmatpush1.msra.mxu0 0.0
          %1368 = vmatprep.subr.mxu0 0.0
          %1369 = vmatpush1.msra.mxu0 %v1334
          %1370 = vmatprep.subr.mxu0 0.0
          %1371 = vmatpush2.msra.mxu0 0.0
          %1372 = vmatprep.subr.mxu0 0.0
          %1373 = vmatpush2.msra.mxu0 0.0
          %1374 = vmatprep.subr.mxu0 0.0
          %1375 = vmatpush2.msra.mxu0 0.0
          %1376 = vmatprep.subr.mxu0 0.0
          %1377 = vmatpush2.msra.mxu0 0.0
          %1378 = vmatprep.subr.mxu0 0.0
          %1379 = vmatpush2.msra.mxu0 0.0
          %1380 = vmatprep.subr.mxu0 0.0
          %1381 = vmatpush2.msra.mxu0 0.0
          %1382 = vmatprep.subr.mxu0 0.0
          %1383 = vmatpush2.msra.mxu0 0.0
          %1384 = vmatprep.subr.mxu0 0.0
          %1385 = vmatpush2.msra.mxu0 0.0
          %1386 = vmatprep.subr.mxu0 0.0
          %1387 = vmatpush2.msra.mxu0 0.0
          %1388 = vmatprep.subr.mxu0 0.0
          %1389 = vmatpush2.msra.mxu0 0.0
          %1390 = vmatprep.subr.mxu0 0.0
          %1391 = vmatpush2.msra.mxu0 0.0
          %1392 = vmatprep.subr.mxu0 0.0
          %1393 = vmatpush2.msra.mxu0 0.0
          %1394 = vmatprep.subr.mxu0 0.0
          %1395 = vmatpush2.msra.mxu0 0.0
          %1396 = vmatprep.subr.mxu0 0.0
          %1397 = vmatpush2.msra.mxu0 0.0
          %1398 = vmatprep.subr.mxu0 0.0
          %1399 = vmatpush2.msra.mxu0 0.0
          %1400 = vmatprep.subr.mxu0 0.0
          %1401 = vmatpush2.msra.mxu0 0.0
          %1402 = vmatprep.mubr.f32.mxu0 0.0
          %1403 = vmatmul.mubr.f32.gmra.mxu0 %v1336
          %v1404 = vpop.f32.mrf.mxu0
          %v1405 = vadd.f32 0.0, %v1404
          %v1406 = vpop.f32.mrf.mxu0
          %1407 = vdwg.mxu0
          %v1408 = vadd.f32 %v1322, %v1405
          %v1409 = vld [vmem:[%s888] sm:$0xff]
          %v1410 = vld [vmem:[%s880] sm:$0xff]
          %v1411 = vrcp.pop %v1410
          %1413 = vset.pattern.permute.xlu0 0
          %1414 = vperm.xlu0 %1413, %v1411
          %v1415 = vpop.permute.xlu0 %1414
          %v1417 = vmul.f32 %v1409, %v1415
          %v1418 = vld [vmem:[#allocation11 + $0x10] sm:$0xff]
          %v1420 = vsel %vm413, %v1417, 0
          %1422 = vmatprep.subr.mxu0 0.0
          %1423 = vmatpush1.msra.mxu0 0.0
          %1424 = vmatprep.subr.mxu0 0.0
          %1425 = vmatpush1.msra.mxu0 0.0
          %1426 = vmatprep.subr.mxu0 0.0
          %1427 = vmatpush1.msra.mxu0 0.0
          %1428 = vmatprep.subr.mxu0 0.0
          %1429 = vmatpush1.msra.mxu0 0.0
          %1430 = vmatprep.subr.mxu0 0.0
          %1431 = vmatpush1.msra.mxu0 0.0
          %1432 = vmatprep.subr.mxu0 0.0
          %1433 = vmatpush1.msra.mxu0 0.0
          %1434 = vmatprep.subr.mxu0 0.0
          %1435 = vmatpush1.msra.mxu0 0.0
          %1436 = vmatprep.subr.mxu0 0.0
          %1437 = vmatpush1.msra.mxu0 0.0
          %1438 = vmatprep.subr.mxu0 0.0
          %1439 = vmatpush1.msra.mxu0 0.0
          %1440 = vmatprep.subr.mxu0 0.0
          %1441 = vmatpush1.msra.mxu0 0.0
          %1442 = vmatprep.subr.mxu0 0.0
          %1443 = vmatpush1.msra.mxu0 0.0
          %1444 = vmatprep.subr.mxu0 0.0
          %1445 = vmatpush1.msra.mxu0 0.0
          %1446 = vmatprep.subr.mxu0 0.0
          %1447 = vmatpush1.msra.mxu0 0.0
          %1448 = vmatprep.subr.mxu0 0.0
          %1449 = vmatpush1.msra.mxu0 0.0
          %1450 = vmatprep.subr.mxu0 0.0
          %1451 = vmatpush1.msra.mxu0 0.0
          %1452 = vmatprep.subr.mxu0 0.0
          %1453 = vmatpush1.msra.mxu0 %v1418
          %1454 = vmatprep.subr.mxu0 0.0
          %1455 = vmatpush2.msra.mxu0 0.0
          %1456 = vmatprep.subr.mxu0 0.0
          %1457 = vmatpush2.msra.mxu0 0.0
          %1458 = vmatprep.subr.mxu0 0.0
          %1459 = vmatpush2.msra.mxu0 0.0
          %1460 = vmatprep.subr.mxu0 0.0
          %1461 = vmatpush2.msra.mxu0 0.0
          %1462 = vmatprep.subr.mxu0 0.0
          %1463 = vmatpush2.msra.mxu0 0.0
          %1464 = vmatprep.subr.mxu0 0.0
          %1465 = vmatpush2.msra.mxu0 0.0
          %1466 = vmatprep.subr.mxu0 0.0
          %1467 = vmatpush2.msra.mxu0 0.0
          %1468 = vmatprep.subr.mxu0 0.0
          %1469 = vmatpush2.msra.mxu0 0.0
          %1470 = vmatprep.subr.mxu0 0.0
          %1471 = vmatpush2.msra.mxu0 0.0
          %1472 = vmatprep.subr.mxu0 0.0
          %1473 = vmatpush2.msra.mxu0 0.0
          %1474 = vmatprep.subr.mxu0 0.0
          %1475 = vmatpush2.msra.mxu0 0.0
          %1476 = vmatprep.subr.mxu0 0.0
          %1477 = vmatpush2.msra.mxu0 0.0
          %1478 = vmatprep.subr.mxu0 0.0
          %1479 = vmatpush2.msra.mxu0 0.0
          %1480 = vmatprep.subr.mxu0 0.0
          %1481 = vmatpush2.msra.mxu0 0.0
          %1482 = vmatprep.subr.mxu0 0.0
          %1483 = vmatpush2.msra.mxu0 0.0
          %1484 = vmatprep.subr.mxu0 0.0
          %1485 = vmatpush2.msra.mxu0 0.0
          %1486 = vmatprep.mubr.f32.mxu0 0.0
          %1487 = vmatmul.mubr.f32.gmra.mxu0 %v1420
          %v1488 = vpop.f32.mrf.mxu0
          %v1489 = vadd.f32 0.0, %v1488
          %v1490 = vpop.f32.mrf.mxu0
          %1491 = vdwg.mxu0
          %v1492 = vadd.f32 %v1408, %v1489
          %v1493 = vld [vmem:[%s1076] sm:$0xff]
          %v1494 = vld [vmem:[%s1068] sm:$0xff]
          %v1495 = vrcp.pop %v1494
          %1497 = vset.pattern.permute.xlu0 0
          %1498 = vperm.xlu0 %1497, %v1495
          %v1499 = vpop.permute.xlu0 %1498
          %v1501 = vmul.f32 %v1493, %v1499
          %v1502 = vld [vmem:[#allocation11 + $0x18] sm:$0xff]
          %v1504 = vsel %vm413, %v1501, 0
          %1506 = vmatprep.subr.mxu0 0.0
          %1507 = vmatpush1.msra.mxu0 0.0
          %1508 = vmatprep.subr.mxu0 0.0
          %1509 = vmatpush1.msra.mxu0 0.0
          %1510 = vmatprep.subr.mxu0 0.0
          %1511 = vmatpush1.msra.mxu0 0.0
          %1512 = vmatprep.subr.mxu0 0.0
          %1513 = vmatpush1.msra.mxu0 0.0
          %1514 = vmatprep.subr.mxu0 0.0
          %1515 = vmatpush1.msra.mxu0 0.0
          %1516 = vmatprep.subr.mxu0 0.0
          %1517 = vmatpush1.msra.mxu0 0.0
          %1518 = vmatprep.subr.mxu0 0.0
          %1519 = vmatpush1.msra.mxu0 0.0
          %1520 = vmatprep.subr.mxu0 0.0
          %1521 = vmatpush1.msra.mxu0 0.0
          %1522 = vmatprep.subr.mxu0 0.0
          %1523 = vmatpush1.msra.mxu0 0.0
          %1524 = vmatprep.subr.mxu0 0.0
          %1525 = vmatpush1.msra.mxu0 0.0
          %1526 = vmatprep.subr.mxu0 0.0
          %1527 = vmatpush1.msra.mxu0 0.0
          %1528 = vmatprep.subr.mxu0 0.0
          %1529 = vmatpush1.msra.mxu0 0.0
          %1530 = vmatprep.subr.mxu0 0.0
          %1531 = vmatpush1.msra.mxu0 0.0
          %1532 = vmatprep.subr.mxu0 0.0
          %1533 = vmatpush1.msra.mxu0 0.0
          %1534 = vmatprep.subr.mxu0 0.0
          %1535 = vmatpush1.msra.mxu0 0.0
          %1536 = vmatprep.subr.mxu0 0.0
          %1537 = vmatpush1.msra.mxu0 %v1502
          %1538 = vmatprep.subr.mxu0 0.0
          %1539 = vmatpush2.msra.mxu0 0.0
          %1540 = vmatprep.subr.mxu0 0.0
          %1541 = vmatpush2.msra.mxu0 0.0
          %1542 = vmatprep.subr.mxu0 0.0
          %1543 = vmatpush2.msra.mxu0 0.0
          %1544 = vmatprep.subr.mxu0 0.0
          %1545 = vmatpush2.msra.mxu0 0.0
          %1546 = vmatprep.subr.mxu0 0.0
          %1547 = vmatpush2.msra.mxu0 0.0
          %1548 = vmatprep.subr.mxu0 0.0
          %1549 = vmatpush2.msra.mxu0 0.0
          %1550 = vmatprep.subr.mxu0 0.0
          %1551 = vmatpush2.msra.mxu0 0.0
          %1552 = vmatprep.subr.mxu0 0.0
          %1553 = vmatpush2.msra.mxu0 0.0
          %1554 = vmatprep.subr.mxu0 0.0
          %1555 = vmatpush2.msra.mxu0 0.0
          %1556 = vmatprep.subr.mxu0 0.0
          %1557 = vmatpush2.msra.mxu0 0.0
          %1558 = vmatprep.subr.mxu0 0.0
          %1559 = vmatpush2.msra.mxu0 0.0
          %1560 = vmatprep.subr.mxu0 0.0
          %1561 = vmatpush2.msra.mxu0 0.0
          %1562 = vmatprep.subr.mxu0 0.0
          %1563 = vmatpush2.msra.mxu0 0.0
          %1564 = vmatprep.subr.mxu0 0.0
          %1565 = vmatpush2.msra.mxu0 0.0
          %1566 = vmatprep.subr.mxu0 0.0
          %1567 = vmatpush2.msra.mxu0 0.0
          %1568 = vmatprep.subr.mxu0 0.0
          %1569 = vmatpush2.msra.mxu0 0.0
          %1570 = vmatprep.mubr.f32.mxu0 0.0
          %1571 = vmatmul.mubr.f32.gmra.mxu0 %v1504
          %v1572 = vpop.f32.mrf.mxu0
          %v1573 = vadd.f32 0.0, %v1572
          %v1574 = vpop.f32.mrf.mxu0
          %1575 = vdwg.mxu0
          %v1576 = vadd.f32 %v1492, %v1573
          %v1577 = vld [vmem:[%s5] sm:$0x1]
          %v1579 = vlaneseq
          %v1580 = vshrl.u32 %v1579, 7
          %v1581 = vsub.s32 0, %v1580
          %v1582 = vrot.slane %v1577, %v1581
          %v1584 = vadd.f32 %v1576, %v1582
          %v1585 = vxor.u32 %v1584, 2147483648
          %v1586 = vmul.f32 %v1585, 1.442695
          %v1587 = vpow.pop %v1586
          %v1588 = vadd.f32 %v1587, 1.0
          %v1589 = vrcp.pop %v1588
          %v1590 = vmul.f32 1.0, %v1589
          %v1591 = vtanh.pop %v1584
          %v1592 = vmul.f32 %v1590, %v1591
          %1593 = vst.msk [vmem:[%s378] sm:$0xff] %vm1251, %v1592
        $region68: #{tpu_custom_call.1} parent=43 // pred_fallthru
          _
        %s1594 = sand.u32 %s203, 1
        %s1595 = scalar_lea.sflag [#allocation7], %s1594
        %s1596 = sand.u32 %s203, 1
        %s1597 = smul.addr %s1596, 8
        %s1598 = scalar_lea.vmem [#allocation13], %s1597
        // Predicated region
        $region69: #{tpu_custom_call.1} parent=43 // pred_check
          %p1599 = pneg %p213
        $region70: #{tpu_custom_call.1} parent=43 // pred_check_branch
          %1601 = sbr.rel (%p1599) target = $region72
        $region71: #{tpu_custom_call.1} parent=43 // pred_region
          %s1603 = ssub.s32 128, 128
          %1604 = vsyncadd %s1595, %s1603
          %s1605 = sadd.s32 %s33, %s32
          %s1606 = smul.addr %s1605, 128
          %s1607 = scalar_lea.hbm %s6, %s1606
          %s1609 = sshll.u32 %s1598, 4
          %s1610 = int_to_ptr.vmem [resolvable:$true] %s1609
          %1612 = dma.vmem_to_hbm [thread:$0]  %s1610, 128, %s1607, %s1595
        $region72: #{tpu_custom_call.1} parent=43 // pred_fallthru
          _
      $region44: #{tpu_custom_call.1} parent=5 // pred_fallthru
        _
      %p1613 = scmp.le.s32.totalorder 2, %s22
      // Predicated region
      $region73: #{tpu_custom_call.1} parent=5 // pred_check
        %p1614 = pneg %p1613
      $region74: #{tpu_custom_call.1} parent=5 // pred_check_branch
        %1616 = sbr.rel (%p1614) target = $region76
      $region75: #{tpu_custom_call.1} parent=5 // pred_region
        %s1617 = ssub.s32 %s22, 2
        // Predicated region
        $region77: #{tpu_custom_call.1} parent=75 // pred_check
          %p1618 = pneg %p219
        $region78: #{tpu_custom_call.1} parent=75 // pred_check_branch
          %1620 = sbr.rel (%p1618) target = $region80
        $region79: #{tpu_custom_call.1} parent=75 // pred_region
          %s1621 = sand.u32 %s204, 1
          %s1622 = scalar_lea.sflag [#allocation7], %s1621
          %s1623 = sand.u32 %s204, 1
          %s1624 = smul.addr %s1623, 8
          %s1625 = scalar_lea.vmem [#allocation13], %s1624
          %1626 = dma.done %s1622, 128
        $region80: #{tpu_custom_call.1} parent=75 // pred_fallthru
          _
      $region76: #{tpu_custom_call.1} parent=5 // pred_fallthru
        _
    $region6: #{tpu_custom_call.1} parent=1 // loop_footer
      %s26 = sadd.s32 1, %s22
    $region7: #{tpu_custom_call.1} parent=1 // loop_footer_branch
      %21 = sbr.rel target = $region3
    $region8: #{tpu_custom_call.1} parent=1 // loop_exit
      _
    %1627 = vsyncpa [#allocation6], 1
    %s1628 = scalar_lea.sflag [#allocation6], 1
    %1629 = vsyncpa %s1628, 1
    %1630 = vsyncpa [#allocation9], 1
    %s1631 = scalar_lea.sflag [#allocation9], 1
    %1632 = vsyncpa %s1631, 1
    %1633 = vsyncpa [#allocation12], 1
    %1634 = vsyncpa [#allocation7], 1
    %s1635 = scalar_lea.sflag [#allocation7], 1
    %1636 = vsyncpa %s1635, 1

</llo_original>
